<compile_context>
chip_gen: v6e
topology: v6e:2x2x1
jax: 0.10.0
libtpu: 0.0.40
codegen_flags: <defaults>
</compile_context>

<pallas_src>
import math
from functools import partial

import jax
import jax.numpy as jnp
from jax.experimental import pallas as pl
from jax.experimental.pallas import tpu as pltpu


def _fused_one_neuron_kernel(x_ref, w1_ref, b1_ref, w2_ref, b2_ref, o_ref, *,
                             input_len, rec_iter_num, kernel_size, c1, c2):
    """Whole recurrent forward for one batch-block, entirely in VMEM/SMEM.

    x_ref  : (bb, input_len)   VMEM input window (single implicit channel)
    w1_ref : (C1*K,)           SMEM, w1_flat[c*K + k]            = w1[c, k]
    b1_ref : (C1,)             SMEM
    w2_ref : (C2*C1*K,)        SMEM, w2_flat[(o*C1 + c)*K + k]   = w2[o, c, k]
    b2_ref : (C2,)             SMEM
    o_ref  : (bb, total_len)   VMEM output block, total_len = input_len + R*L2
    """
    K = kernel_size
    C1, C2 = c1, c2
    L1 = input_len - K + 1
    L2 = L1 - K + 1

    # Hoist all scalar weight/bias reads out of the (statically unrolled)
    # recurrent loop.  SMEM scalar loads ride the otherwise-idle scalar slots.
    w1 = [[w1_ref[c * K + k] for k in range(K)] for c in range(C1)]
    b1 = [b1_ref[c] for c in range(C1)]
    w2 = [[[w2_ref[(o * C1 + c) * K + k] for k in range(K)] for c in range(C1)]
          for o in range(C2)]
    b2 = [b2_ref[o] for o in range(C2)]
    inv_c2 = 1.0 / C2

    # Output prefix is the input itself; later windows are re-read from o_ref,
    # so there is no growing concatenation and no per-iteration relayouts.
    o_ref[:, :input_len] = x_ref[...]

    for it in range(rec_iter_num):      # static unroll -> static lane offsets
        # Sliding window = last `input_len` columns written so far.
        win = o_ref[:, it * L2: it * L2 + input_len]            # (bb, input_len)

        # ---- layer 1: Conv1d(1 -> C1, K, valid) as scalar-splat VPU FMAs ----
        h1 = []
        for c in range(C1):
            acc = win[:, 0:L1] * w1[c][0]
            for k in range(1, K):
                acc = acc + win[:, k:k + L1] * w1[c][k]
            h1.append(jnp.maximum(acc + b1[c], 0.0))            # (bb, L1)

        # ---- layer 2: Conv1d(C1 -> C2, K, valid) + ReLU + channel mean ----
        slab = None
        for o in range(C2):
            acc = h1[0][:, 0:L2] * w2[o][0][0]
            for c in range(C1):
                for k in range(K):
                    if c == 0 and k == 0:
                        continue
                    acc = acc + h1[c][:, k:k + L2] * w2[o][c][k]
            acc = jnp.maximum(acc + b2[o], 0.0)                 # last_acti=True
            slab = acc if slab is None else slab + acc
        slab = slab * inv_c2                                    # "one neuron" mean

        # Append this iteration's slab at a static column offset.
        o_ref[:, input_len + it * L2: input_len + (it + 1) * L2] = slab


def _default_batch_block(B):
    """Largest multiple-of-8 divisor of B with blk <= min(B//2, 1024).

    Guarantees >=2 grid steps when possible (BlockSpec pipelining + v7x's
    second TensorCore via dimension_semantics=("parallel",)) while keeping the
    per-block VMEM footprint (~1 MB at 1024 rows) far below every generation's
    scoped VMEM limit (v5e 16 MiB default, v6e 32 MiB, v7x 64 MiB physical).
    """
    limit = min(B // 2, 1024)
    best = None
    for blk in range(8, limit + 1, 8):
        if B % blk == 0:
            best = blk
    return best if best is not None else B


def one_neuron_forward(x, params, input_len, rec_iter_num, batch_block=None):
    """OneNeuronModule.forward: recurrently append TCN output along time."""
    w1, b1, w2, b2 = params
    B, L = x.shape
    assert L == input_len
    C1, K = w1.shape
    C2 = w2.shape[0]
    L1 = input_len - K + 1
    L2 = L1 - K + 1
    assert L2 > 0
    total_len = input_len + rec_iter_num * L2

    if batch_block is None:
        batch_block = _default_batch_block(B)
    assert B % batch_block == 0
    assert batch_block == B or batch_block % 8 == 0, (
        "batch_block must be the full batch or a multiple of 8")
    nb = B // batch_block

    # Flatten the tiny weights/biases once in the wrapper; they are consumed as
    # per-tap SMEM scalars inside the kernel.
    w1_flat = w1.reshape(C1 * K)
    b1_flat = b1.reshape(C1)
    w2_flat = w2.reshape(C2 * C1 * K)   # w2_flat[(o*C1 + c)*K + k] = w2[o, c, k]
    b2_flat = b2.reshape(C2)

    flops_iter = (2 * B * (C1 * K * L1 + C2 * C1 * K * L2)
                  + 2 * B * (C1 * L1 + C2 * L2) + B * L2)
    bytes_accessed = 4 * (B * input_len + C1 * K + C1 + C2 * C1 * K + C2
                          + B * total_len)
    ce = pl.CostEstimate(flops=rec_iter_num * flops_iter, transcendentals=0,
                         bytes_accessed=bytes_accessed)

    kernel = partial(_fused_one_neuron_kernel, input_len=input_len,
                     rec_iter_num=rec_iter_num, kernel_size=K, c1=C1, c2=C2)

    return pl.pallas_call(
        kernel,
        out_shape=jax.ShapeDtypeStruct((B, total_len), jnp.float32),
        grid_spec=pltpu.PrefetchScalarGridSpec(
            num_scalar_prefetch=0,
            grid=(nb,),
            in_specs=[
                pl.BlockSpec((batch_block, input_len), lambda i: (i, 0)),
                pl.BlockSpec(memory_space=pltpu.MemorySpace.SMEM),
                pl.BlockSpec(memory_space=pltpu.MemorySpace.SMEM),
                pl.BlockSpec(memory_space=pltpu.MemorySpace.SMEM),
                pl.BlockSpec(memory_space=pltpu.MemorySpace.SMEM),
            ],
            # Last dim == full array dim -> exempt from the 128 rule: we write
            # exactly total_len columns back to HBM (no padding, no final slice).
            out_specs=pl.BlockSpec((batch_block, total_len), lambda i: (i, 0)),
        ),
        compiler_params=pltpu.CompilerParams(
            dimension_semantics=("parallel",)),
        cost_estimate=ce,
    )(x, w1_flat, b1_flat, w2_flat, b2_flat)


def init_params(key, channels, kernel_size):
    """Deterministic PyTorch-Conv1d-style init: U(-1/sqrt(fan_in), 1/sqrt(fan_in))."""
    c1, c2 = channels
    k = kernel_size
    k1, k2, k3, k4 = jax.random.split(key, 4)
    bound1 = 1.0 / math.sqrt(1 * k)          # layer 1 fan_in = in_ch(1) * K
    bound2 = 1.0 / math.sqrt(c1 * k)         # layer 2 fan_in = C1 * K
    w1 = jax.random.uniform(k1, (c1, k), jnp.float32, -bound1, bound1)
    b1 = jax.random.uniform(k2, (c1, 1), jnp.float32, -bound1, bound1)
    w2 = jax.random.uniform(k3, (c2, c1, k), jnp.float32, -bound2, bound2)
    b2 = jax.random.uniform(k4, (c2, 1), jnp.float32, -bound2, bound2)
    return (w1, b1, w2, b2)


def _reference_forward(x, params, input_len, rec_iter_num):
    """Pure-JAX (non-Pallas) reference for correctness checking."""
    w1, b1, w2, b2 = params
    C1, K = w1.shape
    out = x
    for _ in range(rec_iter_num):
        win = out[:, -input_len:]
        L1 = input_len - K + 1
        L2 = L1 - K + 1
        h1 = jnp.zeros((x.shape[0], C1, L1), jnp.float32)
        for k in range(K):
            h1 = h1 + w1[None, :, k, None] * win[:, None, k:k + L1]
        h1 = jnp.maximum(h1 + b1[None], 0.0)
        h2 = jnp.zeros((x.shape[0], w2.shape[0], L2), jnp.float32)
        for k in range(K):
            h2 = h2 + jnp.einsum('oc,bct->bot', w2[:, :, k], h1[:, :, k:k + L2])
        h2 = jnp.maximum(h2 + b2[None], 0.0)
        out = jnp.concatenate([out, jnp.mean(h2, axis=1)], axis=-1)
    return out


if __name__ == "__main__":
    # Small shapes consistent with the module:
    #   input_len=16, param={'channels': [8, 4], 'kernel_size': 3}, rec_iter_num=2
    batch = 2
    input_len = 16
    channels = (8, 4)
    kernel_size = 3
    rec_iter_num = 2

    key = jax.random.PRNGKey(0)
    kx, kp = jax.random.split(key)
    x = jax.random.normal(kx, (batch, input_len), jnp.float32)
    params = init_params(kp, channels, kernel_size)

    fwd = jax.jit(partial(one_neuron_forward,
                          input_len=input_len, rec_iter_num=rec_iter_num))
    out = fwd(x, params)
    jax.block_until_ready(out)

    # out length = input_len + rec_iter_num * (input_len - 2*(kernel_size-1))
    expected_len = input_len + rec_iter_num * (input_len - 2 * (kernel_size - 1))
    assert out.shape == (batch, expected_len), out.shape
    assert bool(jnp.all(jnp.isfinite(out)))

    ref = _reference_forward(x, params, input_len, rec_iter_num)
    max_err = float(jnp.max(jnp.abs(out - ref)))
    assert jnp.allclose(out, ref, rtol=1e-5, atol=1e-5), max_err

    print("KERNEL_OK")
</pallas_src>

<mosaic_0001>
module attributes {stable_mosaic.version = 11 : i64} {
  func.func @_fused_one_neuron_kernel(%arg0: i32, %arg1: memref<2x16xf32, #tpu.memory_space<vmem>>, %arg2: memref<24xf32, #tpu.memory_space<smem>>, %arg3: memref<8xf32, #tpu.memory_space<smem>>, %arg4: memref<96xf32, #tpu.memory_space<smem>>, %arg5: memref<4xf32, #tpu.memory_space<smem>>, %arg6: memref<2x40xf32, #tpu.memory_space<vmem>>) attributes {dimension_semantics = [#tpu.dimension_semantics<parallel>], iteration_bounds = array<i64: 1>, scalar_prefetch = 0 : i64, scratch_operands = 0 : i64, tpu.core_type = #tpu.core_type<tc>, window_params = [{transform_indices = @transform_0, window_bounds = array<i64: 2, 16>}, {transform_indices = @transform_1, window_bounds = array<i64: 24>}, {transform_indices = @transform_2, window_bounds = array<i64: 8>}, {transform_indices = @transform_3, window_bounds = array<i64: 96>}, {transform_indices = @transform_4, window_bounds = array<i64: 4>}, {transform_indices = @transform_5, window_bounds = array<i64: 2, 40>}]} {
    %c0 = arith.constant 0 : index
    %0 = memref.load %arg2[%c0] : memref<24xf32, #tpu.memory_space<smem>>
    %c1 = arith.constant 1 : index
    %1 = memref.load %arg2[%c1] : memref<24xf32, #tpu.memory_space<smem>>
    %c2 = arith.constant 2 : index
    %2 = memref.load %arg2[%c2] : memref<24xf32, #tpu.memory_space<smem>>
    %c3 = arith.constant 3 : index
    %3 = memref.load %arg2[%c3] : memref<24xf32, #tpu.memory_space<smem>>
    %c4 = arith.constant 4 : index
    %4 = memref.load %arg2[%c4] : memref<24xf32, #tpu.memory_space<smem>>
    %c5 = arith.constant 5 : index
    %5 = memref.load %arg2[%c5] : memref<24xf32, #tpu.memory_space<smem>>
    %c6 = arith.constant 6 : index
    %6 = memref.load %arg2[%c6] : memref<24xf32, #tpu.memory_space<smem>>
    %c7 = arith.constant 7 : index
    %7 = memref.load %arg2[%c7] : memref<24xf32, #tpu.memory_space<smem>>
    %c8 = arith.constant 8 : index
    %8 = memref.load %arg2[%c8] : memref<24xf32, #tpu.memory_space<smem>>
    %c9 = arith.constant 9 : index
    %9 = memref.load %arg2[%c9] : memref<24xf32, #tpu.memory_space<smem>>
    %c10 = arith.constant 10 : index
    %10 = memref.load %arg2[%c10] : memref<24xf32, #tpu.memory_space<smem>>
    %c11 = arith.constant 11 : index
    %11 = memref.load %arg2[%c11] : memref<24xf32, #tpu.memory_space<smem>>
    %c12 = arith.constant 12 : index
    %12 = memref.load %arg2[%c12] : memref<24xf32, #tpu.memory_space<smem>>
    %c13 = arith.constant 13 : index
    %13 = memref.load %arg2[%c13] : memref<24xf32, #tpu.memory_space<smem>>
    %c14 = arith.constant 14 : index
    %14 = memref.load %arg2[%c14] : memref<24xf32, #tpu.memory_space<smem>>
    %c15 = arith.constant 15 : index
    %15 = memref.load %arg2[%c15] : memref<24xf32, #tpu.memory_space<smem>>
    %c16 = arith.constant 16 : index
    %16 = memref.load %arg2[%c16] : memref<24xf32, #tpu.memory_space<smem>>
    %c17 = arith.constant 17 : index
    %17 = memref.load %arg2[%c17] : memref<24xf32, #tpu.memory_space<smem>>
    %c18 = arith.constant 18 : index
    %18 = memref.load %arg2[%c18] : memref<24xf32, #tpu.memory_space<smem>>
    %c19 = arith.constant 19 : index
    %19 = memref.load %arg2[%c19] : memref<24xf32, #tpu.memory_space<smem>>
    %c20 = arith.constant 20 : index
    %20 = memref.load %arg2[%c20] : memref<24xf32, #tpu.memory_space<smem>>
    %c21 = arith.constant 21 : index
    %21 = memref.load %arg2[%c21] : memref<24xf32, #tpu.memory_space<smem>>
    %c22 = arith.constant 22 : index
    %22 = memref.load %arg2[%c22] : memref<24xf32, #tpu.memory_space<smem>>
    %c23 = arith.constant 23 : index
    %23 = memref.load %arg2[%c23] : memref<24xf32, #tpu.memory_space<smem>>
    %c0_0 = arith.constant 0 : index
    %24 = memref.load %arg3[%c0_0] : memref<8xf32, #tpu.memory_space<smem>>
    %c1_1 = arith.constant 1 : index
    %25 = memref.load %arg3[%c1_1] : memref<8xf32, #tpu.memory_space<smem>>
    %c2_2 = arith.constant 2 : index
    %26 = memref.load %arg3[%c2_2] : memref<8xf32, #tpu.memory_space<smem>>
    %c3_3 = arith.constant 3 : index
    %27 = memref.load %arg3[%c3_3] : memref<8xf32, #tpu.memory_space<smem>>
    %c4_4 = arith.constant 4 : index
    %28 = memref.load %arg3[%c4_4] : memref<8xf32, #tpu.memory_space<smem>>
    %c5_5 = arith.constant 5 : index
    %29 = memref.load %arg3[%c5_5] : memref<8xf32, #tpu.memory_space<smem>>
    %c6_6 = arith.constant 6 : index
    %30 = memref.load %arg3[%c6_6] : memref<8xf32, #tpu.memory_space<smem>>
    %c7_7 = arith.constant 7 : index
    %31 = memref.load %arg3[%c7_7] : memref<8xf32, #tpu.memory_space<smem>>
    %c0_8 = arith.constant 0 : index
    %32 = memref.load %arg4[%c0_8] : memref<96xf32, #tpu.memory_space<smem>>
    %c1_9 = arith.constant 1 : index
    %33 = memref.load %arg4[%c1_9] : memref<96xf32, #tpu.memory_space<smem>>
    %c2_10 = arith.constant 2 : index
    %34 = memref.load %arg4[%c2_10] : memref<96xf32, #tpu.memory_space<smem>>
    %c3_11 = arith.constant 3 : index
    %35 = memref.load %arg4[%c3_11] : memref<96xf32, #tpu.memory_space<smem>>
    %c4_12 = arith.constant 4 : index
    %36 = memref.load %arg4[%c4_12] : memref<96xf32, #tpu.memory_space<smem>>
    %c5_13 = arith.constant 5 : index
    %37 = memref.load %arg4[%c5_13] : memref<96xf32, #tpu.memory_space<smem>>
    %c6_14 = arith.constant 6 : index
    %38 = memref.load %arg4[%c6_14] : memref<96xf32, #tpu.memory_space<smem>>
    %c7_15 = arith.constant 7 : index
    %39 = memref.load %arg4[%c7_15] : memref<96xf32, #tpu.memory_space<smem>>
    %c8_16 = arith.constant 8 : index
    %40 = memref.load %arg4[%c8_16] : memref<96xf32, #tpu.memory_space<smem>>
    %c9_17 = arith.constant 9 : index
    %41 = memref.load %arg4[%c9_17] : memref<96xf32, #tpu.memory_space<smem>>
    %c10_18 = arith.constant 10 : index
    %42 = memref.load %arg4[%c10_18] : memref<96xf32, #tpu.memory_space<smem>>
    %c11_19 = arith.constant 11 : index
    %43 = memref.load %arg4[%c11_19] : memref<96xf32, #tpu.memory_space<smem>>
    %c12_20 = arith.constant 12 : index
    %44 = memref.load %arg4[%c12_20] : memref<96xf32, #tpu.memory_space<smem>>
    %c13_21 = arith.constant 13 : index
    %45 = memref.load %arg4[%c13_21] : memref<96xf32, #tpu.memory_space<smem>>
    %c14_22 = arith.constant 14 : index
    %46 = memref.load %arg4[%c14_22] : memref<96xf32, #tpu.memory_space<smem>>
    %c15_23 = arith.constant 15 : index
    %47 = memref.load %arg4[%c15_23] : memref<96xf32, #tpu.memory_space<smem>>
    %c16_24 = arith.constant 16 : index
    %48 = memref.load %arg4[%c16_24] : memref<96xf32, #tpu.memory_space<smem>>
    %c17_25 = arith.constant 17 : index
    %49 = memref.load %arg4[%c17_25] : memref<96xf32, #tpu.memory_space<smem>>
    %c18_26 = arith.constant 18 : index
    %50 = memref.load %arg4[%c18_26] : memref<96xf32, #tpu.memory_space<smem>>
    %c19_27 = arith.constant 19 : index
    %51 = memref.load %arg4[%c19_27] : memref<96xf32, #tpu.memory_space<smem>>
    %c20_28 = arith.constant 20 : index
    %52 = memref.load %arg4[%c20_28] : memref<96xf32, #tpu.memory_space<smem>>
    %c21_29 = arith.constant 21 : index
    %53 = memref.load %arg4[%c21_29] : memref<96xf32, #tpu.memory_space<smem>>
    %c22_30 = arith.constant 22 : index
    %54 = memref.load %arg4[%c22_30] : memref<96xf32, #tpu.memory_space<smem>>
    %c23_31 = arith.constant 23 : index
    %55 = memref.load %arg4[%c23_31] : memref<96xf32, #tpu.memory_space<smem>>
    %c24 = arith.constant 24 : index
    %56 = memref.load %arg4[%c24] : memref<96xf32, #tpu.memory_space<smem>>
    %c25 = arith.constant 25 : index
    %57 = memref.load %arg4[%c25] : memref<96xf32, #tpu.memory_space<smem>>
    %c26 = arith.constant 26 : index
    %58 = memref.load %arg4[%c26] : memref<96xf32, #tpu.memory_space<smem>>
    %c27 = arith.constant 27 : index
    %59 = memref.load %arg4[%c27] : memref<96xf32, #tpu.memory_space<smem>>
    %c28 = arith.constant 28 : index
    %60 = memref.load %arg4[%c28] : memref<96xf32, #tpu.memory_space<smem>>
    %c29 = arith.constant 29 : index
    %61 = memref.load %arg4[%c29] : memref<96xf32, #tpu.memory_space<smem>>
    %c30 = arith.constant 30 : index
    %62 = memref.load %arg4[%c30] : memref<96xf32, #tpu.memory_space<smem>>
    %c31 = arith.constant 31 : index
    %63 = memref.load %arg4[%c31] : memref<96xf32, #tpu.memory_space<smem>>
    %c32 = arith.constant 32 : index
    %64 = memref.load %arg4[%c32] : memref<96xf32, #tpu.memory_space<smem>>
    %c33 = arith.constant 33 : index
    %65 = memref.load %arg4[%c33] : memref<96xf32, #tpu.memory_space<smem>>
    %c34 = arith.constant 34 : index
    %66 = memref.load %arg4[%c34] : memref<96xf32, #tpu.memory_space<smem>>
    %c35 = arith.constant 35 : index
    %67 = memref.load %arg4[%c35] : memref<96xf32, #tpu.memory_space<smem>>
    %c36 = arith.constant 36 : index
    %68 = memref.load %arg4[%c36] : memref<96xf32, #tpu.memory_space<smem>>
    %c37 = arith.constant 37 : index
    %69 = memref.load %arg4[%c37] : memref<96xf32, #tpu.memory_space<smem>>
    %c38 = arith.constant 38 : index
    %70 = memref.load %arg4[%c38] : memref<96xf32, #tpu.memory_space<smem>>
    %c39 = arith.constant 39 : index
    %71 = memref.load %arg4[%c39] : memref<96xf32, #tpu.memory_space<smem>>
    %c40 = arith.constant 40 : index
    %72 = memref.load %arg4[%c40] : memref<96xf32, #tpu.memory_space<smem>>
    %c41 = arith.constant 41 : index
    %73 = memref.load %arg4[%c41] : memref<96xf32, #tpu.memory_space<smem>>
    %c42 = arith.constant 42 : index
    %74 = memref.load %arg4[%c42] : memref<96xf32, #tpu.memory_space<smem>>
    %c43 = arith.constant 43 : index
    %75 = memref.load %arg4[%c43] : memref<96xf32, #tpu.memory_space<smem>>
    %c44 = arith.constant 44 : index
    %76 = memref.load %arg4[%c44] : memref<96xf32, #tpu.memory_space<smem>>
    %c45 = arith.constant 45 : index
    %77 = memref.load %arg4[%c45] : memref<96xf32, #tpu.memory_space<smem>>
    %c46 = arith.constant 46 : index
    %78 = memref.load %arg4[%c46] : memref<96xf32, #tpu.memory_space<smem>>
    %c47 = arith.constant 47 : index
    %79 = memref.load %arg4[%c47] : memref<96xf32, #tpu.memory_space<smem>>
    %c48 = arith.constant 48 : index
    %80 = memref.load %arg4[%c48] : memref<96xf32, #tpu.memory_space<smem>>
    %c49 = arith.constant 49 : index
    %81 = memref.load %arg4[%c49] : memref<96xf32, #tpu.memory_space<smem>>
    %c50 = arith.constant 50 : index
    %82 = memref.load %arg4[%c50] : memref<96xf32, #tpu.memory_space<smem>>
    %c51 = arith.constant 51 : index
    %83 = memref.load %arg4[%c51] : memref<96xf32, #tpu.memory_space<smem>>
    %c52 = arith.constant 52 : index
    %84 = memref.load %arg4[%c52] : memref<96xf32, #tpu.memory_space<smem>>
    %c53 = arith.constant 53 : index
    %85 = memref.load %arg4[%c53] : memref<96xf32, #tpu.memory_space<smem>>
    %c54 = arith.constant 54 : index
    %86 = memref.load %arg4[%c54] : memref<96xf32, #tpu.memory_space<smem>>
    %c55 = arith.constant 55 : index
    %87 = memref.load %arg4[%c55] : memref<96xf32, #tpu.memory_space<smem>>
    %c56 = arith.constant 56 : index
    %88 = memref.load %arg4[%c56] : memref<96xf32, #tpu.memory_space<smem>>
    %c57 = arith.constant 57 : index
    %89 = memref.load %arg4[%c57] : memref<96xf32, #tpu.memory_space<smem>>
    %c58 = arith.constant 58 : index
    %90 = memref.load %arg4[%c58] : memref<96xf32, #tpu.memory_space<smem>>
    %c59 = arith.constant 59 : index
    %91 = memref.load %arg4[%c59] : memref<96xf32, #tpu.memory_space<smem>>
    %c60 = arith.constant 60 : index
    %92 = memref.load %arg4[%c60] : memref<96xf32, #tpu.memory_space<smem>>
    %c61 = arith.constant 61 : index
    %93 = memref.load %arg4[%c61] : memref<96xf32, #tpu.memory_space<smem>>
    %c62 = arith.constant 62 : index
    %94 = memref.load %arg4[%c62] : memref<96xf32, #tpu.memory_space<smem>>
    %c63 = arith.constant 63 : index
    %95 = memref.load %arg4[%c63] : memref<96xf32, #tpu.memory_space<smem>>
    %c64 = arith.constant 64 : index
    %96 = memref.load %arg4[%c64] : memref<96xf32, #tpu.memory_space<smem>>
    %c65 = arith.constant 65 : index
    %97 = memref.load %arg4[%c65] : memref<96xf32, #tpu.memory_space<smem>>
    %c66 = arith.constant 66 : index
    %98 = memref.load %arg4[%c66] : memref<96xf32, #tpu.memory_space<smem>>
    %c67 = arith.constant 67 : index
    %99 = memref.load %arg4[%c67] : memref<96xf32, #tpu.memory_space<smem>>
    %c68 = arith.constant 68 : index
    %100 = memref.load %arg4[%c68] : memref<96xf32, #tpu.memory_space<smem>>
    %c69 = arith.constant 69 : index
    %101 = memref.load %arg4[%c69] : memref<96xf32, #tpu.memory_space<smem>>
    %c70 = arith.constant 70 : index
    %102 = memref.load %arg4[%c70] : memref<96xf32, #tpu.memory_space<smem>>
    %c71 = arith.constant 71 : index
    %103 = memref.load %arg4[%c71] : memref<96xf32, #tpu.memory_space<smem>>
    %c72 = arith.constant 72 : index
    %104 = memref.load %arg4[%c72] : memref<96xf32, #tpu.memory_space<smem>>
    %c73 = arith.constant 73 : index
    %105 = memref.load %arg4[%c73] : memref<96xf32, #tpu.memory_space<smem>>
    %c74 = arith.constant 74 : index
    %106 = memref.load %arg4[%c74] : memref<96xf32, #tpu.memory_space<smem>>
    %c75 = arith.constant 75 : index
    %107 = memref.load %arg4[%c75] : memref<96xf32, #tpu.memory_space<smem>>
    %c76 = arith.constant 76 : index
    %108 = memref.load %arg4[%c76] : memref<96xf32, #tpu.memory_space<smem>>
    %c77 = arith.constant 77 : index
    %109 = memref.load %arg4[%c77] : memref<96xf32, #tpu.memory_space<smem>>
    %c78 = arith.constant 78 : index
    %110 = memref.load %arg4[%c78] : memref<96xf32, #tpu.memory_space<smem>>
    %c79 = arith.constant 79 : index
    %111 = memref.load %arg4[%c79] : memref<96xf32, #tpu.memory_space<smem>>
    %c80 = arith.constant 80 : index
    %112 = memref.load %arg4[%c80] : memref<96xf32, #tpu.memory_space<smem>>
    %c81 = arith.constant 81 : index
    %113 = memref.load %arg4[%c81] : memref<96xf32, #tpu.memory_space<smem>>
    %c82 = arith.constant 82 : index
    %114 = memref.load %arg4[%c82] : memref<96xf32, #tpu.memory_space<smem>>
    %c83 = arith.constant 83 : index
    %115 = memref.load %arg4[%c83] : memref<96xf32, #tpu.memory_space<smem>>
    %c84 = arith.constant 84 : index
    %116 = memref.load %arg4[%c84] : memref<96xf32, #tpu.memory_space<smem>>
    %c85 = arith.constant 85 : index
    %117 = memref.load %arg4[%c85] : memref<96xf32, #tpu.memory_space<smem>>
    %c86 = arith.constant 86 : index
    %118 = memref.load %arg4[%c86] : memref<96xf32, #tpu.memory_space<smem>>
    %c87 = arith.constant 87 : index
    %119 = memref.load %arg4[%c87] : memref<96xf32, #tpu.memory_space<smem>>
    %c88 = arith.constant 88 : index
    %120 = memref.load %arg4[%c88] : memref<96xf32, #tpu.memory_space<smem>>
    %c89 = arith.constant 89 : index
    %121 = memref.load %arg4[%c89] : memref<96xf32, #tpu.memory_space<smem>>
    %c90 = arith.constant 90 : index
    %122 = memref.load %arg4[%c90] : memref<96xf32, #tpu.memory_space<smem>>
    %c91 = arith.constant 91 : index
    %123 = memref.load %arg4[%c91] : memref<96xf32, #tpu.memory_space<smem>>
    %c92 = arith.constant 92 : index
    %124 = memref.load %arg4[%c92] : memref<96xf32, #tpu.memory_space<smem>>
    %c93 = arith.constant 93 : index
    %125 = memref.load %arg4[%c93] : memref<96xf32, #tpu.memory_space<smem>>
    %c94 = arith.constant 94 : index
    %126 = memref.load %arg4[%c94] : memref<96xf32, #tpu.memory_space<smem>>
    %c95 = arith.constant 95 : index
    %127 = memref.load %arg4[%c95] : memref<96xf32, #tpu.memory_space<smem>>
    %c0_32 = arith.constant 0 : index
    %128 = memref.load %arg5[%c0_32] : memref<4xf32, #tpu.memory_space<smem>>
    %c1_33 = arith.constant 1 : index
    %129 = memref.load %arg5[%c1_33] : memref<4xf32, #tpu.memory_space<smem>>
    %c2_34 = arith.constant 2 : index
    %130 = memref.load %arg5[%c2_34] : memref<4xf32, #tpu.memory_space<smem>>
    %c3_35 = arith.constant 3 : index
    %131 = memref.load %arg5[%c3_35] : memref<4xf32, #tpu.memory_space<smem>>
    %c0_36 = arith.constant 0 : index
    %c0_37 = arith.constant 0 : index
    %132 = vector.load %arg1[%c0_36, %c0_37] : memref<2x16xf32, #tpu.memory_space<vmem>>, vector<2x16xf32>
    %c0_38 = arith.constant 0 : index
    %c0_39 = arith.constant 0 : index
    %133 = vector.load %arg6[%c0_38, %c0_39] : memref<2x40xf32, #tpu.memory_space<vmem>>, vector<2x16xf32>
    tpu.vector_store %arg6[%c0_38, %c0_39], %132 {strides = array<i32>} : memref<2x40xf32, #tpu.memory_space<vmem>>, vector<2x16xf32>,
    %c0_40 = arith.constant 0 : index
    %c0_41 = arith.constant 0 : index
    %134 = vector.load %arg6[%c0_40, %c0_41] : memref<2x40xf32, #tpu.memory_space<vmem>>, vector<2x16xf32>
    %135 = vector.extract_strided_slice %134 {offsets = [0, 0], sizes = [2, 14], strides = [1, 1]} : vector<2x16xf32> to vector<2x14xf32>
    %136 = vector.broadcast %0 : f32 to vector<2x14xf32>
    %137 = arith.mulf %135, %136 : vector<2x14xf32>
    %138 = vector.extract_strided_slice %134 {offsets = [0, 1], sizes = [2, 14], strides = [1, 1]} : vector<2x16xf32> to vector<2x14xf32>
    %139 = vector.broadcast %1 : f32 to vector<2x14xf32>
    %140 = arith.mulf %138, %139 : vector<2x14xf32>
    %141 = arith.addf %137, %140 : vector<2x14xf32>
    %142 = vector.extract_strided_slice %134 {offsets = [0, 2], sizes = [2, 14], strides = [1, 1]} : vector<2x16xf32> to vector<2x14xf32>
    %143 = vector.broadcast %2 : f32 to vector<2x14xf32>
    %144 = arith.mulf %142, %143 : vector<2x14xf32>
    %145 = arith.addf %141, %144 : vector<2x14xf32>
    %146 = vector.broadcast %24 : f32 to vector<2x14xf32>
    %147 = arith.addf %145, %146 : vector<2x14xf32>
    %cst = arith.constant 0.000000e+00 : f32
    %148 = vector.broadcast %cst : f32 to vector<2x14xf32>
    %149 = arith.maximumf %147, %148 : vector<2x14xf32>
    %150 = vector.extract_strided_slice %134 {offsets = [0, 0], sizes = [2, 14], strides = [1, 1]} : vector<2x16xf32> to vector<2x14xf32>
    %151 = vector.broadcast %3 : f32 to vector<2x14xf32>
    %152 = arith.mulf %150, %151 : vector<2x14xf32>
    %153 = vector.extract_strided_slice %134 {offsets = [0, 1], sizes = [2, 14], strides = [1, 1]} : vector<2x16xf32> to vector<2x14xf32>
    %154 = vector.broadcast %4 : f32 to vector<2x14xf32>
    %155 = arith.mulf %153, %154 : vector<2x14xf32>
    %156 = arith.addf %152, %155 : vector<2x14xf32>
    %157 = vector.extract_strided_slice %134 {offsets = [0, 2], sizes = [2, 14], strides = [1, 1]} : vector<2x16xf32> to vector<2x14xf32>
    %158 = vector.broadcast %5 : f32 to vector<2x14xf32>
    %159 = arith.mulf %157, %158 : vector<2x14xf32>
    %160 = arith.addf %156, %159 : vector<2x14xf32>
    %161 = vector.broadcast %25 : f32 to vector<2x14xf32>
    %162 = arith.addf %160, %161 : vector<2x14xf32>
    %cst_42 = arith.constant 0.000000e+00 : f32
    %163 = vector.broadcast %cst_42 : f32 to vector<2x14xf32>
    %164 = arith.maximumf %162, %163 : vector<2x14xf32>
    %165 = vector.extract_strided_slice %134 {offsets = [0, 0], sizes = [2, 14], strides = [1, 1]} : vector<2x16xf32> to vector<2x14xf32>
    %166 = vector.broadcast %6 : f32 to vector<2x14xf32>
    %167 = arith.mulf %165, %166 : vector<2x14xf32>
    %168 = vector.extract_strided_slice %134 {offsets = [0, 1], sizes = [2, 14], strides = [1, 1]} : vector<2x16xf32> to vector<2x14xf32>
    %169 = vector.broadcast %7 : f32 to vector<2x14xf32>
    %170 = arith.mulf %168, %169 : vector<2x14xf32>
    %171 = arith.addf %167, %170 : vector<2x14xf32>
    %172 = vector.extract_strided_slice %134 {offsets = [0, 2], sizes = [2, 14], strides = [1, 1]} : vector<2x16xf32> to vector<2x14xf32>
    %173 = vector.broadcast %8 : f32 to vector<2x14xf32>
    %174 = arith.mulf %172, %173 : vector<2x14xf32>
    %175 = arith.addf %171, %174 : vector<2x14xf32>
    %176 = vector.broadcast %26 : f32 to vector<2x14xf32>
    %177 = arith.addf %175, %176 : vector<2x14xf32>
    %cst_43 = arith.constant 0.000000e+00 : f32
    %178 = vector.broadcast %cst_43 : f32 to vector<2x14xf32>
    %179 = arith.maximumf %177, %178 : vector<2x14xf32>
    %180 = vector.extract_strided_slice %134 {offsets = [0, 0], sizes = [2, 14], strides = [1, 1]} : vector<2x16xf32> to vector<2x14xf32>
    %181 = vector.broadcast %9 : f32 to vector<2x14xf32>
    %182 = arith.mulf %180, %181 : vector<2x14xf32>
    %183 = vector.extract_strided_slice %134 {offsets = [0, 1], sizes = [2, 14], strides = [1, 1]} : vector<2x16xf32> to vector<2x14xf32>
    %184 = vector.broadcast %10 : f32 to vector<2x14xf32>
    %185 = arith.mulf %183, %184 : vector<2x14xf32>
    %186 = arith.addf %182, %185 : vector<2x14xf32>
    %187 = vector.extract_strided_slice %134 {offsets = [0, 2], sizes = [2, 14], strides = [1, 1]} : vector<2x16xf32> to vector<2x14xf32>
    %188 = vector.broadcast %11 : f32 to vector<2x14xf32>
    %189 = arith.mulf %187, %188 : vector<2x14xf32>
    %190 = arith.addf %186, %189 : vector<2x14xf32>
    %191 = vector.broadcast %27 : f32 to vector<2x14xf32>
    %192 = arith.addf %190, %191 : vector<2x14xf32>
    %cst_44 = arith.constant 0.000000e+00 : f32
    %193 = vector.broadcast %cst_44 : f32 to vector<2x14xf32>
    %194 = arith.maximumf %192, %193 : vector<2x14xf32>
    %195 = vector.extract_strided_slice %134 {offsets = [0, 0], sizes = [2, 14], strides = [1, 1]} : vector<2x16xf32> to vector<2x14xf32>
    %196 = vector.broadcast %12 : f32 to vector<2x14xf32>
    %197 = arith.mulf %195, %196 : vector<2x14xf32>
    %198 = vector.extract_strided_slice %134 {offsets = [0, 1], sizes = [2, 14], strides = [1, 1]} : vector<2x16xf32> to vector<2x14xf32>
    %199 = vector.broadcast %13 : f32 to vector<2x14xf32>
    %200 = arith.mulf %198, %199 : vector<2x14xf32>
    %201 = arith.addf %197, %200 : vector<2x14xf32>
    %202 = vector.extract_strided_slice %134 {offsets = [0, 2], sizes = [2, 14], strides = [1, 1]} : vector<2x16xf32> to vector<2x14xf32>
    %203 = vector.broadcast %14 : f32 to vector<2x14xf32>
    %204 = arith.mulf %202, %203 : vector<2x14xf32>
    %205 = arith.addf %201, %204 : vector<2x14xf32>
    %206 = vector.broadcast %28 : f32 to vector<2x14xf32>
    %207 = arith.addf %205, %206 : vector<2x14xf32>
    %cst_45 = arith.constant 0.000000e+00 : f32
    %208 = vector.broadcast %cst_45 : f32 to vector<2x14xf32>
    %209 = arith.maximumf %207, %208 : vector<2x14xf32>
    %210 = vector.extract_strided_slice %134 {offsets = [0, 0], sizes = [2, 14], strides = [1, 1]} : vector<2x16xf32> to vector<2x14xf32>
    %211 = vector.broadcast %15 : f32 to vector<2x14xf32>
    %212 = arith.mulf %210, %211 : vector<2x14xf32>
    %213 = vector.extract_strided_slice %134 {offsets = [0, 1], sizes = [2, 14], strides = [1, 1]} : vector<2x16xf32> to vector<2x14xf32>
    %214 = vector.broadcast %16 : f32 to vector<2x14xf32>
    %215 = arith.mulf %213, %214 : vector<2x14xf32>
    %216 = arith.addf %212, %215 : vector<2x14xf32>
    %217 = vector.extract_strided_slice %134 {offsets = [0, 2], sizes = [2, 14], strides = [1, 1]} : vector<2x16xf32> to vector<2x14xf32>
    %218 = vector.broadcast %17 : f32 to vector<2x14xf32>
    %219 = arith.mulf %217, %218 : vector<2x14xf32>
    %220 = arith.addf %216, %219 : vector<2x14xf32>
    %221 = vector.broadcast %29 : f32 to vector<2x14xf32>
    %222 = arith.addf %220, %221 : vector<2x14xf32>
    %cst_46 = arith.constant 0.000000e+00 : f32
    %223 = vector.broadcast %cst_46 : f32 to vector<2x14xf32>
    %224 = arith.maximumf %222, %223 : vector<2x14xf32>
    %225 = vector.extract_strided_slice %134 {offsets = [0, 0], sizes = [2, 14], strides = [1, 1]} : vector<2x16xf32> to vector<2x14xf32>
    %226 = vector.broadcast %18 : f32 to vector<2x14xf32>
    %227 = arith.mulf %225, %226 : vector<2x14xf32>
    %228 = vector.extract_strided_slice %134 {offsets = [0, 1], sizes = [2, 14], strides = [1, 1]} : vector<2x16xf32> to vector<2x14xf32>
    %229 = vector.broadcast %19 : f32 to vector<2x14xf32>
    %230 = arith.mulf %228, %229 : vector<2x14xf32>
    %231 = arith.addf %227, %230 : vector<2x14xf32>
    %232 = vector.extract_strided_slice %134 {offsets = [0, 2], sizes = [2, 14], strides = [1, 1]} : vector<2x16xf32> to vector<2x14xf32>
    %233 = vector.broadcast %20 : f32 to vector<2x14xf32>
    %234 = arith.mulf %232, %233 : vector<2x14xf32>
    %235 = arith.addf %231, %234 : vector<2x14xf32>
    %236 = vector.broadcast %30 : f32 to vector<2x14xf32>
    %237 = arith.addf %235, %236 : vector<2x14xf32>
    %cst_47 = arith.constant 0.000000e+00 : f32
    %238 = vector.broadcast %cst_47 : f32 to vector<2x14xf32>
    %239 = arith.maximumf %237, %238 : vector<2x14xf32>
    %240 = vector.extract_strided_slice %134 {offsets = [0, 0], sizes = [2, 14], strides = [1, 1]} : vector<2x16xf32> to vector<2x14xf32>
    %241 = vector.broadcast %21 : f32 to vector<2x14xf32>
    %242 = arith.mulf %240, %241 : vector<2x14xf32>
    %243 = vector.extract_strided_slice %134 {offsets = [0, 1], sizes = [2, 14], strides = [1, 1]} : vector<2x16xf32> to vector<2x14xf32>
    %244 = vector.broadcast %22 : f32 to vector<2x14xf32>
    %245 = arith.mulf %243, %244 : vector<2x14xf32>
    %246 = arith.addf %242, %245 : vector<2x14xf32>
    %247 = vector.extract_strided_slice %134 {offsets = [0, 2], sizes = [2, 14], strides = [1, 1]} : vector<2x16xf32> to vector<2x14xf32>
    %248 = vector.broadcast %23 : f32 to vector<2x14xf32>
    %249 = arith.mulf %247, %248 : vector<2x14xf32>
    %250 = arith.addf %246, %249 : vector<2x14xf32>
    %251 = vector.broadcast %31 : f32 to vector<2x14xf32>
    %252 = arith.addf %250, %251 : vector<2x14xf32>
    %cst_48 = arith.constant 0.000000e+00 : f32
    %253 = vector.broadcast %cst_48 : f32 to vector<2x14xf32>
    %254 = arith.maximumf %252, %253 : vector<2x14xf32>
    %255 = vector.extract_strided_slice %149 {offsets = [0, 0], sizes = [2, 12], strides = [1, 1]} : vector<2x14xf32> to vector<2x12xf32>
    %256 = vector.broadcast %32 : f32 to vector<2x12xf32>
    %257 = arith.mulf %255, %256 : vector<2x12xf32>
    %258 = vector.extract_strided_slice %149 {offsets = [0, 1], sizes = [2, 12], strides = [1, 1]} : vector<2x14xf32> to vector<2x12xf32>
    %259 = vector.broadcast %33 : f32 to vector<2x12xf32>
    %260 = arith.mulf %258, %259 : vector<2x12xf32>
    %261 = arith.addf %257, %260 : vector<2x12xf32>
    %262 = vector.extract_strided_slice %149 {offsets = [0, 2], sizes = [2, 12], strides = [1, 1]} : vector<2x14xf32> to vector<2x12xf32>
    %263 = vector.broadcast %34 : f32 to vector<2x12xf32>
    %264 = arith.mulf %262, %263 : vector<2x12xf32>
    %265 = arith.addf %261, %264 : vector<2x12xf32>
    %266 = vector.extract_strided_slice %164 {offsets = [0, 0], sizes = [2, 12], strides = [1, 1]} : vector<2x14xf32> to vector<2x12xf32>
    %267 = vector.broadcast %35 : f32 to vector<2x12xf32>
    %268 = arith.mulf %266, %267 : vector<2x12xf32>
    %269 = arith.addf %265, %268 : vector<2x12xf32>
    %270 = vector.extract_strided_slice %164 {offsets = [0, 1], sizes = [2, 12], strides = [1, 1]} : vector<2x14xf32> to vector<2x12xf32>
    %271 = vector.broadcast %36 : f32 to vector<2x12xf32>
    %272 = arith.mulf %270, %271 : vector<2x12xf32>
    %273 = arith.addf %269, %272 : vector<2x12xf32>
    %274 = vector.extract_strided_slice %164 {offsets = [0, 2], sizes = [2, 12], strides = [1, 1]} : vector<2x14xf32> to vector<2x12xf32>
    %275 = vector.broadcast %37 : f32 to vector<2x12xf32>
    %276 = arith.mulf %274, %275 : vector<2x12xf32>
    %277 = arith.addf %273, %276 : vector<2x12xf32>
    %278 = vector.extract_strided_slice %179 {offsets = [0, 0], sizes = [2, 12], strides = [1, 1]} : vector<2x14xf32> to vector<2x12xf32>
    %279 = vector.broadcast %38 : f32 to vector<2x12xf32>
    %280 = arith.mulf %278, %279 : vector<2x12xf32>
    %281 = arith.addf %277, %280 : vector<2x12xf32>
    %282 = vector.extract_strided_slice %179 {offsets = [0, 1], sizes = [2, 12], strides = [1, 1]} : vector<2x14xf32> to vector<2x12xf32>
    %283 = vector.broadcast %39 : f32 to vector<2x12xf32>
    %284 = arith.mulf %282, %283 : vector<2x12xf32>
    %285 = arith.addf %281, %284 : vector<2x12xf32>
    %286 = vector.extract_strided_slice %179 {offsets = [0, 2], sizes = [2, 12], strides = [1, 1]} : vector<2x14xf32> to vector<2x12xf32>
    %287 = vector.broadcast %40 : f32 to vector<2x12xf32>
    %288 = arith.mulf %286, %287 : vector<2x12xf32>
    %289 = arith.addf %285, %288 : vector<2x12xf32>
    %290 = vector.extract_strided_slice %194 {offsets = [0, 0], sizes = [2, 12], strides = [1, 1]} : vector<2x14xf32> to vector<2x12xf32>
    %291 = vector.broadcast %41 : f32 to vector<2x12xf32>
    %292 = arith.mulf %290, %291 : vector<2x12xf32>
    %293 = arith.addf %289, %292 : vector<2x12xf32>
    %294 = vector.extract_strided_slice %194 {offsets = [0, 1], sizes = [2, 12], strides = [1, 1]} : vector<2x14xf32> to vector<2x12xf32>
    %295 = vector.broadcast %42 : f32 to vector<2x12xf32>
    %296 = arith.mulf %294, %295 : vector<2x12xf32>
    %297 = arith.addf %293, %296 : vector<2x12xf32>
    %298 = vector.extract_strided_slice %194 {offsets = [0, 2], sizes = [2, 12], strides = [1, 1]} : vector<2x14xf32> to vector<2x12xf32>
    %299 = vector.broadcast %43 : f32 to vector<2x12xf32>
    %300 = arith.mulf %298, %299 : vector<2x12xf32>
    %301 = arith.addf %297, %300 : vector<2x12xf32>
    %302 = vector.extract_strided_slice %209 {offsets = [0, 0], sizes = [2, 12], strides = [1, 1]} : vector<2x14xf32> to vector<2x12xf32>
    %303 = vector.broadcast %44 : f32 to vector<2x12xf32>
    %304 = arith.mulf %302, %303 : vector<2x12xf32>
    %305 = arith.addf %301, %304 : vector<2x12xf32>
    %306 = vector.extract_strided_slice %209 {offsets = [0, 1], sizes = [2, 12], strides = [1, 1]} : vector<2x14xf32> to vector<2x12xf32>
    %307 = vector.broadcast %45 : f32 to vector<2x12xf32>
    %308 = arith.mulf %306, %307 : vector<2x12xf32>
    %309 = arith.addf %305, %308 : vector<2x12xf32>
    %310 = vector.extract_strided_slice %209 {offsets = [0, 2], sizes = [2, 12], strides = [1, 1]} : vector<2x14xf32> to vector<2x12xf32>
    %311 = vector.broadcast %46 : f32 to vector<2x12xf32>
    %312 = arith.mulf %310, %311 : vector<2x12xf32>
    %313 = arith.addf %309, %312 : vector<2x12xf32>
    %314 = vector.extract_strided_slice %224 {offsets = [0, 0], sizes = [2, 12], strides = [1, 1]} : vector<2x14xf32> to vector<2x12xf32>
    %315 = vector.broadcast %47 : f32 to vector<2x12xf32>
    %316 = arith.mulf %314, %315 : vector<2x12xf32>
    %317 = arith.addf %313, %316 : vector<2x12xf32>
    %318 = vector.extract_strided_slice %224 {offsets = [0, 1], sizes = [2, 12], strides = [1, 1]} : vector<2x14xf32> to vector<2x12xf32>
    %319 = vector.broadcast %48 : f32 to vector<2x12xf32>
    %320 = arith.mulf %318, %319 : vector<2x12xf32>
    %321 = arith.addf %317, %320 : vector<2x12xf32>
    %322 = vector.extract_strided_slice %224 {offsets = [0, 2], sizes = [2, 12], strides = [1, 1]} : vector<2x14xf32> to vector<2x12xf32>
    %323 = vector.broadcast %49 : f32 to vector<2x12xf32>
    %324 = arith.mulf %322, %323 : vector<2x12xf32>
    %325 = arith.addf %321, %324 : vector<2x12xf32>
    %326 = vector.extract_strided_slice %239 {offsets = [0, 0], sizes = [2, 12], strides = [1, 1]} : vector<2x14xf32> to vector<2x12xf32>
    %327 = vector.broadcast %50 : f32 to vector<2x12xf32>
    %328 = arith.mulf %326, %327 : vector<2x12xf32>
    %329 = arith.addf %325, %328 : vector<2x12xf32>
    %330 = vector.extract_strided_slice %239 {offsets = [0, 1], sizes = [2, 12], strides = [1, 1]} : vector<2x14xf32> to vector<2x12xf32>
    %331 = vector.broadcast %51 : f32 to vector<2x12xf32>
    %332 = arith.mulf %330, %331 : vector<2x12xf32>
    %333 = arith.addf %329, %332 : vector<2x12xf32>
    %334 = vector.extract_strided_slice %239 {offsets = [0, 2], sizes = [2, 12], strides = [1, 1]} : vector<2x14xf32> to vector<2x12xf32>
    %335 = vector.broadcast %52 : f32 to vector<2x12xf32>
    %336 = arith.mulf %334, %335 : vector<2x12xf32>
    %337 = arith.addf %333, %336 : vector<2x12xf32>
    %338 = vector.extract_strided_slice %254 {offsets = [0, 0], sizes = [2, 12], strides = [1, 1]} : vector<2x14xf32> to vector<2x12xf32>
    %339 = vector.broadcast %53 : f32 to vector<2x12xf32>
    %340 = arith.mulf %338, %339 : vector<2x12xf32>
    %341 = arith.addf %337, %340 : vector<2x12xf32>
    %342 = vector.extract_strided_slice %254 {offsets = [0, 1], sizes = [2, 12], strides = [1, 1]} : vector<2x14xf32> to vector<2x12xf32>
    %343 = vector.broadcast %54 : f32 to vector<2x12xf32>
    %344 = arith.mulf %342, %343 : vector<2x12xf32>
    %345 = arith.addf %341, %344 : vector<2x12xf32>
    %346 = vector.extract_strided_slice %254 {offsets = [0, 2], sizes = [2, 12], strides = [1, 1]} : vector<2x14xf32> to vector<2x12xf32>
    %347 = vector.broadcast %55 : f32 to vector<2x12xf32>
    %348 = arith.mulf %346, %347 : vector<2x12xf32>
    %349 = arith.addf %345, %348 : vector<2x12xf32>
    %350 = vector.broadcast %128 : f32 to vector<2x12xf32>
    %351 = arith.addf %349, %350 : vector<2x12xf32>
    %cst_49 = arith.constant 0.000000e+00 : f32
    %352 = vector.broadcast %cst_49 : f32 to vector<2x12xf32>
    %353 = arith.maximumf %351, %352 : vector<2x12xf32>
    %354 = vector.extract_strided_slice %149 {offsets = [0, 0], sizes = [2, 12], strides = [1, 1]} : vector<2x14xf32> to vector<2x12xf32>
    %355 = vector.broadcast %56 : f32 to vector<2x12xf32>
    %356 = arith.mulf %354, %355 : vector<2x12xf32>
    %357 = vector.extract_strided_slice %149 {offsets = [0, 1], sizes = [2, 12], strides = [1, 1]} : vector<2x14xf32> to vector<2x12xf32>
    %358 = vector.broadcast %57 : f32 to vector<2x12xf32>
    %359 = arith.mulf %357, %358 : vector<2x12xf32>
    %360 = arith.addf %356, %359 : vector<2x12xf32>
    %361 = vector.extract_strided_slice %149 {offsets = [0, 2], sizes = [2, 12], strides = [1, 1]} : vector<2x14xf32> to vector<2x12xf32>
    %362 = vector.broadcast %58 : f32 to vector<2x12xf32>
    %363 = arith.mulf %361, %362 : vector<2x12xf32>
    %364 = arith.addf %360, %363 : vector<2x12xf32>
    %365 = vector.extract_strided_slice %164 {offsets = [0, 0], sizes = [2, 12], strides = [1, 1]} : vector<2x14xf32> to vector<2x12xf32>
    %366 = vector.broadcast %59 : f32 to vector<2x12xf32>
    %367 = arith.mulf %365, %366 : vector<2x12xf32>
    %368 = arith.addf %364, %367 : vector<2x12xf32>
    %369 = vector.extract_strided_slice %164 {offsets = [0, 1], sizes = [2, 12], strides = [1, 1]} : vector<2x14xf32> to vector<2x12xf32>
    %370 = vector.broadcast %60 : f32 to vector<2x12xf32>
    %371 = arith.mulf %369, %370 : vector<2x12xf32>
    %372 = arith.addf %368, %371 : vector<2x12xf32>
    %373 = vector.extract_strided_slice %164 {offsets = [0, 2], sizes = [2, 12], strides = [1, 1]} : vector<2x14xf32> to vector<2x12xf32>
    %374 = vector.broadcast %61 : f32 to vector<2x12xf32>
    %375 = arith.mulf %373, %374 : vector<2x12xf32>
    %376 = arith.addf %372, %375 : vector<2x12xf32>
    %377 = vector.extract_strided_slice %179 {offsets = [0, 0], sizes = [2, 12], strides = [1, 1]} : vector<2x14xf32> to vector<2x12xf32>
    %378 = vector.broadcast %62 : f32 to vector<2x12xf32>
    %379 = arith.mulf %377, %378 : vector<2x12xf32>
    %380 = arith.addf %376, %379 : vector<2x12xf32>
    %381 = vector.extract_strided_slice %179 {offsets = [0, 1], sizes = [2, 12], strides = [1, 1]} : vector<2x14xf32> to vector<2x12xf32>
    %382 = vector.broadcast %63 : f32 to vector<2x12xf32>
    %383 = arith.mulf %381, %382 : vector<2x12xf32>
    %384 = arith.addf %380, %383 : vector<2x12xf32>
    %385 = vector.extract_strided_slice %179 {offsets = [0, 2], sizes = [2, 12], strides = [1, 1]} : vector<2x14xf32> to vector<2x12xf32>
    %386 = vector.broadcast %64 : f32 to vector<2x12xf32>
    %387 = arith.mulf %385, %386 : vector<2x12xf32>
    %388 = arith.addf %384, %387 : vector<2x12xf32>
    %389 = vector.extract_strided_slice %194 {offsets = [0, 0], sizes = [2, 12], strides = [1, 1]} : vector<2x14xf32> to vector<2x12xf32>
    %390 = vector.broadcast %65 : f32 to vector<2x12xf32>
    %391 = arith.mulf %389, %390 : vector<2x12xf32>
    %392 = arith.addf %388, %391 : vector<2x12xf32>
    %393 = vector.extract_strided_slice %194 {offsets = [0, 1], sizes = [2, 12], strides = [1, 1]} : vector<2x14xf32> to vector<2x12xf32>
    %394 = vector.broadcast %66 : f32 to vector<2x12xf32>
    %395 = arith.mulf %393, %394 : vector<2x12xf32>
    %396 = arith.addf %392, %395 : vector<2x12xf32>
    %397 = vector.extract_strided_slice %194 {offsets = [0, 2], sizes = [2, 12], strides = [1, 1]} : vector<2x14xf32> to vector<2x12xf32>
    %398 = vector.broadcast %67 : f32 to vector<2x12xf32>
    %399 = arith.mulf %397, %398 : vector<2x12xf32>
    %400 = arith.addf %396, %399 : vector<2x12xf32>
    %401 = vector.extract_strided_slice %209 {offsets = [0, 0], sizes = [2, 12], strides = [1, 1]} : vector<2x14xf32> to vector<2x12xf32>
    %402 = vector.broadcast %68 : f32 to vector<2x12xf32>
    %403 = arith.mulf %401, %402 : vector<2x12xf32>
    %404 = arith.addf %400, %403 : vector<2x12xf32>
    %405 = vector.extract_strided_slice %209 {offsets = [0, 1], sizes = [2, 12], strides = [1, 1]} : vector<2x14xf32> to vector<2x12xf32>
    %406 = vector.broadcast %69 : f32 to vector<2x12xf32>
    %407 = arith.mulf %405, %406 : vector<2x12xf32>
    %408 = arith.addf %404, %407 : vector<2x12xf32>
    %409 = vector.extract_strided_slice %209 {offsets = [0, 2], sizes = [2, 12], strides = [1, 1]} : vector<2x14xf32> to vector<2x12xf32>
    %410 = vector.broadcast %70 : f32 to vector<2x12xf32>
    %411 = arith.mulf %409, %410 : vector<2x12xf32>
    %412 = arith.addf %408, %411 : vector<2x12xf32>
    %413 = vector.extract_strided_slice %224 {offsets = [0, 0], sizes = [2, 12], strides = [1, 1]} : vector<2x14xf32> to vector<2x12xf32>
    %414 = vector.broadcast %71 : f32 to vector<2x12xf32>
    %415 = arith.mulf %413, %414 : vector<2x12xf32>
    %416 = arith.addf %412, %415 : vector<2x12xf32>
    %417 = vector.extract_strided_slice %224 {offsets = [0, 1], sizes = [2, 12], strides = [1, 1]} : vector<2x14xf32> to vector<2x12xf32>
    %418 = vector.broadcast %72 : f32 to vector<2x12xf32>
    %419 = arith.mulf %417, %418 : vector<2x12xf32>
    %420 = arith.addf %416, %419 : vector<2x12xf32>
    %421 = vector.extract_strided_slice %224 {offsets = [0, 2], sizes = [2, 12], strides = [1, 1]} : vector<2x14xf32> to vector<2x12xf32>
    %422 = vector.broadcast %73 : f32 to vector<2x12xf32>
    %423 = arith.mulf %421, %422 : vector<2x12xf32>
    %424 = arith.addf %420, %423 : vector<2x12xf32>
    %425 = vector.extract_strided_slice %239 {offsets = [0, 0], sizes = [2, 12], strides = [1, 1]} : vector<2x14xf32> to vector<2x12xf32>
    %426 = vector.broadcast %74 : f32 to vector<2x12xf32>
    %427 = arith.mulf %425, %426 : vector<2x12xf32>
    %428 = arith.addf %424, %427 : vector<2x12xf32>
    %429 = vector.extract_strided_slice %239 {offsets = [0, 1], sizes = [2, 12], strides = [1, 1]} : vector<2x14xf32> to vector<2x12xf32>
    %430 = vector.broadcast %75 : f32 to vector<2x12xf32>
    %431 = arith.mulf %429, %430 : vector<2x12xf32>
    %432 = arith.addf %428, %431 : vector<2x12xf32>
    %433 = vector.extract_strided_slice %239 {offsets = [0, 2], sizes = [2, 12], strides = [1, 1]} : vector<2x14xf32> to vector<2x12xf32>
    %434 = vector.broadcast %76 : f32 to vector<2x12xf32>
    %435 = arith.mulf %433, %434 : vector<2x12xf32>
    %436 = arith.addf %432, %435 : vector<2x12xf32>
    %437 = vector.extract_strided_slice %254 {offsets = [0, 0], sizes = [2, 12], strides = [1, 1]} : vector<2x14xf32> to vector<2x12xf32>
    %438 = vector.broadcast %77 : f32 to vector<2x12xf32>
    %439 = arith.mulf %437, %438 : vector<2x12xf32>
    %440 = arith.addf %436, %439 : vector<2x12xf32>
    %441 = vector.extract_strided_slice %254 {offsets = [0, 1], sizes = [2, 12], strides = [1, 1]} : vector<2x14xf32> to vector<2x12xf32>
    %442 = vector.broadcast %78 : f32 to vector<2x12xf32>
    %443 = arith.mulf %441, %442 : vector<2x12xf32>
    %444 = arith.addf %440, %443 : vector<2x12xf32>
    %445 = vector.extract_strided_slice %254 {offsets = [0, 2], sizes = [2, 12], strides = [1, 1]} : vector<2x14xf32> to vector<2x12xf32>
    %446 = vector.broadcast %79 : f32 to vector<2x12xf32>
    %447 = arith.mulf %445, %446 : vector<2x12xf32>
    %448 = arith.addf %444, %447 : vector<2x12xf32>
    %449 = vector.broadcast %129 : f32 to vector<2x12xf32>
    %450 = arith.addf %448, %449 : vector<2x12xf32>
    %cst_50 = arith.constant 0.000000e+00 : f32
    %451 = vector.broadcast %cst_50 : f32 to vector<2x12xf32>
    %452 = arith.maximumf %450, %451 : vector<2x12xf32>
    %453 = arith.addf %353, %452 : vector<2x12xf32>
    %454 = vector.extract_strided_slice %149 {offsets = [0, 0], sizes = [2, 12], strides = [1, 1]} : vector<2x14xf32> to vector<2x12xf32>
    %455 = vector.broadcast %80 : f32 to vector<2x12xf32>
    %456 = arith.mulf %454, %455 : vector<2x12xf32>
    %457 = vector.extract_strided_slice %149 {offsets = [0, 1], sizes = [2, 12], strides = [1, 1]} : vector<2x14xf32> to vector<2x12xf32>
    %458 = vector.broadcast %81 : f32 to vector<2x12xf32>
    %459 = arith.mulf %457, %458 : vector<2x12xf32>
    %460 = arith.addf %456, %459 : vector<2x12xf32>
    %461 = vector.extract_strided_slice %149 {offsets = [0, 2], sizes = [2, 12], strides = [1, 1]} : vector<2x14xf32> to vector<2x12xf32>
    %462 = vector.broadcast %82 : f32 to vector<2x12xf32>
    %463 = arith.mulf %461, %462 : vector<2x12xf32>
    %464 = arith.addf %460, %463 : vector<2x12xf32>
    %465 = vector.extract_strided_slice %164 {offsets = [0, 0], sizes = [2, 12], strides = [1, 1]} : vector<2x14xf32> to vector<2x12xf32>
    %466 = vector.broadcast %83 : f32 to vector<2x12xf32>
    %467 = arith.mulf %465, %466 : vector<2x12xf32>
    %468 = arith.addf %464, %467 : vector<2x12xf32>
    %469 = vector.extract_strided_slice %164 {offsets = [0, 1], sizes = [2, 12], strides = [1, 1]} : vector<2x14xf32> to vector<2x12xf32>
    %470 = vector.broadcast %84 : f32 to vector<2x12xf32>
    %471 = arith.mulf %469, %470 : vector<2x12xf32>
    %472 = arith.addf %468, %471 : vector<2x12xf32>
    %473 = vector.extract_strided_slice %164 {offsets = [0, 2], sizes = [2, 12], strides = [1, 1]} : vector<2x14xf32> to vector<2x12xf32>
    %474 = vector.broadcast %85 : f32 to vector<2x12xf32>
    %475 = arith.mulf %473, %474 : vector<2x12xf32>
    %476 = arith.addf %472, %475 : vector<2x12xf32>
    %477 = vector.extract_strided_slice %179 {offsets = [0, 0], sizes = [2, 12], strides = [1, 1]} : vector<2x14xf32> to vector<2x12xf32>
    %478 = vector.broadcast %86 : f32 to vector<2x12xf32>
    %479 = arith.mulf %477, %478 : vector<2x12xf32>
    %480 = arith.addf %476, %479 : vector<2x12xf32>
    %481 = vector.extract_strided_slice %179 {offsets = [0, 1], sizes = [2, 12], strides = [1, 1]} : vector<2x14xf32> to vector<2x12xf32>
    %482 = vector.broadcast %87 : f32 to vector<2x12xf32>
    %483 = arith.mulf %481, %482 : vector<2x12xf32>
    %484 = arith.addf %480, %483 : vector<2x12xf32>
    %485 = vector.extract_strided_slice %179 {offsets = [0, 2], sizes = [2, 12], strides = [1, 1]} : vector<2x14xf32> to vector<2x12xf32>
    %486 = vector.broadcast %88 : f32 to vector<2x12xf32>
    %487 = arith.mulf %485, %486 : vector<2x12xf32>
    %488 = arith.addf %484, %487 : vector<2x12xf32>
    %489 = vector.extract_strided_slice %194 {offsets = [0, 0], sizes = [2, 12], strides = [1, 1]} : vector<2x14xf32> to vector<2x12xf32>
    %490 = vector.broadcast %89 : f32 to vector<2x12xf32>
    %491 = arith.mulf %489, %490 : vector<2x12xf32>
    %492 = arith.addf %488, %491 : vector<2x12xf32>
    %493 = vector.extract_strided_slice %194 {offsets = [0, 1], sizes = [2, 12], strides = [1, 1]} : vector<2x14xf32> to vector<2x12xf32>
    %494 = vector.broadcast %90 : f32 to vector<2x12xf32>
    %495 = arith.mulf %493, %494 : vector<2x12xf32>
    %496 = arith.addf %492, %495 : vector<2x12xf32>
    %497 = vector.extract_strided_slice %194 {offsets = [0, 2], sizes = [2, 12], strides = [1, 1]} : vector<2x14xf32> to vector<2x12xf32>
    %498 = vector.broadcast %91 : f32 to vector<2x12xf32>
    %499 = arith.mulf %497, %498 : vector<2x12xf32>
    %500 = arith.addf %496, %499 : vector<2x12xf32>
    %501 = vector.extract_strided_slice %209 {offsets = [0, 0], sizes = [2, 12], strides = [1, 1]} : vector<2x14xf32> to vector<2x12xf32>
    %502 = vector.broadcast %92 : f32 to vector<2x12xf32>
    %503 = arith.mulf %501, %502 : vector<2x12xf32>
    %504 = arith.addf %500, %503 : vector<2x12xf32>
    %505 = vector.extract_strided_slice %209 {offsets = [0, 1], sizes = [2, 12], strides = [1, 1]} : vector<2x14xf32> to vector<2x12xf32>
    %506 = vector.broadcast %93 : f32 to vector<2x12xf32>
    %507 = arith.mulf %505, %506 : vector<2x12xf32>
    %508 = arith.addf %504, %507 : vector<2x12xf32>
    %509 = vector.extract_strided_slice %209 {offsets = [0, 2], sizes = [2, 12], strides = [1, 1]} : vector<2x14xf32> to vector<2x12xf32>
    %510 = vector.broadcast %94 : f32 to vector<2x12xf32>
    %511 = arith.mulf %509, %510 : vector<2x12xf32>
    %512 = arith.addf %508, %511 : vector<2x12xf32>
    %513 = vector.extract_strided_slice %224 {offsets = [0, 0], sizes = [2, 12], strides = [1, 1]} : vector<2x14xf32> to vector<2x12xf32>
    %514 = vector.broadcast %95 : f32 to vector<2x12xf32>
    %515 = arith.mulf %513, %514 : vector<2x12xf32>
    %516 = arith.addf %512, %515 : vector<2x12xf32>
    %517 = vector.extract_strided_slice %224 {offsets = [0, 1], sizes = [2, 12], strides = [1, 1]} : vector<2x14xf32> to vector<2x12xf32>
    %518 = vector.broadcast %96 : f32 to vector<2x12xf32>
    %519 = arith.mulf %517, %518 : vector<2x12xf32>
    %520 = arith.addf %516, %519 : vector<2x12xf32>
    %521 = vector.extract_strided_slice %224 {offsets = [0, 2], sizes = [2, 12], strides = [1, 1]} : vector<2x14xf32> to vector<2x12xf32>
    %522 = vector.broadcast %97 : f32 to vector<2x12xf32>
    %523 = arith.mulf %521, %522 : vector<2x12xf32>
    %524 = arith.addf %520, %523 : vector<2x12xf32>
    %525 = vector.extract_strided_slice %239 {offsets = [0, 0], sizes = [2, 12], strides = [1, 1]} : vector<2x14xf32> to vector<2x12xf32>
    %526 = vector.broadcast %98 : f32 to vector<2x12xf32>
    %527 = arith.mulf %525, %526 : vector<2x12xf32>
    %528 = arith.addf %524, %527 : vector<2x12xf32>
    %529 = vector.extract_strided_slice %239 {offsets = [0, 1], sizes = [2, 12], strides = [1, 1]} : vector<2x14xf32> to vector<2x12xf32>
    %530 = vector.broadcast %99 : f32 to vector<2x12xf32>
    %531 = arith.mulf %529, %530 : vector<2x12xf32>
    %532 = arith.addf %528, %531 : vector<2x12xf32>
    %533 = vector.extract_strided_slice %239 {offsets = [0, 2], sizes = [2, 12], strides = [1, 1]} : vector<2x14xf32> to vector<2x12xf32>
    %534 = vector.broadcast %100 : f32 to vector<2x12xf32>
    %535 = arith.mulf %533, %534 : vector<2x12xf32>
    %536 = arith.addf %532, %535 : vector<2x12xf32>
    %537 = vector.extract_strided_slice %254 {offsets = [0, 0], sizes = [2, 12], strides = [1, 1]} : vector<2x14xf32> to vector<2x12xf32>
    %538 = vector.broadcast %101 : f32 to vector<2x12xf32>
    %539 = arith.mulf %537, %538 : vector<2x12xf32>
    %540 = arith.addf %536, %539 : vector<2x12xf32>
    %541 = vector.extract_strided_slice %254 {offsets = [0, 1], sizes = [2, 12], strides = [1, 1]} : vector<2x14xf32> to vector<2x12xf32>
    %542 = vector.broadcast %102 : f32 to vector<2x12xf32>
    %543 = arith.mulf %541, %542 : vector<2x12xf32>
    %544 = arith.addf %540, %543 : vector<2x12xf32>
    %545 = vector.extract_strided_slice %254 {offsets = [0, 2], sizes = [2, 12], strides = [1, 1]} : vector<2x14xf32> to vector<2x12xf32>
    %546 = vector.broadcast %103 : f32 to vector<2x12xf32>
    %547 = arith.mulf %545, %546 : vector<2x12xf32>
    %548 = arith.addf %544, %547 : vector<2x12xf32>
    %549 = vector.broadcast %130 : f32 to vector<2x12xf32>
    %550 = arith.addf %548, %549 : vector<2x12xf32>
    %cst_51 = arith.constant 0.000000e+00 : f32
    %551 = vector.broadcast %cst_51 : f32 to vector<2x12xf32>
    %552 = arith.maximumf %550, %551 : vector<2x12xf32>
    %553 = arith.addf %453, %552 : vector<2x12xf32>
    %554 = vector.extract_strided_slice %149 {offsets = [0, 0], sizes = [2, 12], strides = [1, 1]} : vector<2x14xf32> to vector<2x12xf32>
    %555 = vector.broadcast %104 : f32 to vector<2x12xf32>
    %556 = arith.mulf %554, %555 : vector<2x12xf32>
    %557 = vector.extract_strided_slice %149 {offsets = [0, 1], sizes = [2, 12], strides = [1, 1]} : vector<2x14xf32> to vector<2x12xf32>
    %558 = vector.broadcast %105 : f32 to vector<2x12xf32>
    %559 = arith.mulf %557, %558 : vector<2x12xf32>
    %560 = arith.addf %556, %559 : vector<2x12xf32>
    %561 = vector.extract_strided_slice %149 {offsets = [0, 2], sizes = [2, 12], strides = [1, 1]} : vector<2x14xf32> to vector<2x12xf32>
    %562 = vector.broadcast %106 : f32 to vector<2x12xf32>
    %563 = arith.mulf %561, %562 : vector<2x12xf32>
    %564 = arith.addf %560, %563 : vector<2x12xf32>
    %565 = vector.extract_strided_slice %164 {offsets = [0, 0], sizes = [2, 12], strides = [1, 1]} : vector<2x14xf32> to vector<2x12xf32>
    %566 = vector.broadcast %107 : f32 to vector<2x12xf32>
    %567 = arith.mulf %565, %566 : vector<2x12xf32>
    %568 = arith.addf %564, %567 : vector<2x12xf32>
    %569 = vector.extract_strided_slice %164 {offsets = [0, 1], sizes = [2, 12], strides = [1, 1]} : vector<2x14xf32> to vector<2x12xf32>
    %570 = vector.broadcast %108 : f32 to vector<2x12xf32>
    %571 = arith.mulf %569, %570 : vector<2x12xf32>
    %572 = arith.addf %568, %571 : vector<2x12xf32>
    %573 = vector.extract_strided_slice %164 {offsets = [0, 2], sizes = [2, 12], strides = [1, 1]} : vector<2x14xf32> to vector<2x12xf32>
    %574 = vector.broadcast %109 : f32 to vector<2x12xf32>
    %575 = arith.mulf %573, %574 : vector<2x12xf32>
    %576 = arith.addf %572, %575 : vector<2x12xf32>
    %577 = vector.extract_strided_slice %179 {offsets = [0, 0], sizes = [2, 12], strides = [1, 1]} : vector<2x14xf32> to vector<2x12xf32>
    %578 = vector.broadcast %110 : f32 to vector<2x12xf32>
    %579 = arith.mulf %577, %578 : vector<2x12xf32>
    %580 = arith.addf %576, %579 : vector<2x12xf32>
    %581 = vector.extract_strided_slice %179 {offsets = [0, 1], sizes = [2, 12], strides = [1, 1]} : vector<2x14xf32> to vector<2x12xf32>
    %582 = vector.broadcast %111 : f32 to vector<2x12xf32>
    %583 = arith.mulf %581, %582 : vector<2x12xf32>
    %584 = arith.addf %580, %583 : vector<2x12xf32>
    %585 = vector.extract_strided_slice %179 {offsets = [0, 2], sizes = [2, 12], strides = [1, 1]} : vector<2x14xf32> to vector<2x12xf32>
    %586 = vector.broadcast %112 : f32 to vector<2x12xf32>
    %587 = arith.mulf %585, %586 : vector<2x12xf32>
    %588 = arith.addf %584, %587 : vector<2x12xf32>
    %589 = vector.extract_strided_slice %194 {offsets = [0, 0], sizes = [2, 12], strides = [1, 1]} : vector<2x14xf32> to vector<2x12xf32>
    %590 = vector.broadcast %113 : f32 to vector<2x12xf32>
    %591 = arith.mulf %589, %590 : vector<2x12xf32>
    %592 = arith.addf %588, %591 : vector<2x12xf32>
    %593 = vector.extract_strided_slice %194 {offsets = [0, 1], sizes = [2, 12], strides = [1, 1]} : vector<2x14xf32> to vector<2x12xf32>
    %594 = vector.broadcast %114 : f32 to vector<2x12xf32>
    %595 = arith.mulf %593, %594 : vector<2x12xf32>
    %596 = arith.addf %592, %595 : vector<2x12xf32>
    %597 = vector.extract_strided_slice %194 {offsets = [0, 2], sizes = [2, 12], strides = [1, 1]} : vector<2x14xf32> to vector<2x12xf32>
    %598 = vector.broadcast %115 : f32 to vector<2x12xf32>
    %599 = arith.mulf %597, %598 : vector<2x12xf32>
    %600 = arith.addf %596, %599 : vector<2x12xf32>
    %601 = vector.extract_strided_slice %209 {offsets = [0, 0], sizes = [2, 12], strides = [1, 1]} : vector<2x14xf32> to vector<2x12xf32>
    %602 = vector.broadcast %116 : f32 to vector<2x12xf32>
    %603 = arith.mulf %601, %602 : vector<2x12xf32>
    %604 = arith.addf %600, %603 : vector<2x12xf32>
    %605 = vector.extract_strided_slice %209 {offsets = [0, 1], sizes = [2, 12], strides = [1, 1]} : vector<2x14xf32> to vector<2x12xf32>
    %606 = vector.broadcast %117 : f32 to vector<2x12xf32>
    %607 = arith.mulf %605, %606 : vector<2x12xf32>
    %608 = arith.addf %604, %607 : vector<2x12xf32>
    %609 = vector.extract_strided_slice %209 {offsets = [0, 2], sizes = [2, 12], strides = [1, 1]} : vector<2x14xf32> to vector<2x12xf32>
    %610 = vector.broadcast %118 : f32 to vector<2x12xf32>
    %611 = arith.mulf %609, %610 : vector<2x12xf32>
    %612 = arith.addf %608, %611 : vector<2x12xf32>
    %613 = vector.extract_strided_slice %224 {offsets = [0, 0], sizes = [2, 12], strides = [1, 1]} : vector<2x14xf32> to vector<2x12xf32>
    %614 = vector.broadcast %119 : f32 to vector<2x12xf32>
    %615 = arith.mulf %613, %614 : vector<2x12xf32>
    %616 = arith.addf %612, %615 : vector<2x12xf32>
    %617 = vector.extract_strided_slice %224 {offsets = [0, 1], sizes = [2, 12], strides = [1, 1]} : vector<2x14xf32> to vector<2x12xf32>
    %618 = vector.broadcast %120 : f32 to vector<2x12xf32>
    %619 = arith.mulf %617, %618 : vector<2x12xf32>
    %620 = arith.addf %616, %619 : vector<2x12xf32>
    %621 = vector.extract_strided_slice %224 {offsets = [0, 2], sizes = [2, 12], strides = [1, 1]} : vector<2x14xf32> to vector<2x12xf32>
    %622 = vector.broadcast %121 : f32 to vector<2x12xf32>
    %623 = arith.mulf %621, %622 : vector<2x12xf32>
    %624 = arith.addf %620, %623 : vector<2x12xf32>
    %625 = vector.extract_strided_slice %239 {offsets = [0, 0], sizes = [2, 12], strides = [1, 1]} : vector<2x14xf32> to vector<2x12xf32>
    %626 = vector.broadcast %122 : f32 to vector<2x12xf32>
    %627 = arith.mulf %625, %626 : vector<2x12xf32>
    %628 = arith.addf %624, %627 : vector<2x12xf32>
    %629 = vector.extract_strided_slice %239 {offsets = [0, 1], sizes = [2, 12], strides = [1, 1]} : vector<2x14xf32> to vector<2x12xf32>
    %630 = vector.broadcast %123 : f32 to vector<2x12xf32>
    %631 = arith.mulf %629, %630 : vector<2x12xf32>
    %632 = arith.addf %628, %631 : vector<2x12xf32>
    %633 = vector.extract_strided_slice %239 {offsets = [0, 2], sizes = [2, 12], strides = [1, 1]} : vector<2x14xf32> to vector<2x12xf32>
    %634 = vector.broadcast %124 : f32 to vector<2x12xf32>
    %635 = arith.mulf %633, %634 : vector<2x12xf32>
    %636 = arith.addf %632, %635 : vector<2x12xf32>
    %637 = vector.extract_strided_slice %254 {offsets = [0, 0], sizes = [2, 12], strides = [1, 1]} : vector<2x14xf32> to vector<2x12xf32>
    %638 = vector.broadcast %125 : f32 to vector<2x12xf32>
    %639 = arith.mulf %637, %638 : vector<2x12xf32>
    %640 = arith.addf %636, %639 : vector<2x12xf32>
    %641 = vector.extract_strided_slice %254 {offsets = [0, 1], sizes = [2, 12], strides = [1, 1]} : vector<2x14xf32> to vector<2x12xf32>
    %642 = vector.broadcast %126 : f32 to vector<2x12xf32>
    %643 = arith.mulf %641, %642 : vector<2x12xf32>
    %644 = arith.addf %640, %643 : vector<2x12xf32>
    %645 = vector.extract_strided_slice %254 {offsets = [0, 2], sizes = [2, 12], strides = [1, 1]} : vector<2x14xf32> to vector<2x12xf32>
    %646 = vector.broadcast %127 : f32 to vector<2x12xf32>
    %647 = arith.mulf %645, %646 : vector<2x12xf32>
    %648 = arith.addf %644, %647 : vector<2x12xf32>
    %649 = vector.broadcast %131 : f32 to vector<2x12xf32>
    %650 = arith.addf %648, %649 : vector<2x12xf32>
    %cst_52 = arith.constant 0.000000e+00 : f32
    %651 = vector.broadcast %cst_52 : f32 to vector<2x12xf32>
    %652 = arith.maximumf %650, %651 : vector<2x12xf32>
    %653 = arith.addf %553, %652 : vector<2x12xf32>
    %cst_53 = arith.constant 2.500000e-01 : f32
    %654 = vector.broadcast %cst_53 : f32 to vector<2x12xf32>
    %655 = arith.mulf %653, %654 : vector<2x12xf32>
    %c0_54 = arith.constant 0 : index
    %c16_55 = arith.constant 16 : index
    %656 = vector.load %arg6[%c0_54, %c16_55] : memref<2x40xf32, #tpu.memory_space<vmem>>, vector<2x12xf32>
    tpu.vector_store %arg6[%c0_54, %c16_55], %655 {strides = array<i32>} : memref<2x40xf32, #tpu.memory_space<vmem>>, vector<2x12xf32>,
    %c0_56 = arith.constant 0 : index
    %c12_57 = arith.constant 12 : index
    %657 = vector.load %arg6[%c0_56, %c12_57] : memref<2x40xf32, #tpu.memory_space<vmem>>, vector<2x16xf32>
    %658 = vector.extract_strided_slice %657 {offsets = [0, 0], sizes = [2, 14], strides = [1, 1]} : vector<2x16xf32> to vector<2x14xf32>
    %659 = vector.broadcast %0 : f32 to vector<2x14xf32>
    %660 = arith.mulf %658, %659 : vector<2x14xf32>
    %661 = vector.extract_strided_slice %657 {offsets = [0, 1], sizes = [2, 14], strides = [1, 1]} : vector<2x16xf32> to vector<2x14xf32>
    %662 = vector.broadcast %1 : f32 to vector<2x14xf32>
    %663 = arith.mulf %661, %662 : vector<2x14xf32>
    %664 = arith.addf %660, %663 : vector<2x14xf32>
    %665 = vector.extract_strided_slice %657 {offsets = [0, 2], sizes = [2, 14], strides = [1, 1]} : vector<2x16xf32> to vector<2x14xf32>
    %666 = vector.broadcast %2 : f32 to vector<2x14xf32>
    %667 = arith.mulf %665, %666 : vector<2x14xf32>
    %668 = arith.addf %664, %667 : vector<2x14xf32>
    %669 = vector.broadcast %24 : f32 to vector<2x14xf32>
    %670 = arith.addf %668, %669 : vector<2x14xf32>
    %cst_58 = arith.constant 0.000000e+00 : f32
    %671 = vector.broadcast %cst_58 : f32 to vector<2x14xf32>
    %672 = arith.maximumf %670, %671 : vector<2x14xf32>
    %673 = vector.extract_strided_slice %657 {offsets = [0, 0], sizes = [2, 14], strides = [1, 1]} : vector<2x16xf32> to vector<2x14xf32>
    %674 = vector.broadcast %3 : f32 to vector<2x14xf32>
    %675 = arith.mulf %673, %674 : vector<2x14xf32>
    %676 = vector.extract_strided_slice %657 {offsets = [0, 1], sizes = [2, 14], strides = [1, 1]} : vector<2x16xf32> to vector<2x14xf32>
    %677 = vector.broadcast %4 : f32 to vector<2x14xf32>
    %678 = arith.mulf %676, %677 : vector<2x14xf32>
    %679 = arith.addf %675, %678 : vector<2x14xf32>
    %680 = vector.extract_strided_slice %657 {offsets = [0, 2], sizes = [2, 14], strides = [1, 1]} : vector<2x16xf32> to vector<2x14xf32>
    %681 = vector.broadcast %5 : f32 to vector<2x14xf32>
    %682 = arith.mulf %680, %681 : vector<2x14xf32>
    %683 = arith.addf %679, %682 : vector<2x14xf32>
    %684 = vector.broadcast %25 : f32 to vector<2x14xf32>
    %685 = arith.addf %683, %684 : vector<2x14xf32>
    %cst_59 = arith.constant 0.000000e+00 : f32
    %686 = vector.broadcast %cst_59 : f32 to vector<2x14xf32>
    %687 = arith.maximumf %685, %686 : vector<2x14xf32>
    %688 = vector.extract_strided_slice %657 {offsets = [0, 0], sizes = [2, 14], strides = [1, 1]} : vector<2x16xf32> to vector<2x14xf32>
    %689 = vector.broadcast %6 : f32 to vector<2x14xf32>
    %690 = arith.mulf %688, %689 : vector<2x14xf32>
    %691 = vector.extract_strided_slice %657 {offsets = [0, 1], sizes = [2, 14], strides = [1, 1]} : vector<2x16xf32> to vector<2x14xf32>
    %692 = vector.broadcast %7 : f32 to vector<2x14xf32>
    %693 = arith.mulf %691, %692 : vector<2x14xf32>
    %694 = arith.addf %690, %693 : vector<2x14xf32>
    %695 = vector.extract_strided_slice %657 {offsets = [0, 2], sizes = [2, 14], strides = [1, 1]} : vector<2x16xf32> to vector<2x14xf32>
    %696 = vector.broadcast %8 : f32 to vector<2x14xf32>
    %697 = arith.mulf %695, %696 : vector<2x14xf32>
    %698 = arith.addf %694, %697 : vector<2x14xf32>
    %699 = vector.broadcast %26 : f32 to vector<2x14xf32>
    %700 = arith.addf %698, %699 : vector<2x14xf32>
    %cst_60 = arith.constant 0.000000e+00 : f32
    %701 = vector.broadcast %cst_60 : f32 to vector<2x14xf32>
    %702 = arith.maximumf %700, %701 : vector<2x14xf32>
    %703 = vector.extract_strided_slice %657 {offsets = [0, 0], sizes = [2, 14], strides = [1, 1]} : vector<2x16xf32> to vector<2x14xf32>
    %704 = vector.broadcast %9 : f32 to vector<2x14xf32>
    %705 = arith.mulf %703, %704 : vector<2x14xf32>
    %706 = vector.extract_strided_slice %657 {offsets = [0, 1], sizes = [2, 14], strides = [1, 1]} : vector<2x16xf32> to vector<2x14xf32>
    %707 = vector.broadcast %10 : f32 to vector<2x14xf32>
    %708 = arith.mulf %706, %707 : vector<2x14xf32>
    %709 = arith.addf %705, %708 : vector<2x14xf32>
    %710 = vector.extract_strided_slice %657 {offsets = [0, 2], sizes = [2, 14], strides = [1, 1]} : vector<2x16xf32> to vector<2x14xf32>
    %711 = vector.broadcast %11 : f32 to vector<2x14xf32>
    %712 = arith.mulf %710, %711 : vector<2x14xf32>
    %713 = arith.addf %709, %712 : vector<2x14xf32>
    %714 = vector.broadcast %27 : f32 to vector<2x14xf32>
    %715 = arith.addf %713, %714 : vector<2x14xf32>
    %cst_61 = arith.constant 0.000000e+00 : f32
    %716 = vector.broadcast %cst_61 : f32 to vector<2x14xf32>
    %717 = arith.maximumf %715, %716 : vector<2x14xf32>
    %718 = vector.extract_strided_slice %657 {offsets = [0, 0], sizes = [2, 14], strides = [1, 1]} : vector<2x16xf32> to vector<2x14xf32>
    %719 = vector.broadcast %12 : f32 to vector<2x14xf32>
    %720 = arith.mulf %718, %719 : vector<2x14xf32>
    %721 = vector.extract_strided_slice %657 {offsets = [0, 1], sizes = [2, 14], strides = [1, 1]} : vector<2x16xf32> to vector<2x14xf32>
    %722 = vector.broadcast %13 : f32 to vector<2x14xf32>
    %723 = arith.mulf %721, %722 : vector<2x14xf32>
    %724 = arith.addf %720, %723 : vector<2x14xf32>
    %725 = vector.extract_strided_slice %657 {offsets = [0, 2], sizes = [2, 14], strides = [1, 1]} : vector<2x16xf32> to vector<2x14xf32>
    %726 = vector.broadcast %14 : f32 to vector<2x14xf32>
    %727 = arith.mulf %725, %726 : vector<2x14xf32>
    %728 = arith.addf %724, %727 : vector<2x14xf32>
    %729 = vector.broadcast %28 : f32 to vector<2x14xf32>
    %730 = arith.addf %728, %729 : vector<2x14xf32>
    %cst_62 = arith.constant 0.000000e+00 : f32
    %731 = vector.broadcast %cst_62 : f32 to vector<2x14xf32>
    %732 = arith.maximumf %730, %731 : vector<2x14xf32>
    %733 = vector.extract_strided_slice %657 {offsets = [0, 0], sizes = [2, 14], strides = [1, 1]} : vector<2x16xf32> to vector<2x14xf32>
    %734 = vector.broadcast %15 : f32 to vector<2x14xf32>
    %735 = arith.mulf %733, %734 : vector<2x14xf32>
    %736 = vector.extract_strided_slice %657 {offsets = [0, 1], sizes = [2, 14], strides = [1, 1]} : vector<2x16xf32> to vector<2x14xf32>
    %737 = vector.broadcast %16 : f32 to vector<2x14xf32>
    %738 = arith.mulf %736, %737 : vector<2x14xf32>
    %739 = arith.addf %735, %738 : vector<2x14xf32>
    %740 = vector.extract_strided_slice %657 {offsets = [0, 2], sizes = [2, 14], strides = [1, 1]} : vector<2x16xf32> to vector<2x14xf32>
    %741 = vector.broadcast %17 : f32 to vector<2x14xf32>
    %742 = arith.mulf %740, %741 : vector<2x14xf32>
    %743 = arith.addf %739, %742 : vector<2x14xf32>
    %744 = vector.broadcast %29 : f32 to vector<2x14xf32>
    %745 = arith.addf %743, %744 : vector<2x14xf32>
    %cst_63 = arith.constant 0.000000e+00 : f32
    %746 = vector.broadcast %cst_63 : f32 to vector<2x14xf32>
    %747 = arith.maximumf %745, %746 : vector<2x14xf32>
    %748 = vector.extract_strided_slice %657 {offsets = [0, 0], sizes = [2, 14], strides = [1, 1]} : vector<2x16xf32> to vector<2x14xf32>
    %749 = vector.broadcast %18 : f32 to vector<2x14xf32>
    %750 = arith.mulf %748, %749 : vector<2x14xf32>
    %751 = vector.extract_strided_slice %657 {offsets = [0, 1], sizes = [2, 14], strides = [1, 1]} : vector<2x16xf32> to vector<2x14xf32>
    %752 = vector.broadcast %19 : f32 to vector<2x14xf32>
    %753 = arith.mulf %751, %752 : vector<2x14xf32>
    %754 = arith.addf %750, %753 : vector<2x14xf32>
    %755 = vector.extract_strided_slice %657 {offsets = [0, 2], sizes = [2, 14], strides = [1, 1]} : vector<2x16xf32> to vector<2x14xf32>
    %756 = vector.broadcast %20 : f32 to vector<2x14xf32>
    %757 = arith.mulf %755, %756 : vector<2x14xf32>
    %758 = arith.addf %754, %757 : vector<2x14xf32>
    %759 = vector.broadcast %30 : f32 to vector<2x14xf32>
    %760 = arith.addf %758, %759 : vector<2x14xf32>
    %cst_64 = arith.constant 0.000000e+00 : f32
    %761 = vector.broadcast %cst_64 : f32 to vector<2x14xf32>
    %762 = arith.maximumf %760, %761 : vector<2x14xf32>
    %763 = vector.extract_strided_slice %657 {offsets = [0, 0], sizes = [2, 14], strides = [1, 1]} : vector<2x16xf32> to vector<2x14xf32>
    %764 = vector.broadcast %21 : f32 to vector<2x14xf32>
    %765 = arith.mulf %763, %764 : vector<2x14xf32>
    %766 = vector.extract_strided_slice %657 {offsets = [0, 1], sizes = [2, 14], strides = [1, 1]} : vector<2x16xf32> to vector<2x14xf32>
    %767 = vector.broadcast %22 : f32 to vector<2x14xf32>
    %768 = arith.mulf %766, %767 : vector<2x14xf32>
    %769 = arith.addf %765, %768 : vector<2x14xf32>
    %770 = vector.extract_strided_slice %657 {offsets = [0, 2], sizes = [2, 14], strides = [1, 1]} : vector<2x16xf32> to vector<2x14xf32>
    %771 = vector.broadcast %23 : f32 to vector<2x14xf32>
    %772 = arith.mulf %770, %771 : vector<2x14xf32>
    %773 = arith.addf %769, %772 : vector<2x14xf32>
    %774 = vector.broadcast %31 : f32 to vector<2x14xf32>
    %775 = arith.addf %773, %774 : vector<2x14xf32>
    %cst_65 = arith.constant 0.000000e+00 : f32
    %776 = vector.broadcast %cst_65 : f32 to vector<2x14xf32>
    %777 = arith.maximumf %775, %776 : vector<2x14xf32>
    %778 = vector.extract_strided_slice %672 {offsets = [0, 0], sizes = [2, 12], strides = [1, 1]} : vector<2x14xf32> to vector<2x12xf32>
    %779 = vector.broadcast %32 : f32 to vector<2x12xf32>
    %780 = arith.mulf %778, %779 : vector<2x12xf32>
    %781 = vector.extract_strided_slice %672 {offsets = [0, 1], sizes = [2, 12], strides = [1, 1]} : vector<2x14xf32> to vector<2x12xf32>
    %782 = vector.broadcast %33 : f32 to vector<2x12xf32>
    %783 = arith.mulf %781, %782 : vector<2x12xf32>
    %784 = arith.addf %780, %783 : vector<2x12xf32>
    %785 = vector.extract_strided_slice %672 {offsets = [0, 2], sizes = [2, 12], strides = [1, 1]} : vector<2x14xf32> to vector<2x12xf32>
    %786 = vector.broadcast %34 : f32 to vector<2x12xf32>
    %787 = arith.mulf %785, %786 : vector<2x12xf32>
    %788 = arith.addf %784, %787 : vector<2x12xf32>
    %789 = vector.extract_strided_slice %687 {offsets = [0, 0], sizes = [2, 12], strides = [1, 1]} : vector<2x14xf32> to vector<2x12xf32>
    %790 = vector.broadcast %35 : f32 to vector<2x12xf32>
    %791 = arith.mulf %789, %790 : vector<2x12xf32>
    %792 = arith.addf %788, %791 : vector<2x12xf32>
    %793 = vector.extract_strided_slice %687 {offsets = [0, 1], sizes = [2, 12], strides = [1, 1]} : vector<2x14xf32> to vector<2x12xf32>
    %794 = vector.broadcast %36 : f32 to vector<2x12xf32>
    %795 = arith.mulf %793, %794 : vector<2x12xf32>
    %796 = arith.addf %792, %795 : vector<2x12xf32>
    %797 = vector.extract_strided_slice %687 {offsets = [0, 2], sizes = [2, 12], strides = [1, 1]} : vector<2x14xf32> to vector<2x12xf32>
    %798 = vector.broadcast %37 : f32 to vector<2x12xf32>
    %799 = arith.mulf %797, %798 : vector<2x12xf32>
    %800 = arith.addf %796, %799 : vector<2x12xf32>
    %801 = vector.extract_strided_slice %702 {offsets = [0, 0], sizes = [2, 12], strides = [1, 1]} : vector<2x14xf32> to vector<2x12xf32>
    %802 = vector.broadcast %38 : f32 to vector<2x12xf32>
    %803 = arith.mulf %801, %802 : vector<2x12xf32>
    %804 = arith.addf %800, %803 : vector<2x12xf32>
    %805 = vector.extract_strided_slice %702 {offsets = [0, 1], sizes = [2, 12], strides = [1, 1]} : vector<2x14xf32> to vector<2x12xf32>
    %806 = vector.broadcast %39 : f32 to vector<2x12xf32>
    %807 = arith.mulf %805, %806 : vector<2x12xf32>
    %808 = arith.addf %804, %807 : vector<2x12xf32>
    %809 = vector.extract_strided_slice %702 {offsets = [0, 2], sizes = [2, 12], strides = [1, 1]} : vector<2x14xf32> to vector<2x12xf32>
    %810 = vector.broadcast %40 : f32 to vector<2x12xf32>
    %811 = arith.mulf %809, %810 : vector<2x12xf32>
    %812 = arith.addf %808, %811 : vector<2x12xf32>
    %813 = vector.extract_strided_slice %717 {offsets = [0, 0], sizes = [2, 12], strides = [1, 1]} : vector<2x14xf32> to vector<2x12xf32>
    %814 = vector.broadcast %41 : f32 to vector<2x12xf32>
    %815 = arith.mulf %813, %814 : vector<2x12xf32>
    %816 = arith.addf %812, %815 : vector<2x12xf32>
    %817 = vector.extract_strided_slice %717 {offsets = [0, 1], sizes = [2, 12], strides = [1, 1]} : vector<2x14xf32> to vector<2x12xf32>
    %818 = vector.broadcast %42 : f32 to vector<2x12xf32>
    %819 = arith.mulf %817, %818 : vector<2x12xf32>
    %820 = arith.addf %816, %819 : vector<2x12xf32>
    %821 = vector.extract_strided_slice %717 {offsets = [0, 2], sizes = [2, 12], strides = [1, 1]} : vector<2x14xf32> to vector<2x12xf32>
    %822 = vector.broadcast %43 : f32 to vector<2x12xf32>
    %823 = arith.mulf %821, %822 : vector<2x12xf32>
    %824 = arith.addf %820, %823 : vector<2x12xf32>
    %825 = vector.extract_strided_slice %732 {offsets = [0, 0], sizes = [2, 12], strides = [1, 1]} : vector<2x14xf32> to vector<2x12xf32>
    %826 = vector.broadcast %44 : f32 to vector<2x12xf32>
    %827 = arith.mulf %825, %826 : vector<2x12xf32>
    %828 = arith.addf %824, %827 : vector<2x12xf32>
    %829 = vector.extract_strided_slice %732 {offsets = [0, 1], sizes = [2, 12], strides = [1, 1]} : vector<2x14xf32> to vector<2x12xf32>
    %830 = vector.broadcast %45 : f32 to vector<2x12xf32>
    %831 = arith.mulf %829, %830 : vector<2x12xf32>
    %832 = arith.addf %828, %831 : vector<2x12xf32>
    %833 = vector.extract_strided_slice %732 {offsets = [0, 2], sizes = [2, 12], strides = [1, 1]} : vector<2x14xf32> to vector<2x12xf32>
    %834 = vector.broadcast %46 : f32 to vector<2x12xf32>
    %835 = arith.mulf %833, %834 : vector<2x12xf32>
    %836 = arith.addf %832, %835 : vector<2x12xf32>
    %837 = vector.extract_strided_slice %747 {offsets = [0, 0], sizes = [2, 12], strides = [1, 1]} : vector<2x14xf32> to vector<2x12xf32>
    %838 = vector.broadcast %47 : f32 to vector<2x12xf32>
    %839 = arith.mulf %837, %838 : vector<2x12xf32>
    %840 = arith.addf %836, %839 : vector<2x12xf32>
    %841 = vector.extract_strided_slice %747 {offsets = [0, 1], sizes = [2, 12], strides = [1, 1]} : vector<2x14xf32> to vector<2x12xf32>
    %842 = vector.broadcast %48 : f32 to vector<2x12xf32>
    %843 = arith.mulf %841, %842 : vector<2x12xf32>
    %844 = arith.addf %840, %843 : vector<2x12xf32>
    %845 = vector.extract_strided_slice %747 {offsets = [0, 2], sizes = [2, 12], strides = [1, 1]} : vector<2x14xf32> to vector<2x12xf32>
    %846 = vector.broadcast %49 : f32 to vector<2x12xf32>
    %847 = arith.mulf %845, %846 : vector<2x12xf32>
    %848 = arith.addf %844, %847 : vector<2x12xf32>
    %849 = vector.extract_strided_slice %762 {offsets = [0, 0], sizes = [2, 12], strides = [1, 1]} : vector<2x14xf32> to vector<2x12xf32>
    %850 = vector.broadcast %50 : f32 to vector<2x12xf32>
    %851 = arith.mulf %849, %850 : vector<2x12xf32>
    %852 = arith.addf %848, %851 : vector<2x12xf32>
    %853 = vector.extract_strided_slice %762 {offsets = [0, 1], sizes = [2, 12], strides = [1, 1]} : vector<2x14xf32> to vector<2x12xf32>
    %854 = vector.broadcast %51 : f32 to vector<2x12xf32>
    %855 = arith.mulf %853, %854 : vector<2x12xf32>
    %856 = arith.addf %852, %855 : vector<2x12xf32>
    %857 = vector.extract_strided_slice %762 {offsets = [0, 2], sizes = [2, 12], strides = [1, 1]} : vector<2x14xf32> to vector<2x12xf32>
    %858 = vector.broadcast %52 : f32 to vector<2x12xf32>
    %859 = arith.mulf %857, %858 : vector<2x12xf32>
    %860 = arith.addf %856, %859 : vector<2x12xf32>
    %861 = vector.extract_strided_slice %777 {offsets = [0, 0], sizes = [2, 12], strides = [1, 1]} : vector<2x14xf32> to vector<2x12xf32>
    %862 = vector.broadcast %53 : f32 to vector<2x12xf32>
    %863 = arith.mulf %861, %862 : vector<2x12xf32>
    %864 = arith.addf %860, %863 : vector<2x12xf32>
    %865 = vector.extract_strided_slice %777 {offsets = [0, 1], sizes = [2, 12], strides = [1, 1]} : vector<2x14xf32> to vector<2x12xf32>
    %866 = vector.broadcast %54 : f32 to vector<2x12xf32>
    %867 = arith.mulf %865, %866 : vector<2x12xf32>
    %868 = arith.addf %864, %867 : vector<2x12xf32>
    %869 = vector.extract_strided_slice %777 {offsets = [0, 2], sizes = [2, 12], strides = [1, 1]} : vector<2x14xf32> to vector<2x12xf32>
    %870 = vector.broadcast %55 : f32 to vector<2x12xf32>
    %871 = arith.mulf %869, %870 : vector<2x12xf32>
    %872 = arith.addf %868, %871 : vector<2x12xf32>
    %873 = vector.broadcast %128 : f32 to vector<2x12xf32>
    %874 = arith.addf %872, %873 : vector<2x12xf32>
    %cst_66 = arith.constant 0.000000e+00 : f32
    %875 = vector.broadcast %cst_66 : f32 to vector<2x12xf32>
    %876 = arith.maximumf %874, %875 : vector<2x12xf32>
    %877 = vector.extract_strided_slice %672 {offsets = [0, 0], sizes = [2, 12], strides = [1, 1]} : vector<2x14xf32> to vector<2x12xf32>
    %878 = vector.broadcast %56 : f32 to vector<2x12xf32>
    %879 = arith.mulf %877, %878 : vector<2x12xf32>
    %880 = vector.extract_strided_slice %672 {offsets = [0, 1], sizes = [2, 12], strides = [1, 1]} : vector<2x14xf32> to vector<2x12xf32>
    %881 = vector.broadcast %57 : f32 to vector<2x12xf32>
    %882 = arith.mulf %880, %881 : vector<2x12xf32>
    %883 = arith.addf %879, %882 : vector<2x12xf32>
    %884 = vector.extract_strided_slice %672 {offsets = [0, 2], sizes = [2, 12], strides = [1, 1]} : vector<2x14xf32> to vector<2x12xf32>
    %885 = vector.broadcast %58 : f32 to vector<2x12xf32>
    %886 = arith.mulf %884, %885 : vector<2x12xf32>
    %887 = arith.addf %883, %886 : vector<2x12xf32>
    %888 = vector.extract_strided_slice %687 {offsets = [0, 0], sizes = [2, 12], strides = [1, 1]} : vector<2x14xf32> to vector<2x12xf32>
    %889 = vector.broadcast %59 : f32 to vector<2x12xf32>
    %890 = arith.mulf %888, %889 : vector<2x12xf32>
    %891 = arith.addf %887, %890 : vector<2x12xf32>
    %892 = vector.extract_strided_slice %687 {offsets = [0, 1], sizes = [2, 12], strides = [1, 1]} : vector<2x14xf32> to vector<2x12xf32>
    %893 = vector.broadcast %60 : f32 to vector<2x12xf32>
    %894 = arith.mulf %892, %893 : vector<2x12xf32>
    %895 = arith.addf %891, %894 : vector<2x12xf32>
    %896 = vector.extract_strided_slice %687 {offsets = [0, 2], sizes = [2, 12], strides = [1, 1]} : vector<2x14xf32> to vector<2x12xf32>
    %897 = vector.broadcast %61 : f32 to vector<2x12xf32>
    %898 = arith.mulf %896, %897 : vector<2x12xf32>
    %899 = arith.addf %895, %898 : vector<2x12xf32>
    %900 = vector.extract_strided_slice %702 {offsets = [0, 0], sizes = [2, 12], strides = [1, 1]} : vector<2x14xf32> to vector<2x12xf32>
    %901 = vector.broadcast %62 : f32 to vector<2x12xf32>
    %902 = arith.mulf %900, %901 : vector<2x12xf32>
    %903 = arith.addf %899, %902 : vector<2x12xf32>
    %904 = vector.extract_strided_slice %702 {offsets = [0, 1], sizes = [2, 12], strides = [1, 1]} : vector<2x14xf32> to vector<2x12xf32>
    %905 = vector.broadcast %63 : f32 to vector<2x12xf32>
    %906 = arith.mulf %904, %905 : vector<2x12xf32>
    %907 = arith.addf %903, %906 : vector<2x12xf32>
    %908 = vector.extract_strided_slice %702 {offsets = [0, 2], sizes = [2, 12], strides = [1, 1]} : vector<2x14xf32> to vector<2x12xf32>
    %909 = vector.broadcast %64 : f32 to vector<2x12xf32>
    %910 = arith.mulf %908, %909 : vector<2x12xf32>
    %911 = arith.addf %907, %910 : vector<2x12xf32>
    %912 = vector.extract_strided_slice %717 {offsets = [0, 0], sizes = [2, 12], strides = [1, 1]} : vector<2x14xf32> to vector<2x12xf32>
    %913 = vector.broadcast %65 : f32 to vector<2x12xf32>
    %914 = arith.mulf %912, %913 : vector<2x12xf32>
    %915 = arith.addf %911, %914 : vector<2x12xf32>
    %916 = vector.extract_strided_slice %717 {offsets = [0, 1], sizes = [2, 12], strides = [1, 1]} : vector<2x14xf32> to vector<2x12xf32>
    %917 = vector.broadcast %66 : f32 to vector<2x12xf32>
    %918 = arith.mulf %916, %917 : vector<2x12xf32>
    %919 = arith.addf %915, %918 : vector<2x12xf32>
    %920 = vector.extract_strided_slice %717 {offsets = [0, 2], sizes = [2, 12], strides = [1, 1]} : vector<2x14xf32> to vector<2x12xf32>
    %921 = vector.broadcast %67 : f32 to vector<2x12xf32>
    %922 = arith.mulf %920, %921 : vector<2x12xf32>
    %923 = arith.addf %919, %922 : vector<2x12xf32>
    %924 = vector.extract_strided_slice %732 {offsets = [0, 0], sizes = [2, 12], strides = [1, 1]} : vector<2x14xf32> to vector<2x12xf32>
    %925 = vector.broadcast %68 : f32 to vector<2x12xf32>
    %926 = arith.mulf %924, %925 : vector<2x12xf32>
    %927 = arith.addf %923, %926 : vector<2x12xf32>
    %928 = vector.extract_strided_slice %732 {offsets = [0, 1], sizes = [2, 12], strides = [1, 1]} : vector<2x14xf32> to vector<2x12xf32>
    %929 = vector.broadcast %69 : f32 to vector<2x12xf32>
    %930 = arith.mulf %928, %929 : vector<2x12xf32>
    %931 = arith.addf %927, %930 : vector<2x12xf32>
    %932 = vector.extract_strided_slice %732 {offsets = [0, 2], sizes = [2, 12], strides = [1, 1]} : vector<2x14xf32> to vector<2x12xf32>
    %933 = vector.broadcast %70 : f32 to vector<2x12xf32>
    %934 = arith.mulf %932, %933 : vector<2x12xf32>
    %935 = arith.addf %931, %934 : vector<2x12xf32>
    %936 = vector.extract_strided_slice %747 {offsets = [0, 0], sizes = [2, 12], strides = [1, 1]} : vector<2x14xf32> to vector<2x12xf32>
    %937 = vector.broadcast %71 : f32 to vector<2x12xf32>
    %938 = arith.mulf %936, %937 : vector<2x12xf32>
    %939 = arith.addf %935, %938 : vector<2x12xf32>
    %940 = vector.extract_strided_slice %747 {offsets = [0, 1], sizes = [2, 12], strides = [1, 1]} : vector<2x14xf32> to vector<2x12xf32>
    %941 = vector.broadcast %72 : f32 to vector<2x12xf32>
    %942 = arith.mulf %940, %941 : vector<2x12xf32>
    %943 = arith.addf %939, %942 : vector<2x12xf32>
    %944 = vector.extract_strided_slice %747 {offsets = [0, 2], sizes = [2, 12], strides = [1, 1]} : vector<2x14xf32> to vector<2x12xf32>
    %945 = vector.broadcast %73 : f32 to vector<2x12xf32>
    %946 = arith.mulf %944, %945 : vector<2x12xf32>
    %947 = arith.addf %943, %946 : vector<2x12xf32>
    %948 = vector.extract_strided_slice %762 {offsets = [0, 0], sizes = [2, 12], strides = [1, 1]} : vector<2x14xf32> to vector<2x12xf32>
    %949 = vector.broadcast %74 : f32 to vector<2x12xf32>
    %950 = arith.mulf %948, %949 : vector<2x12xf32>
    %951 = arith.addf %947, %950 : vector<2x12xf32>
    %952 = vector.extract_strided_slice %762 {offsets = [0, 1], sizes = [2, 12], strides = [1, 1]} : vector<2x14xf32> to vector<2x12xf32>
    %953 = vector.broadcast %75 : f32 to vector<2x12xf32>
    %954 = arith.mulf %952, %953 : vector<2x12xf32>
    %955 = arith.addf %951, %954 : vector<2x12xf32>
    %956 = vector.extract_strided_slice %762 {offsets = [0, 2], sizes = [2, 12], strides = [1, 1]} : vector<2x14xf32> to vector<2x12xf32>
    %957 = vector.broadcast %76 : f32 to vector<2x12xf32>
    %958 = arith.mulf %956, %957 : vector<2x12xf32>
    %959 = arith.addf %955, %958 : vector<2x12xf32>
    %960 = vector.extract_strided_slice %777 {offsets = [0, 0], sizes = [2, 12], strides = [1, 1]} : vector<2x14xf32> to vector<2x12xf32>
    %961 = vector.broadcast %77 : f32 to vector<2x12xf32>
    %962 = arith.mulf %960, %961 : vector<2x12xf32>
    %963 = arith.addf %959, %962 : vector<2x12xf32>
    %964 = vector.extract_strided_slice %777 {offsets = [0, 1], sizes = [2, 12], strides = [1, 1]} : vector<2x14xf32> to vector<2x12xf32>
    %965 = vector.broadcast %78 : f32 to vector<2x12xf32>
    %966 = arith.mulf %964, %965 : vector<2x12xf32>
    %967 = arith.addf %963, %966 : vector<2x12xf32>
    %968 = vector.extract_strided_slice %777 {offsets = [0, 2], sizes = [2, 12], strides = [1, 1]} : vector<2x14xf32> to vector<2x12xf32>
    %969 = vector.broadcast %79 : f32 to vector<2x12xf32>
    %970 = arith.mulf %968, %969 : vector<2x12xf32>
    %971 = arith.addf %967, %970 : vector<2x12xf32>
    %972 = vector.broadcast %129 : f32 to vector<2x12xf32>
    %973 = arith.addf %971, %972 : vector<2x12xf32>
    %cst_67 = arith.constant 0.000000e+00 : f32
    %974 = vector.broadcast %cst_67 : f32 to vector<2x12xf32>
    %975 = arith.maximumf %973, %974 : vector<2x12xf32>
    %976 = arith.addf %876, %975 : vector<2x12xf32>
    %977 = vector.extract_strided_slice %672 {offsets = [0, 0], sizes = [2, 12], strides = [1, 1]} : vector<2x14xf32> to vector<2x12xf32>
    %978 = vector.broadcast %80 : f32 to vector<2x12xf32>
    %979 = arith.mulf %977, %978 : vector<2x12xf32>
    %980 = vector.extract_strided_slice %672 {offsets = [0, 1], sizes = [2, 12], strides = [1, 1]} : vector<2x14xf32> to vector<2x12xf32>
    %981 = vector.broadcast %81 : f32 to vector<2x12xf32>
    %982 = arith.mulf %980, %981 : vector<2x12xf32>
    %983 = arith.addf %979, %982 : vector<2x12xf32>
    %984 = vector.extract_strided_slice %672 {offsets = [0, 2], sizes = [2, 12], strides = [1, 1]} : vector<2x14xf32> to vector<2x12xf32>
    %985 = vector.broadcast %82 : f32 to vector<2x12xf32>
    %986 = arith.mulf %984, %985 : vector<2x12xf32>
    %987 = arith.addf %983, %986 : vector<2x12xf32>
    %988 = vector.extract_strided_slice %687 {offsets = [0, 0], sizes = [2, 12], strides = [1, 1]} : vector<2x14xf32> to vector<2x12xf32>
    %989 = vector.broadcast %83 : f32 to vector<2x12xf32>
    %990 = arith.mulf %988, %989 : vector<2x12xf32>
    %991 = arith.addf %987, %990 : vector<2x12xf32>
    %992 = vector.extract_strided_slice %687 {offsets = [0, 1], sizes = [2, 12], strides = [1, 1]} : vector<2x14xf32> to vector<2x12xf32>
    %993 = vector.broadcast %84 : f32 to vector<2x12xf32>
    %994 = arith.mulf %992, %993 : vector<2x12xf32>
    %995 = arith.addf %991, %994 : vector<2x12xf32>
    %996 = vector.extract_strided_slice %687 {offsets = [0, 2], sizes = [2, 12], strides = [1, 1]} : vector<2x14xf32> to vector<2x12xf32>
    %997 = vector.broadcast %85 : f32 to vector<2x12xf32>
    %998 = arith.mulf %996, %997 : vector<2x12xf32>
    %999 = arith.addf %995, %998 : vector<2x12xf32>
    %1000 = vector.extract_strided_slice %702 {offsets = [0, 0], sizes = [2, 12], strides = [1, 1]} : vector<2x14xf32> to vector<2x12xf32>
    %1001 = vector.broadcast %86 : f32 to vector<2x12xf32>
    %1002 = arith.mulf %1000, %1001 : vector<2x12xf32>
    %1003 = arith.addf %999, %1002 : vector<2x12xf32>
    %1004 = vector.extract_strided_slice %702 {offsets = [0, 1], sizes = [2, 12], strides = [1, 1]} : vector<2x14xf32> to vector<2x12xf32>
    %1005 = vector.broadcast %87 : f32 to vector<2x12xf32>
    %1006 = arith.mulf %1004, %1005 : vector<2x12xf32>
    %1007 = arith.addf %1003, %1006 : vector<2x12xf32>
    %1008 = vector.extract_strided_slice %702 {offsets = [0, 2], sizes = [2, 12], strides = [1, 1]} : vector<2x14xf32> to vector<2x12xf32>
    %1009 = vector.broadcast %88 : f32 to vector<2x12xf32>
    %1010 = arith.mulf %1008, %1009 : vector<2x12xf32>
    %1011 = arith.addf %1007, %1010 : vector<2x12xf32>
    %1012 = vector.extract_strided_slice %717 {offsets = [0, 0], sizes = [2, 12], strides = [1, 1]} : vector<2x14xf32> to vector<2x12xf32>
    %1013 = vector.broadcast %89 : f32 to vector<2x12xf32>
    %1014 = arith.mulf %1012, %1013 : vector<2x12xf32>
    %1015 = arith.addf %1011, %1014 : vector<2x12xf32>
    %1016 = vector.extract_strided_slice %717 {offsets = [0, 1], sizes = [2, 12], strides = [1, 1]} : vector<2x14xf32> to vector<2x12xf32>
    %1017 = vector.broadcast %90 : f32 to vector<2x12xf32>
    %1018 = arith.mulf %1016, %1017 : vector<2x12xf32>
    %1019 = arith.addf %1015, %1018 : vector<2x12xf32>
    %1020 = vector.extract_strided_slice %717 {offsets = [0, 2], sizes = [2, 12], strides = [1, 1]} : vector<2x14xf32> to vector<2x12xf32>
    %1021 = vector.broadcast %91 : f32 to vector<2x12xf32>
    %1022 = arith.mulf %1020, %1021 : vector<2x12xf32>
    %1023 = arith.addf %1019, %1022 : vector<2x12xf32>
    %1024 = vector.extract_strided_slice %732 {offsets = [0, 0], sizes = [2, 12], strides = [1, 1]} : vector<2x14xf32> to vector<2x12xf32>
    %1025 = vector.broadcast %92 : f32 to vector<2x12xf32>
    %1026 = arith.mulf %1024, %1025 : vector<2x12xf32>
    %1027 = arith.addf %1023, %1026 : vector<2x12xf32>
    %1028 = vector.extract_strided_slice %732 {offsets = [0, 1], sizes = [2, 12], strides = [1, 1]} : vector<2x14xf32> to vector<2x12xf32>
    %1029 = vector.broadcast %93 : f32 to vector<2x12xf32>
    %1030 = arith.mulf %1028, %1029 : vector<2x12xf32>
    %1031 = arith.addf %1027, %1030 : vector<2x12xf32>
    %1032 = vector.extract_strided_slice %732 {offsets = [0, 2], sizes = [2, 12], strides = [1, 1]} : vector<2x14xf32> to vector<2x12xf32>
    %1033 = vector.broadcast %94 : f32 to vector<2x12xf32>
    %1034 = arith.mulf %1032, %1033 : vector<2x12xf32>
    %1035 = arith.addf %1031, %1034 : vector<2x12xf32>
    %1036 = vector.extract_strided_slice %747 {offsets = [0, 0], sizes = [2, 12], strides = [1, 1]} : vector<2x14xf32> to vector<2x12xf32>
    %1037 = vector.broadcast %95 : f32 to vector<2x12xf32>
    %1038 = arith.mulf %1036, %1037 : vector<2x12xf32>
    %1039 = arith.addf %1035, %1038 : vector<2x12xf32>
    %1040 = vector.extract_strided_slice %747 {offsets = [0, 1], sizes = [2, 12], strides = [1, 1]} : vector<2x14xf32> to vector<2x12xf32>
    %1041 = vector.broadcast %96 : f32 to vector<2x12xf32>
    %1042 = arith.mulf %1040, %1041 : vector<2x12xf32>
    %1043 = arith.addf %1039, %1042 : vector<2x12xf32>
    %1044 = vector.extract_strided_slice %747 {offsets = [0, 2], sizes = [2, 12], strides = [1, 1]} : vector<2x14xf32> to vector<2x12xf32>
    %1045 = vector.broadcast %97 : f32 to vector<2x12xf32>
    %1046 = arith.mulf %1044, %1045 : vector<2x12xf32>
    %1047 = arith.addf %1043, %1046 : vector<2x12xf32>
    %1048 = vector.extract_strided_slice %762 {offsets = [0, 0], sizes = [2, 12], strides = [1, 1]} : vector<2x14xf32> to vector<2x12xf32>
    %1049 = vector.broadcast %98 : f32 to vector<2x12xf32>
    %1050 = arith.mulf %1048, %1049 : vector<2x12xf32>
    %1051 = arith.addf %1047, %1050 : vector<2x12xf32>
    %1052 = vector.extract_strided_slice %762 {offsets = [0, 1], sizes = [2, 12], strides = [1, 1]} : vector<2x14xf32> to vector<2x12xf32>
    %1053 = vector.broadcast %99 : f32 to vector<2x12xf32>
    %1054 = arith.mulf %1052, %1053 : vector<2x12xf32>
    %1055 = arith.addf %1051, %1054 : vector<2x12xf32>
    %1056 = vector.extract_strided_slice %762 {offsets = [0, 2], sizes = [2, 12], strides = [1, 1]} : vector<2x14xf32> to vector<2x12xf32>
    %1057 = vector.broadcast %100 : f32 to vector<2x12xf32>
    %1058 = arith.mulf %1056, %1057 : vector<2x12xf32>
    %1059 = arith.addf %1055, %1058 : vector<2x12xf32>
    %1060 = vector.extract_strided_slice %777 {offsets = [0, 0], sizes = [2, 12], strides = [1, 1]} : vector<2x14xf32> to vector<2x12xf32>
    %1061 = vector.broadcast %101 : f32 to vector<2x12xf32>
    %1062 = arith.mulf %1060, %1061 : vector<2x12xf32>
    %1063 = arith.addf %1059, %1062 : vector<2x12xf32>
    %1064 = vector.extract_strided_slice %777 {offsets = [0, 1], sizes = [2, 12], strides = [1, 1]} : vector<2x14xf32> to vector<2x12xf32>
    %1065 = vector.broadcast %102 : f32 to vector<2x12xf32>
    %1066 = arith.mulf %1064, %1065 : vector<2x12xf32>
    %1067 = arith.addf %1063, %1066 : vector<2x12xf32>
    %1068 = vector.extract_strided_slice %777 {offsets = [0, 2], sizes = [2, 12], strides = [1, 1]} : vector<2x14xf32> to vector<2x12xf32>
    %1069 = vector.broadcast %103 : f32 to vector<2x12xf32>
    %1070 = arith.mulf %1068, %1069 : vector<2x12xf32>
    %1071 = arith.addf %1067, %1070 : vector<2x12xf32>
    %1072 = vector.broadcast %130 : f32 to vector<2x12xf32>
    %1073 = arith.addf %1071, %1072 : vector<2x12xf32>
    %cst_68 = arith.constant 0.000000e+00 : f32
    %1074 = vector.broadcast %cst_68 : f32 to vector<2x12xf32>
    %1075 = arith.maximumf %1073, %1074 : vector<2x12xf32>
    %1076 = arith.addf %976, %1075 : vector<2x12xf32>
    %1077 = vector.extract_strided_slice %672 {offsets = [0, 0], sizes = [2, 12], strides = [1, 1]} : vector<2x14xf32> to vector<2x12xf32>
    %1078 = vector.broadcast %104 : f32 to vector<2x12xf32>
    %1079 = arith.mulf %1077, %1078 : vector<2x12xf32>
    %1080 = vector.extract_strided_slice %672 {offsets = [0, 1], sizes = [2, 12], strides = [1, 1]} : vector<2x14xf32> to vector<2x12xf32>
    %1081 = vector.broadcast %105 : f32 to vector<2x12xf32>
    %1082 = arith.mulf %1080, %1081 : vector<2x12xf32>
    %1083 = arith.addf %1079, %1082 : vector<2x12xf32>
    %1084 = vector.extract_strided_slice %672 {offsets = [0, 2], sizes = [2, 12], strides = [1, 1]} : vector<2x14xf32> to vector<2x12xf32>
    %1085 = vector.broadcast %106 : f32 to vector<2x12xf32>
    %1086 = arith.mulf %1084, %1085 : vector<2x12xf32>
    %1087 = arith.addf %1083, %1086 : vector<2x12xf32>
    %1088 = vector.extract_strided_slice %687 {offsets = [0, 0], sizes = [2, 12], strides = [1, 1]} : vector<2x14xf32> to vector<2x12xf32>
    %1089 = vector.broadcast %107 : f32 to vector<2x12xf32>
    %1090 = arith.mulf %1088, %1089 : vector<2x12xf32>
    %1091 = arith.addf %1087, %1090 : vector<2x12xf32>
    %1092 = vector.extract_strided_slice %687 {offsets = [0, 1], sizes = [2, 12], strides = [1, 1]} : vector<2x14xf32> to vector<2x12xf32>
    %1093 = vector.broadcast %108 : f32 to vector<2x12xf32>
    %1094 = arith.mulf %1092, %1093 : vector<2x12xf32>
    %1095 = arith.addf %1091, %1094 : vector<2x12xf32>
    %1096 = vector.extract_strided_slice %687 {offsets = [0, 2], sizes = [2, 12], strides = [1, 1]} : vector<2x14xf32> to vector<2x12xf32>
    %1097 = vector.broadcast %109 : f32 to vector<2x12xf32>
    %1098 = arith.mulf %1096, %1097 : vector<2x12xf32>
    %1099 = arith.addf %1095, %1098 : vector<2x12xf32>
    %1100 = vector.extract_strided_slice %702 {offsets = [0, 0], sizes = [2, 12], strides = [1, 1]} : vector<2x14xf32> to vector<2x12xf32>
    %1101 = vector.broadcast %110 : f32 to vector<2x12xf32>
    %1102 = arith.mulf %1100, %1101 : vector<2x12xf32>
    %1103 = arith.addf %1099, %1102 : vector<2x12xf32>
    %1104 = vector.extract_strided_slice %702 {offsets = [0, 1], sizes = [2, 12], strides = [1, 1]} : vector<2x14xf32> to vector<2x12xf32>
    %1105 = vector.broadcast %111 : f32 to vector<2x12xf32>
    %1106 = arith.mulf %1104, %1105 : vector<2x12xf32>
    %1107 = arith.addf %1103, %1106 : vector<2x12xf32>
    %1108 = vector.extract_strided_slice %702 {offsets = [0, 2], sizes = [2, 12], strides = [1, 1]} : vector<2x14xf32> to vector<2x12xf32>
    %1109 = vector.broadcast %112 : f32 to vector<2x12xf32>
    %1110 = arith.mulf %1108, %1109 : vector<2x12xf32>
    %1111 = arith.addf %1107, %1110 : vector<2x12xf32>
    %1112 = vector.extract_strided_slice %717 {offsets = [0, 0], sizes = [2, 12], strides = [1, 1]} : vector<2x14xf32> to vector<2x12xf32>
    %1113 = vector.broadcast %113 : f32 to vector<2x12xf32>
    %1114 = arith.mulf %1112, %1113 : vector<2x12xf32>
    %1115 = arith.addf %1111, %1114 : vector<2x12xf32>
    %1116 = vector.extract_strided_slice %717 {offsets = [0, 1], sizes = [2, 12], strides = [1, 1]} : vector<2x14xf32> to vector<2x12xf32>
    %1117 = vector.broadcast %114 : f32 to vector<2x12xf32>
    %1118 = arith.mulf %1116, %1117 : vector<2x12xf32>
    %1119 = arith.addf %1115, %1118 : vector<2x12xf32>
    %1120 = vector.extract_strided_slice %717 {offsets = [0, 2], sizes = [2, 12], strides = [1, 1]} : vector<2x14xf32> to vector<2x12xf32>
    %1121 = vector.broadcast %115 : f32 to vector<2x12xf32>
    %1122 = arith.mulf %1120, %1121 : vector<2x12xf32>
    %1123 = arith.addf %1119, %1122 : vector<2x12xf32>
    %1124 = vector.extract_strided_slice %732 {offsets = [0, 0], sizes = [2, 12], strides = [1, 1]} : vector<2x14xf32> to vector<2x12xf32>
    %1125 = vector.broadcast %116 : f32 to vector<2x12xf32>
    %1126 = arith.mulf %1124, %1125 : vector<2x12xf32>
    %1127 = arith.addf %1123, %1126 : vector<2x12xf32>
    %1128 = vector.extract_strided_slice %732 {offsets = [0, 1], sizes = [2, 12], strides = [1, 1]} : vector<2x14xf32> to vector<2x12xf32>
    %1129 = vector.broadcast %117 : f32 to vector<2x12xf32>
    %1130 = arith.mulf %1128, %1129 : vector<2x12xf32>
    %1131 = arith.addf %1127, %1130 : vector<2x12xf32>
    %1132 = vector.extract_strided_slice %732 {offsets = [0, 2], sizes = [2, 12], strides = [1, 1]} : vector<2x14xf32> to vector<2x12xf32>
    %1133 = vector.broadcast %118 : f32 to vector<2x12xf32>
    %1134 = arith.mulf %1132, %1133 : vector<2x12xf32>
    %1135 = arith.addf %1131, %1134 : vector<2x12xf32>
    %1136 = vector.extract_strided_slice %747 {offsets = [0, 0], sizes = [2, 12], strides = [1, 1]} : vector<2x14xf32> to vector<2x12xf32>
    %1137 = vector.broadcast %119 : f32 to vector<2x12xf32>
    %1138 = arith.mulf %1136, %1137 : vector<2x12xf32>
    %1139 = arith.addf %1135, %1138 : vector<2x12xf32>
    %1140 = vector.extract_strided_slice %747 {offsets = [0, 1], sizes = [2, 12], strides = [1, 1]} : vector<2x14xf32> to vector<2x12xf32>
    %1141 = vector.broadcast %120 : f32 to vector<2x12xf32>
    %1142 = arith.mulf %1140, %1141 : vector<2x12xf32>
    %1143 = arith.addf %1139, %1142 : vector<2x12xf32>
    %1144 = vector.extract_strided_slice %747 {offsets = [0, 2], sizes = [2, 12], strides = [1, 1]} : vector<2x14xf32> to vector<2x12xf32>
    %1145 = vector.broadcast %121 : f32 to vector<2x12xf32>
    %1146 = arith.mulf %1144, %1145 : vector<2x12xf32>
    %1147 = arith.addf %1143, %1146 : vector<2x12xf32>
    %1148 = vector.extract_strided_slice %762 {offsets = [0, 0], sizes = [2, 12], strides = [1, 1]} : vector<2x14xf32> to vector<2x12xf32>
    %1149 = vector.broadcast %122 : f32 to vector<2x12xf32>
    %1150 = arith.mulf %1148, %1149 : vector<2x12xf32>
    %1151 = arith.addf %1147, %1150 : vector<2x12xf32>
    %1152 = vector.extract_strided_slice %762 {offsets = [0, 1], sizes = [2, 12], strides = [1, 1]} : vector<2x14xf32> to vector<2x12xf32>
    %1153 = vector.broadcast %123 : f32 to vector<2x12xf32>
    %1154 = arith.mulf %1152, %1153 : vector<2x12xf32>
    %1155 = arith.addf %1151, %1154 : vector<2x12xf32>
    %1156 = vector.extract_strided_slice %762 {offsets = [0, 2], sizes = [2, 12], strides = [1, 1]} : vector<2x14xf32> to vector<2x12xf32>
    %1157 = vector.broadcast %124 : f32 to vector<2x12xf32>
    %1158 = arith.mulf %1156, %1157 : vector<2x12xf32>
    %1159 = arith.addf %1155, %1158 : vector<2x12xf32>
    %1160 = vector.extract_strided_slice %777 {offsets = [0, 0], sizes = [2, 12], strides = [1, 1]} : vector<2x14xf32> to vector<2x12xf32>
    %1161 = vector.broadcast %125 : f32 to vector<2x12xf32>
    %1162 = arith.mulf %1160, %1161 : vector<2x12xf32>
    %1163 = arith.addf %1159, %1162 : vector<2x12xf32>
    %1164 = vector.extract_strided_slice %777 {offsets = [0, 1], sizes = [2, 12], strides = [1, 1]} : vector<2x14xf32> to vector<2x12xf32>
    %1165 = vector.broadcast %126 : f32 to vector<2x12xf32>
    %1166 = arith.mulf %1164, %1165 : vector<2x12xf32>
    %1167 = arith.addf %1163, %1166 : vector<2x12xf32>
    %1168 = vector.extract_strided_slice %777 {offsets = [0, 2], sizes = [2, 12], strides = [1, 1]} : vector<2x14xf32> to vector<2x12xf32>
    %1169 = vector.broadcast %127 : f32 to vector<2x12xf32>
    %1170 = arith.mulf %1168, %1169 : vector<2x12xf32>
    %1171 = arith.addf %1167, %1170 : vector<2x12xf32>
    %1172 = vector.broadcast %131 : f32 to vector<2x12xf32>
    %1173 = arith.addf %1171, %1172 : vector<2x12xf32>
    %cst_69 = arith.constant 0.000000e+00 : f32
    %1174 = vector.broadcast %cst_69 : f32 to vector<2x12xf32>
    %1175 = arith.maximumf %1173, %1174 : vector<2x12xf32>
    %1176 = arith.addf %1076, %1175 : vector<2x12xf32>
    %cst_70 = arith.constant 2.500000e-01 : f32
    %1177 = vector.broadcast %cst_70 : f32 to vector<2x12xf32>
    %1178 = arith.mulf %1176, %1177 : vector<2x12xf32>
    %c0_71 = arith.constant 0 : index
    %c28_72 = arith.constant 28 : index
    %1179 = vector.load %arg6[%c0_71, %c28_72] : memref<2x40xf32, #tpu.memory_space<vmem>>, vector<2x12xf32>
    tpu.vector_store %arg6[%c0_71, %c28_72], %1178 {strides = array<i32>} : memref<2x40xf32, #tpu.memory_space<vmem>>, vector<2x12xf32>,
    return
  }
  func.func @transform_0(%arg0: i32) -> (i32, i32) {
    %c0_i32 = arith.constant 0 : i32
    %c0_i32_0 = arith.constant 0 : i32
    return %arg0, %c0_i32 : i32, i32
  }
  func.func @transform_1(%arg0: i32) -> i32 {
    %c0_i32 = arith.constant 0 : i32
    %c0_i32_0 = arith.constant 0 : i32
    return %c0_i32 : i32
  }
  func.func @transform_2(%arg0: i32) -> i32 {
    %c0_i32 = arith.constant 0 : i32
    %c0_i32_0 = arith.constant 0 : i32
    return %c0_i32 : i32
  }
  func.func @transform_3(%arg0: i32) -> i32 {
    %c0_i32 = arith.constant 0 : i32
    %c0_i32_0 = arith.constant 0 : i32
    return %c0_i32 : i32
  }
  func.func @transform_4(%arg0: i32) -> i32 {
    %c0_i32 = arith.constant 0 : i32
    %c0_i32_0 = arith.constant 0 : i32
    return %c0_i32 : i32
  }
  func.func @transform_5(%arg0: i32) -> (i32, i32) {
    %c0_i32 = arith.constant 0 : i32
    %c0_i32_0 = arith.constant 0 : i32
    return %arg0, %c0_i32 : i32, i32
  }
}

</mosaic_0001>

<llo_original>
// kernel: one_neuron_forward.1
$region0: #{one_neuron_forward.1}
  #allocation0 [shape = 'u32[]', space=smem, size = 0x4, offset = 0x4, fixed_abs, tag = 'smem constant byte address 0x4 - core index']
  #allocation1 [shape = 'u32[144,128]{1,0:T(1,128)}', space=vmem, size = 0x12000, scoped, tag = 'internal scratch']
  %s0 = inlined_call_operand.vmem [shape: f32[2,16], index: 0, kind: input, shape index: {}]
  %s1 = inlined_call_operand.vmem [shape: f32[24], index: 1, kind: input, shape index: {}]
  %s2 = inlined_call_operand.vmem [shape: f32[8], index: 2, kind: input, shape index: {}]
  %s3 = inlined_call_operand.vmem [shape: f32[96], index: 3, kind: input, shape index: {}]
  %s4 = inlined_call_operand.vmem [shape: f32[4], index: 4, kind: input, shape index: {}]
  %s5 = inlined_call_operand.hbm [shape: f32[2,40], index: 5, kind: output, shape index: {}]
  %s6 = sld [smem:[#allocation0]]
  $region46: #{one_neuron_forward.1} parent=0
    _
  %s8 = ssub.s32 1, %s6
  %s9 = scalar_select 0, %s8, %s6
  $region1: #{one_neuron_forward.1} parent=0
    #allocation2 [shape = 'u8[512]{0}', space=smem, size = 0x200, scoped, tag = 'input window, operand 1, single buffered']
    #allocation3 [shape = 's32[1]{0}', space=sflag, size = 0x4, scoped, tag = 'scoped memory for one_neuron_forward.1']
    #allocation4 [shape = 's32[1]{0}', space=sflag, size = 0x4, scoped, tag = 'scoped memory for one_neuron_forward.1']
    #allocation5 [shape = 'u8[512]{0}', space=smem, size = 0x200, scoped, tag = 'input window, operand 2, single buffered']
    #allocation6 [shape = 's32[1]{0}', space=sflag, size = 0x4, scoped, tag = 'scoped memory for one_neuron_forward.1']
    #allocation7 [shape = 'u8[512]{0}', space=smem, size = 0x200, scoped, tag = 'input window, operand 3, single buffered']
    #allocation8 [shape = 'u8[512]{0}', space=smem, size = 0x200, scoped, tag = 'input window, operand 4, single buffered']
    #allocation9 [shape = 's32[1]{0}', space=sflag, size = 0x4, scoped, tag = 'scoped memory for one_neuron_forward.1']
    #allocation10 [shape = 'u8[1024]{0}', space=vmem, size = 0x400, scoped, tag = 'output window, operand 0, single buffered']
    %10 = vsyncpa [#allocation4], 0
    %11 = vsyncpa [#allocation6], 0
    %12 = vsyncpa [#allocation9], 0
    %13 = vsyncpa [#allocation3], 0
    // Predicated region
    $region2: #{one_neuron_forward.1} parent=1 // pred_check
      _
    $region3: #{one_neuron_forward.1} parent=1 // pred_check_branch
      %15 = sbr.rel (0) target = $region5
    $region4: #{one_neuron_forward.1} parent=1 // pred_region
      _
    $region5: #{one_neuron_forward.1} parent=1 // pred_fallthru
      _
    // Predicated region
    $region6: #{one_neuron_forward.1} parent=1 // pred_check
      _
    $region7: #{one_neuron_forward.1} parent=1 // pred_check_branch
      %17 = sbr.rel (0) target = $region9
    $region8: #{one_neuron_forward.1} parent=1 // pred_region
      %s19 = ssub.s32 16, 16
      %20 = vsyncadd [#allocation4], %s19
      %s22 = sshll.u32 %s1, 4
      %s23 = int_to_ptr.vmem [resolvable:$true] %s22
      %25 = dma.vmem_to_smem %s23, 16, [#allocation2], [#allocation4]
    $region9: #{one_neuron_forward.1} parent=1 // pred_fallthru
      _
    // Predicated region
    $region10: #{one_neuron_forward.1} parent=1 // pred_check
      _
    $region11: #{one_neuron_forward.1} parent=1 // pred_check_branch
      %27 = sbr.rel (0) target = $region13
    $region12: #{one_neuron_forward.1} parent=1 // pred_region
      %s29 = ssub.s32 16, 16
      %30 = vsyncadd [#allocation6], %s29
      %s32 = sshll.u32 %s2, 4
      %s33 = int_to_ptr.vmem [resolvable:$true] %s32
      %35 = dma.vmem_to_smem %s33, 16, [#allocation5], [#allocation6]
    $region13: #{one_neuron_forward.1} parent=1 // pred_fallthru
      _
    // Predicated region
    $region14: #{one_neuron_forward.1} parent=1 // pred_check
      _
    $region15: #{one_neuron_forward.1} parent=1 // pred_check_branch
      %37 = sbr.rel (0) target = $region17
    $region16: #{one_neuron_forward.1} parent=1 // pred_region
      %s39 = ssub.s32 16, 16
      %40 = vsyncadd [#allocation6], %s39
      %s42 = sshll.u32 %s3, 4
      %s43 = int_to_ptr.vmem [resolvable:$true] %s42
      %45 = dma.vmem_to_smem %s43, 16, [#allocation7], [#allocation6]
    $region17: #{one_neuron_forward.1} parent=1 // pred_fallthru
      _
    // Predicated region
    $region18: #{one_neuron_forward.1} parent=1 // pred_check
      _
    $region19: #{one_neuron_forward.1} parent=1 // pred_check_branch
      %47 = sbr.rel (0) target = $region21
    $region20: #{one_neuron_forward.1} parent=1 // pred_region
      %s49 = ssub.s32 16, 16
      %50 = vsyncadd [#allocation9], %s49
      %s52 = sshll.u32 %s4, 4
      %s53 = int_to_ptr.vmem [resolvable:$true] %s52
      %55 = dma.vmem_to_smem %s53, 16, [#allocation8], [#allocation9]
    $region21: #{one_neuron_forward.1} parent=1 // pred_fallthru
      _
    // Predicated region
    $region22: #{one_neuron_forward.1} parent=1 // pred_check
      _
    $region23: #{one_neuron_forward.1} parent=1 // pred_check_branch
      %57 = sbr.rel (0) target = $region25
    $region24: #{one_neuron_forward.1} parent=1 // pred_region
      %58 = dma.done [#allocation4], 16
    $region25: #{one_neuron_forward.1} parent=1 // pred_fallthru
      _
    // Predicated region
    $region26: #{one_neuron_forward.1} parent=1 // pred_check
      _
    $region27: #{one_neuron_forward.1} parent=1 // pred_check_branch
      %60 = sbr.rel (0) target = $region29
    $region28: #{one_neuron_forward.1} parent=1 // pred_region
      %61 = dma.done [#allocation6], 16
    $region29: #{one_neuron_forward.1} parent=1 // pred_fallthru
      _
    // Predicated region
    $region30: #{one_neuron_forward.1} parent=1 // pred_check
      _
    $region31: #{one_neuron_forward.1} parent=1 // pred_check_branch
      %63 = sbr.rel (0) target = $region33
    $region32: #{one_neuron_forward.1} parent=1 // pred_region
      %64 = dma.done [#allocation6], 16
    $region33: #{one_neuron_forward.1} parent=1 // pred_fallthru
      _
    // Predicated region
    $region34: #{one_neuron_forward.1} parent=1 // pred_check
      _
    $region35: #{one_neuron_forward.1} parent=1 // pred_check_branch
      %66 = sbr.rel (0) target = $region37
    $region36: #{one_neuron_forward.1} parent=1 // pred_region
      %67 = dma.done [#allocation9], 16
    $region37: #{one_neuron_forward.1} parent=1 // pred_fallthru
      _
    %68 = sfence
    %s69 = sld [smem:[#allocation2]]
    %s70 = sld [smem:[#allocation2 + $0x1]]
    %s71 = sld [smem:[#allocation2 + $0x2]]
    %s72 = sld [smem:[#allocation2 + $0x3]]
    %s73 = sld [smem:[#allocation2 + $0x4]]
    %s74 = sld [smem:[#allocation2 + $0x5]]
    %s75 = sld [smem:[#allocation2 + $0x6]]
    %s76 = sld [smem:[#allocation2 + $0x7]]
    %s77 = sld [smem:[#allocation2 + $0x8]]
    %s78 = sld [smem:[#allocation2 + $0x9]]
    %s79 = sld [smem:[#allocation2 + $0xa]]
    %s80 = sld [smem:[#allocation2 + $0xb]]
    %s81 = sld [smem:[#allocation2 + $0xc]]
    %s82 = sld [smem:[#allocation2 + $0xd]]
    %s83 = sld [smem:[#allocation2 + $0xe]]
    %s84 = sld [smem:[#allocation2 + $0xf]]
    %s85 = sld [smem:[#allocation2 + $0x10]]
    %s86 = sld [smem:[#allocation2 + $0x11]]
    %s87 = sld [smem:[#allocation2 + $0x12]]
    %s88 = sld [smem:[#allocation2 + $0x13]]
    %s89 = sld [smem:[#allocation2 + $0x14]]
    %s90 = sld [smem:[#allocation2 + $0x15]]
    %s91 = sld [smem:[#allocation2 + $0x16]]
    %s92 = sld [smem:[#allocation2 + $0x17]]
    %s93 = sld [smem:[#allocation5]]
    %s94 = sld [smem:[#allocation5 + $0x1]]
    %s95 = sld [smem:[#allocation5 + $0x2]]
    %s96 = sld [smem:[#allocation5 + $0x3]]
    %s97 = sld [smem:[#allocation5 + $0x4]]
    %s98 = sld [smem:[#allocation5 + $0x5]]
    %s99 = sld [smem:[#allocation5 + $0x6]]
    %s100 = sld [smem:[#allocation5 + $0x7]]
    %s101 = sld [smem:[#allocation7]]
    %s102 = sld [smem:[#allocation7 + $0x1]]
    %s103 = sld [smem:[#allocation7 + $0x2]]
    %s104 = sld [smem:[#allocation7 + $0x3]]
    %s105 = sld [smem:[#allocation7 + $0x4]]
    %s106 = sld [smem:[#allocation7 + $0x5]]
    %s107 = sld [smem:[#allocation7 + $0x6]]
    %s108 = sld [smem:[#allocation7 + $0x7]]
    %s109 = sld [smem:[#allocation7 + $0x8]]
    %s110 = sld [smem:[#allocation7 + $0x9]]
    %s111 = sld [smem:[#allocation7 + $0xa]]
    %s112 = sld [smem:[#allocation7 + $0xb]]
    %s113 = sld [smem:[#allocation7 + $0xc]]
    %s114 = sld [smem:[#allocation7 + $0xd]]
    %s115 = sld [smem:[#allocation7 + $0xe]]
    %s116 = sld [smem:[#allocation7 + $0xf]]
    %s117 = sld [smem:[#allocation7 + $0x10]]
    %s118 = sld [smem:[#allocation7 + $0x11]]
    %s119 = sld [smem:[#allocation7 + $0x12]]
    %s120 = sld [smem:[#allocation7 + $0x13]]
    %s121 = sld [smem:[#allocation7 + $0x14]]
    %s122 = sld [smem:[#allocation7 + $0x15]]
    %s123 = sld [smem:[#allocation7 + $0x16]]
    %s124 = sld [smem:[#allocation7 + $0x17]]
    %s125 = sld [smem:[#allocation7 + $0x18]]
    %s126 = sld [smem:[#allocation7 + $0x19]]
    %s127 = sld [smem:[#allocation7 + $0x1a]]
    %s128 = sld [smem:[#allocation7 + $0x1b]]
    %s129 = sld [smem:[#allocation7 + $0x1c]]
    %s130 = sld [smem:[#allocation7 + $0x1d]]
    %s131 = sld [smem:[#allocation7 + $0x1e]]
    %s132 = sld [smem:[#allocation7 + $0x1f]]
    %s133 = sld [smem:[#allocation7 + $0x20]]
    %s134 = sld [smem:[#allocation7 + $0x21]]
    %s135 = sld [smem:[#allocation7 + $0x22]]
    %s136 = sld [smem:[#allocation7 + $0x23]]
    %s137 = sld [smem:[#allocation7 + $0x24]]
    %s138 = sld [smem:[#allocation7 + $0x25]]
    %s139 = sld [smem:[#allocation7 + $0x26]]
    %s140 = sld [smem:[#allocation7 + $0x27]]
    %s141 = sld [smem:[#allocation7 + $0x28]]
    %s142 = sld [smem:[#allocation7 + $0x29]]
    %s143 = sld [smem:[#allocation7 + $0x2a]]
    %s144 = sld [smem:[#allocation7 + $0x2b]]
    %s145 = sld [smem:[#allocation7 + $0x2c]]
    %s146 = sld [smem:[#allocation7 + $0x2d]]
    %s147 = sld [smem:[#allocation7 + $0x2e]]
    %s148 = sld [smem:[#allocation7 + $0x2f]]
    %s149 = sld [smem:[#allocation7 + $0x30]]
    %s150 = sld [smem:[#allocation7 + $0x31]]
    %s151 = sld [smem:[#allocation7 + $0x32]]
    %s152 = sld [smem:[#allocation7 + $0x33]]
    %s153 = sld [smem:[#allocation7 + $0x34]]
    %s154 = sld [smem:[#allocation7 + $0x35]]
    %s155 = sld [smem:[#allocation7 + $0x36]]
    %s156 = sld [smem:[#allocation7 + $0x37]]
    %s157 = sld [smem:[#allocation7 + $0x38]]
    %s158 = sld [smem:[#allocation7 + $0x39]]
    %s159 = sld [smem:[#allocation7 + $0x3a]]
    %s160 = sld [smem:[#allocation7 + $0x3b]]
    %s161 = sld [smem:[#allocation7 + $0x3c]]
    %s162 = sld [smem:[#allocation7 + $0x3d]]
    %s163 = sld [smem:[#allocation7 + $0x3e]]
    %s164 = sld [smem:[#allocation7 + $0x3f]]
    %s165 = sld [smem:[#allocation7 + $0x40]]
    %s166 = sld [smem:[#allocation7 + $0x41]]
    %s167 = sld [smem:[#allocation7 + $0x42]]
    %s168 = sld [smem:[#allocation7 + $0x43]]
    %s169 = sld [smem:[#allocation7 + $0x44]]
    %s170 = sld [smem:[#allocation7 + $0x45]]
    %s171 = sld [smem:[#allocation7 + $0x46]]
    %s172 = sld [smem:[#allocation7 + $0x47]]
    %s173 = sld [smem:[#allocation7 + $0x48]]
    %s174 = sld [smem:[#allocation7 + $0x49]]
    %s175 = sld [smem:[#allocation7 + $0x4a]]
    %s176 = sld [smem:[#allocation7 + $0x4b]]
    %s177 = sld [smem:[#allocation7 + $0x4c]]
    %s178 = sld [smem:[#allocation7 + $0x4d]]
    %s179 = sld [smem:[#allocation7 + $0x4e]]
    %s180 = sld [smem:[#allocation7 + $0x4f]]
    %s181 = sld [smem:[#allocation7 + $0x50]]
    %s182 = sld [smem:[#allocation7 + $0x51]]
    %s183 = sld [smem:[#allocation7 + $0x52]]
    %s184 = sld [smem:[#allocation7 + $0x53]]
    %s185 = sld [smem:[#allocation7 + $0x54]]
    %s186 = sld [smem:[#allocation7 + $0x55]]
    %s187 = sld [smem:[#allocation7 + $0x56]]
    %s188 = sld [smem:[#allocation7 + $0x57]]
    %s189 = sld [smem:[#allocation7 + $0x58]]
    %s190 = sld [smem:[#allocation7 + $0x59]]
    %s191 = sld [smem:[#allocation7 + $0x5a]]
    %s192 = sld [smem:[#allocation7 + $0x5b]]
    %s193 = sld [smem:[#allocation7 + $0x5c]]
    %s194 = sld [smem:[#allocation7 + $0x5d]]
    %s195 = sld [smem:[#allocation7 + $0x5e]]
    %s196 = sld [smem:[#allocation7 + $0x5f]]
    %s197 = sld [smem:[#allocation8]]
    %s198 = sld [smem:[#allocation8 + $0x1]]
    %s199 = sld [smem:[#allocation8 + $0x2]]
    %s200 = sld [smem:[#allocation8 + $0x3]]
    %v201 = vld [vmem:[%s0] sm:$0x3]
    %vm202 = vcmask 123904
    %203 = vst.msk [vmem:[#allocation10] sm:$0x3] %vm202, %v201
    %v204 = vld [vmem:[#allocation10] sm:$0x3]
    %v205 = vstv %s69
    %v206 = vmul.f32 %v204, %v205
    %v207 = vstv %s70
    %v208 = vmul.f32 %v204, %v207
    %210 = vrot.lane.b32.xlu0 %v208, 127
    %v211 = vpop.permute.xlu0 %210
    %v213 = vadd.f32 %v206, %v211
    %v214 = vstv %s71
    %v215 = vmul.f32 %v204, %v214
    %217 = vrot.lane.b32.xlu0 %v215, 126
    %v218 = vpop.permute.xlu0 %217
    %v220 = vadd.f32 %v213, %v218
    %v221 = vstv %s93
    %v222 = vadd.f32 %v220, %v221
    %v223 = vmax.f32 %v222, 0.0
    %v224 = vstv %s72
    %v225 = vmul.f32 %v204, %v224
    %v226 = vstv %s73
    %v227 = vmul.f32 %v204, %v226
    %229 = vrot.lane.b32.xlu0 %v227, 127
    %v230 = vpop.permute.xlu0 %229
    %v232 = vadd.f32 %v225, %v230
    %v233 = vstv %s74
    %v234 = vmul.f32 %v204, %v233
    %236 = vrot.lane.b32.xlu0 %v234, 126
    %v237 = vpop.permute.xlu0 %236
    %v239 = vadd.f32 %v232, %v237
    %v240 = vstv %s94
    %v241 = vadd.f32 %v239, %v240
    %v242 = vmax.f32 %v241, 0.0
    %v243 = vstv %s75
    %v244 = vmul.f32 %v204, %v243
    %v245 = vstv %s76
    %v246 = vmul.f32 %v204, %v245
    %248 = vrot.lane.b32.xlu0 %v246, 127
    %v249 = vpop.permute.xlu0 %248
    %v251 = vadd.f32 %v244, %v249
    %v252 = vstv %s77
    %v253 = vmul.f32 %v204, %v252
    %255 = vrot.lane.b32.xlu0 %v253, 126
    %v256 = vpop.permute.xlu0 %255
    %v258 = vadd.f32 %v251, %v256
    %v259 = vstv %s95
    %v260 = vadd.f32 %v258, %v259
    %v261 = vmax.f32 %v260, 0.0
    %v262 = vstv %s78
    %v263 = vmul.f32 %v204, %v262
    %v264 = vstv %s79
    %v265 = vmul.f32 %v204, %v264
    %267 = vrot.lane.b32.xlu0 %v265, 127
    %v268 = vpop.permute.xlu0 %267
    %v270 = vadd.f32 %v263, %v268
    %v271 = vstv %s80
    %v272 = vmul.f32 %v204, %v271
    %274 = vrot.lane.b32.xlu0 %v272, 126
    %v275 = vpop.permute.xlu0 %274
    %v277 = vadd.f32 %v270, %v275
    %v278 = vstv %s96
    %v279 = vadd.f32 %v277, %v278
    %v280 = vmax.f32 %v279, 0.0
    %v281 = vstv %s81
    %v282 = vmul.f32 %v204, %v281
    %v283 = vstv %s82
    %v284 = vmul.f32 %v204, %v283
    %286 = vrot.lane.b32.xlu0 %v284, 127
    %v287 = vpop.permute.xlu0 %286
    %v289 = vadd.f32 %v282, %v287
    %v290 = vstv %s83
    %v291 = vmul.f32 %v204, %v290
    %293 = vrot.lane.b32.xlu0 %v291, 126
    %v294 = vpop.permute.xlu0 %293
    %v296 = vadd.f32 %v289, %v294
    %v297 = vstv %s97
    %v298 = vadd.f32 %v296, %v297
    %v299 = vmax.f32 %v298, 0.0
    %v300 = vstv %s84
    %v301 = vmul.f32 %v204, %v300
    %v302 = vstv %s85
    %v303 = vmul.f32 %v204, %v302
    %305 = vrot.lane.b32.xlu0 %v303, 127
    %v306 = vpop.permute.xlu0 %305
    %v308 = vadd.f32 %v301, %v306
    %v309 = vstv %s86
    %v310 = vmul.f32 %v204, %v309
    %312 = vrot.lane.b32.xlu0 %v310, 126
    %v313 = vpop.permute.xlu0 %312
    %v315 = vadd.f32 %v308, %v313
    %v316 = vstv %s98
    %v317 = vadd.f32 %v315, %v316
    %v318 = vmax.f32 %v317, 0.0
    %v319 = vstv %s87
    %v320 = vmul.f32 %v204, %v319
    %v321 = vstv %s88
    %v322 = vmul.f32 %v204, %v321
    %324 = vrot.lane.b32.xlu0 %v322, 127
    %v325 = vpop.permute.xlu0 %324
    %v327 = vadd.f32 %v320, %v325
    %v328 = vstv %s89
    %v329 = vmul.f32 %v204, %v328
    %331 = vrot.lane.b32.xlu0 %v329, 126
    %v332 = vpop.permute.xlu0 %331
    %v334 = vadd.f32 %v327, %v332
    %v335 = vstv %s99
    %v336 = vadd.f32 %v334, %v335
    %v337 = vmax.f32 %v336, 0.0
    %v338 = vstv %s90
    %v339 = vmul.f32 %v204, %v338
    %v340 = vstv %s91
    %v341 = vmul.f32 %v204, %v340
    %343 = vrot.lane.b32.xlu0 %v341, 127
    %v344 = vpop.permute.xlu0 %343
    %v346 = vadd.f32 %v339, %v344
    %v347 = vstv %s92
    %v348 = vmul.f32 %v204, %v347
    %350 = vrot.lane.b32.xlu0 %v348, 126
    %v351 = vpop.permute.xlu0 %350
    %v353 = vadd.f32 %v346, %v351
    %v354 = vstv %s100
    %v355 = vadd.f32 %v353, %v354
    %v356 = vmax.f32 %v355, 0.0
    %v357 = vstv %s101
    %v358 = vmul.f32 %v223, %v357
    %v359 = vstv %s102
    %v360 = vmul.f32 %v223, %v359
    %362 = vrot.lane.b32.xlu0 %v360, 127
    %v363 = vpop.permute.xlu0 %362
    %v365 = vadd.f32 %v358, %v363
    %v366 = vstv %s103
    %v367 = vmul.f32 %v223, %v366
    %369 = vrot.lane.b32.xlu0 %v367, 126
    %v370 = vpop.permute.xlu0 %369
    %v372 = vadd.f32 %v365, %v370
    %v373 = vstv %s104
    %v374 = vmul.f32 %v242, %v373
    %v375 = vadd.f32 %v372, %v374
    %v376 = vstv %s105
    %v377 = vmul.f32 %v242, %v376
    %379 = vrot.lane.b32.xlu0 %v377, 127
    %v380 = vpop.permute.xlu0 %379
    %v382 = vadd.f32 %v375, %v380
    %v383 = vstv %s106
    %v384 = vmul.f32 %v242, %v383
    %386 = vrot.lane.b32.xlu0 %v384, 126
    %v387 = vpop.permute.xlu0 %386
    %v389 = vadd.f32 %v382, %v387
    %v390 = vstv %s107
    %v391 = vmul.f32 %v261, %v390
    %v392 = vadd.f32 %v389, %v391
    %v393 = vstv %s108
    %v394 = vmul.f32 %v261, %v393
    %396 = vrot.lane.b32.xlu0 %v394, 127
    %v397 = vpop.permute.xlu0 %396
    %v399 = vadd.f32 %v392, %v397
    %v400 = vstv %s109
    %v401 = vmul.f32 %v261, %v400
    %403 = vrot.lane.b32.xlu0 %v401, 126
    %v404 = vpop.permute.xlu0 %403
    %v406 = vadd.f32 %v399, %v404
    %v407 = vstv %s110
    %v408 = vmul.f32 %v280, %v407
    %v409 = vadd.f32 %v406, %v408
    %v410 = vstv %s111
    %v411 = vmul.f32 %v280, %v410
    %413 = vrot.lane.b32.xlu0 %v411, 127
    %v414 = vpop.permute.xlu0 %413
    %v416 = vadd.f32 %v409, %v414
    %v417 = vstv %s112
    %v418 = vmul.f32 %v280, %v417
    %420 = vrot.lane.b32.xlu0 %v418, 126
    %v421 = vpop.permute.xlu0 %420
    %v423 = vadd.f32 %v416, %v421
    %v424 = vstv %s113
    %v425 = vmul.f32 %v299, %v424
    %v426 = vadd.f32 %v423, %v425
    %v427 = vstv %s114
    %v428 = vmul.f32 %v299, %v427
    %430 = vrot.lane.b32.xlu0 %v428, 127
    %v431 = vpop.permute.xlu0 %430
    %v433 = vadd.f32 %v426, %v431
    %v434 = vstv %s115
    %v435 = vmul.f32 %v299, %v434
    %437 = vrot.lane.b32.xlu0 %v435, 126
    %v438 = vpop.permute.xlu0 %437
    %v440 = vadd.f32 %v433, %v438
    %v441 = vstv %s116
    %v442 = vmul.f32 %v318, %v441
    %v443 = vadd.f32 %v440, %v442
    %v444 = vstv %s117
    %v445 = vmul.f32 %v318, %v444
    %447 = vrot.lane.b32.xlu0 %v445, 127
    %v448 = vpop.permute.xlu0 %447
    %v450 = vadd.f32 %v443, %v448
    %v451 = vstv %s118
    %v452 = vmul.f32 %v318, %v451
    %454 = vrot.lane.b32.xlu0 %v452, 126
    %v455 = vpop.permute.xlu0 %454
    %v457 = vadd.f32 %v450, %v455
    %v458 = vstv %s119
    %v459 = vmul.f32 %v337, %v458
    %v460 = vadd.f32 %v457, %v459
    %v461 = vstv %s120
    %v462 = vmul.f32 %v337, %v461
    %464 = vrot.lane.b32.xlu0 %v462, 127
    %v465 = vpop.permute.xlu0 %464
    %v467 = vadd.f32 %v460, %v465
    %v468 = vstv %s121
    %v469 = vmul.f32 %v337, %v468
    %471 = vrot.lane.b32.xlu0 %v469, 126
    %v472 = vpop.permute.xlu0 %471
    %v474 = vadd.f32 %v467, %v472
    %v475 = vstv %s122
    %v476 = vmul.f32 %v356, %v475
    %v477 = vadd.f32 %v474, %v476
    %v478 = vstv %s123
    %v479 = vmul.f32 %v356, %v478
    %481 = vrot.lane.b32.xlu0 %v479, 127
    %v482 = vpop.permute.xlu0 %481
    %v484 = vadd.f32 %v477, %v482
    %v485 = vstv %s124
    %v486 = vmul.f32 %v356, %v485
    %488 = vrot.lane.b32.xlu0 %v486, 126
    %v489 = vpop.permute.xlu0 %488
    %v491 = vadd.f32 %v484, %v489
    %v492 = vstv %s197
    %v493 = vadd.f32 %v491, %v492
    %v494 = vmax.f32 %v493, 0.0
    %v495 = vstv %s125
    %v496 = vmul.f32 %v223, %v495
    %v497 = vstv %s126
    %v498 = vmul.f32 %v223, %v497
    %500 = vrot.lane.b32.xlu0 %v498, 127
    %v501 = vpop.permute.xlu0 %500
    %v503 = vadd.f32 %v496, %v501
    %v504 = vstv %s127
    %v505 = vmul.f32 %v223, %v504
    %507 = vrot.lane.b32.xlu0 %v505, 126
    %v508 = vpop.permute.xlu0 %507
    %v510 = vadd.f32 %v503, %v508
    %v511 = vstv %s128
    %v512 = vmul.f32 %v242, %v511
    %v513 = vadd.f32 %v510, %v512
    %v514 = vstv %s129
    %v515 = vmul.f32 %v242, %v514
    %517 = vrot.lane.b32.xlu0 %v515, 127
    %v518 = vpop.permute.xlu0 %517
    %v520 = vadd.f32 %v513, %v518
    %v521 = vstv %s130
    %v522 = vmul.f32 %v242, %v521
    %524 = vrot.lane.b32.xlu0 %v522, 126
    %v525 = vpop.permute.xlu0 %524
    %v527 = vadd.f32 %v520, %v525
    %v528 = vstv %s131
    %v529 = vmul.f32 %v261, %v528
    %v530 = vadd.f32 %v527, %v529
    %v531 = vstv %s132
    %v532 = vmul.f32 %v261, %v531
    %534 = vrot.lane.b32.xlu0 %v532, 127
    %v535 = vpop.permute.xlu0 %534
    %v537 = vadd.f32 %v530, %v535
    %v538 = vstv %s133
    %v539 = vmul.f32 %v261, %v538
    %541 = vrot.lane.b32.xlu0 %v539, 126
    %v542 = vpop.permute.xlu0 %541
    %v544 = vadd.f32 %v537, %v542
    %v545 = vstv %s134
    %v546 = vmul.f32 %v280, %v545
    %v547 = vadd.f32 %v544, %v546
    %v548 = vstv %s135
    %v549 = vmul.f32 %v280, %v548
    %551 = vrot.lane.b32.xlu0 %v549, 127
    %v552 = vpop.permute.xlu0 %551
    %v554 = vadd.f32 %v547, %v552
    %v555 = vstv %s136
    %v556 = vmul.f32 %v280, %v555
    %558 = vrot.lane.b32.xlu0 %v556, 126
    %v559 = vpop.permute.xlu0 %558
    %v561 = vadd.f32 %v554, %v559
    %v562 = vstv %s137
    %v563 = vmul.f32 %v299, %v562
    %v564 = vadd.f32 %v561, %v563
    %v565 = vstv %s138
    %v566 = vmul.f32 %v299, %v565
    %568 = vrot.lane.b32.xlu0 %v566, 127
    %v569 = vpop.permute.xlu0 %568
    %v571 = vadd.f32 %v564, %v569
    %v572 = vstv %s139
    %v573 = vmul.f32 %v299, %v572
    %575 = vrot.lane.b32.xlu0 %v573, 126
    %v576 = vpop.permute.xlu0 %575
    %v578 = vadd.f32 %v571, %v576
    %v579 = vstv %s140
    %v580 = vmul.f32 %v318, %v579
    %v581 = vadd.f32 %v578, %v580
    %v582 = vstv %s141
    %v583 = vmul.f32 %v318, %v582
    %585 = vrot.lane.b32.xlu0 %v583, 127
    %v586 = vpop.permute.xlu0 %585
    %v588 = vadd.f32 %v581, %v586
    %v589 = vstv %s142
    %v590 = vmul.f32 %v318, %v589
    %592 = vrot.lane.b32.xlu0 %v590, 126
    %v593 = vpop.permute.xlu0 %592
    %v595 = vadd.f32 %v588, %v593
    %v596 = vstv %s143
    %v597 = vmul.f32 %v337, %v596
    %v598 = vadd.f32 %v595, %v597
    %v599 = vstv %s144
    %v600 = vmul.f32 %v337, %v599
    %602 = vrot.lane.b32.xlu0 %v600, 127
    %v603 = vpop.permute.xlu0 %602
    %v605 = vadd.f32 %v598, %v603
    %v606 = vstv %s145
    %v607 = vmul.f32 %v337, %v606
    %609 = vrot.lane.b32.xlu0 %v607, 126
    %v610 = vpop.permute.xlu0 %609
    %v612 = vadd.f32 %v605, %v610
    %v613 = vstv %s146
    %v614 = vmul.f32 %v356, %v613
    %v615 = vadd.f32 %v612, %v614
    %v616 = vstv %s147
    %v617 = vmul.f32 %v356, %v616
    %619 = vrot.lane.b32.xlu0 %v617, 127
    %v620 = vpop.permute.xlu0 %619
    %v622 = vadd.f32 %v615, %v620
    %v623 = vstv %s148
    %v624 = vmul.f32 %v356, %v623
    %626 = vrot.lane.b32.xlu0 %v624, 126
    %v627 = vpop.permute.xlu0 %626
    %v629 = vadd.f32 %v622, %v627
    %v630 = vstv %s198
    %v631 = vadd.f32 %v629, %v630
    %v632 = vmax.f32 %v631, 0.0
    %v633 = vadd.f32 %v494, %v632
    %v634 = vstv %s149
    %v635 = vmul.f32 %v223, %v634
    %v636 = vstv %s150
    %v637 = vmul.f32 %v223, %v636
    %639 = vrot.lane.b32.xlu0 %v637, 127
    %v640 = vpop.permute.xlu0 %639
    %v642 = vadd.f32 %v635, %v640
    %v643 = vstv %s151
    %v644 = vmul.f32 %v223, %v643
    %646 = vrot.lane.b32.xlu0 %v644, 126
    %v647 = vpop.permute.xlu0 %646
    %v649 = vadd.f32 %v642, %v647
    %v650 = vstv %s152
    %v651 = vmul.f32 %v242, %v650
    %v652 = vadd.f32 %v649, %v651
    %v653 = vstv %s153
    %v654 = vmul.f32 %v242, %v653
    %656 = vrot.lane.b32.xlu0 %v654, 127
    %v657 = vpop.permute.xlu0 %656
    %v659 = vadd.f32 %v652, %v657
    %v660 = vstv %s154
    %v661 = vmul.f32 %v242, %v660
    %663 = vrot.lane.b32.xlu0 %v661, 126
    %v664 = vpop.permute.xlu0 %663
    %v666 = vadd.f32 %v659, %v664
    %v667 = vstv %s155
    %v668 = vmul.f32 %v261, %v667
    %v669 = vadd.f32 %v666, %v668
    %v670 = vstv %s156
    %v671 = vmul.f32 %v261, %v670
    %673 = vrot.lane.b32.xlu0 %v671, 127
    %v674 = vpop.permute.xlu0 %673
    %v676 = vadd.f32 %v669, %v674
    %v677 = vstv %s157
    %v678 = vmul.f32 %v261, %v677
    %680 = vrot.lane.b32.xlu0 %v678, 126
    %v681 = vpop.permute.xlu0 %680
    %v683 = vadd.f32 %v676, %v681
    %v684 = vstv %s158
    %v685 = vmul.f32 %v280, %v684
    %v686 = vadd.f32 %v683, %v685
    %v687 = vstv %s159
    %v688 = vmul.f32 %v280, %v687
    %690 = vrot.lane.b32.xlu0 %v688, 127
    %v691 = vpop.permute.xlu0 %690
    %v693 = vadd.f32 %v686, %v691
    %v694 = vstv %s160
    %v695 = vmul.f32 %v280, %v694
    %697 = vrot.lane.b32.xlu0 %v695, 126
    %v698 = vpop.permute.xlu0 %697
    %v700 = vadd.f32 %v693, %v698
    %v701 = vstv %s161
    %v702 = vmul.f32 %v299, %v701
    %v703 = vadd.f32 %v700, %v702
    %v704 = vstv %s162
    %v705 = vmul.f32 %v299, %v704
    %707 = vrot.lane.b32.xlu0 %v705, 127
    %v708 = vpop.permute.xlu0 %707
    %v710 = vadd.f32 %v703, %v708
    %v711 = vstv %s163
    %v712 = vmul.f32 %v299, %v711
    %714 = vrot.lane.b32.xlu0 %v712, 126
    %v715 = vpop.permute.xlu0 %714
    %v717 = vadd.f32 %v710, %v715
    %v718 = vstv %s164
    %v719 = vmul.f32 %v318, %v718
    %v720 = vadd.f32 %v717, %v719
    %v721 = vstv %s165
    %v722 = vmul.f32 %v318, %v721
    %724 = vrot.lane.b32.xlu0 %v722, 127
    %v725 = vpop.permute.xlu0 %724
    %v727 = vadd.f32 %v720, %v725
    %v728 = vstv %s166
    %v729 = vmul.f32 %v318, %v728
    %731 = vrot.lane.b32.xlu0 %v729, 126
    %v732 = vpop.permute.xlu0 %731
    %v734 = vadd.f32 %v727, %v732
    %v735 = vstv %s167
    %v736 = vmul.f32 %v337, %v735
    %v737 = vadd.f32 %v734, %v736
    %v738 = vstv %s168
    %v739 = vmul.f32 %v337, %v738
    %741 = vrot.lane.b32.xlu0 %v739, 127
    %v742 = vpop.permute.xlu0 %741
    %v744 = vadd.f32 %v737, %v742
    %v745 = vstv %s169
    %v746 = vmul.f32 %v337, %v745
    %748 = vrot.lane.b32.xlu0 %v746, 126
    %v749 = vpop.permute.xlu0 %748
    %v751 = vadd.f32 %v744, %v749
    %v752 = vstv %s170
    %v753 = vmul.f32 %v356, %v752
    %v754 = vadd.f32 %v751, %v753
    %v755 = vstv %s171
    %v756 = vmul.f32 %v356, %v755
    %758 = vrot.lane.b32.xlu0 %v756, 127
    %v759 = vpop.permute.xlu0 %758
    %v761 = vadd.f32 %v754, %v759
    %v762 = vstv %s172
    %v763 = vmul.f32 %v356, %v762
    %765 = vrot.lane.b32.xlu0 %v763, 126
    %v766 = vpop.permute.xlu0 %765
    %v768 = vadd.f32 %v761, %v766
    %v769 = vstv %s199
    %v770 = vadd.f32 %v768, %v769
    %v771 = vmax.f32 %v770, 0.0
    %v772 = vadd.f32 %v633, %v771
    %v773 = vstv %s173
    %v774 = vmul.f32 %v223, %v773
    %v775 = vstv %s174
    %v776 = vmul.f32 %v223, %v775
    %778 = vrot.lane.b32.xlu0 %v776, 127
    %v779 = vpop.permute.xlu0 %778
    %v781 = vadd.f32 %v774, %v779
    %v782 = vstv %s175
    %v783 = vmul.f32 %v223, %v782
    %785 = vrot.lane.b32.xlu0 %v783, 126
    %v786 = vpop.permute.xlu0 %785
    %v788 = vadd.f32 %v781, %v786
    %v789 = vstv %s176
    %v790 = vmul.f32 %v242, %v789
    %v791 = vadd.f32 %v788, %v790
    %v792 = vstv %s177
    %v793 = vmul.f32 %v242, %v792
    %795 = vrot.lane.b32.xlu0 %v793, 127
    %v796 = vpop.permute.xlu0 %795
    %v798 = vadd.f32 %v791, %v796
    %v799 = vstv %s178
    %v800 = vmul.f32 %v242, %v799
    %802 = vrot.lane.b32.xlu0 %v800, 126
    %v803 = vpop.permute.xlu0 %802
    %v805 = vadd.f32 %v798, %v803
    %v806 = vstv %s179
    %v807 = vmul.f32 %v261, %v806
    %v808 = vadd.f32 %v805, %v807
    %v809 = vstv %s180
    %v810 = vmul.f32 %v261, %v809
    %812 = vrot.lane.b32.xlu0 %v810, 127
    %v813 = vpop.permute.xlu0 %812
    %v815 = vadd.f32 %v808, %v813
    %v816 = vstv %s181
    %v817 = vmul.f32 %v261, %v816
    %819 = vrot.lane.b32.xlu0 %v817, 126
    %v820 = vpop.permute.xlu0 %819
    %v822 = vadd.f32 %v815, %v820
    %v823 = vstv %s182
    %v824 = vmul.f32 %v280, %v823
    %v825 = vadd.f32 %v822, %v824
    %v826 = vstv %s183
    %v827 = vmul.f32 %v280, %v826
    %829 = vrot.lane.b32.xlu0 %v827, 127
    %v830 = vpop.permute.xlu0 %829
    %v832 = vadd.f32 %v825, %v830
    %v833 = vstv %s184
    %v834 = vmul.f32 %v280, %v833
    %836 = vrot.lane.b32.xlu0 %v834, 126
    %v837 = vpop.permute.xlu0 %836
    %v839 = vadd.f32 %v832, %v837
    %v840 = vstv %s185
    %v841 = vmul.f32 %v299, %v840
    %v842 = vadd.f32 %v839, %v841
    %v843 = vstv %s186
    %v844 = vmul.f32 %v299, %v843
    %846 = vrot.lane.b32.xlu0 %v844, 127
    %v847 = vpop.permute.xlu0 %846
    %v849 = vadd.f32 %v842, %v847
    %v850 = vstv %s187
    %v851 = vmul.f32 %v299, %v850
    %853 = vrot.lane.b32.xlu0 %v851, 126
    %v854 = vpop.permute.xlu0 %853
    %v856 = vadd.f32 %v849, %v854
    %v857 = vstv %s188
    %v858 = vmul.f32 %v318, %v857
    %v859 = vadd.f32 %v856, %v858
    %v860 = vstv %s189
    %v861 = vmul.f32 %v318, %v860
    %863 = vrot.lane.b32.xlu0 %v861, 127
    %v864 = vpop.permute.xlu0 %863
    %v866 = vadd.f32 %v859, %v864
    %v867 = vstv %s190
    %v868 = vmul.f32 %v318, %v867
    %870 = vrot.lane.b32.xlu0 %v868, 126
    %v871 = vpop.permute.xlu0 %870
    %v873 = vadd.f32 %v866, %v871
    %v874 = vstv %s191
    %v875 = vmul.f32 %v337, %v874
    %v876 = vadd.f32 %v873, %v875
    %v877 = vstv %s192
    %v878 = vmul.f32 %v337, %v877
    %880 = vrot.lane.b32.xlu0 %v878, 127
    %v881 = vpop.permute.xlu0 %880
    %v883 = vadd.f32 %v876, %v881
    %v884 = vstv %s193
    %v885 = vmul.f32 %v337, %v884
    %887 = vrot.lane.b32.xlu0 %v885, 126
    %v888 = vpop.permute.xlu0 %887
    %v890 = vadd.f32 %v883, %v888
    %v891 = vstv %s194
    %v892 = vmul.f32 %v356, %v891
    %v893 = vadd.f32 %v890, %v892
    %v894 = vstv %s195
    %v895 = vmul.f32 %v356, %v894
    %897 = vrot.lane.b32.xlu0 %v895, 127
    %v898 = vpop.permute.xlu0 %897
    %v900 = vadd.f32 %v893, %v898
    %v901 = vstv %s196
    %v902 = vmul.f32 %v356, %v901
    %904 = vrot.lane.b32.xlu0 %v902, 126
    %v905 = vpop.permute.xlu0 %904
    %v907 = vadd.f32 %v900, %v905
    %v908 = vstv %s200
    %v909 = vadd.f32 %v907, %v908
    %v910 = vmax.f32 %v909, 0.0
    %v911 = vadd.f32 %v772, %v910
    %v912 = vmul.f32 %v911, 0.25
    %914 = vrot.lane.b32.xlu0 %v912, 16
    %v915 = vpop.permute.xlu0 %914
    %vm917 = vcmask 222336
    %918 = vst.msk [vmem:[#allocation10] sm:$0x3] %vm917, %v915
    %v919 = vld [vmem:[#allocation10] sm:$0x3]
    %v920 = vmul.f32 %v919, %v205
    %v921 = vmul.f32 %v919, %v207
    %923 = vrot.lane.b32.xlu0 %v921, 127
    %v924 = vpop.permute.xlu0 %923
    %v926 = vadd.f32 %v920, %v924
    %v927 = vmul.f32 %v919, %v214
    %929 = vrot.lane.b32.xlu0 %v927, 126
    %v930 = vpop.permute.xlu0 %929
    %v932 = vadd.f32 %v926, %v930
    %v933 = vadd.f32 %v932, %v221
    %v934 = vmax.f32 %v933, 0.0
    %v935 = vmul.f32 %v919, %v224
    %v936 = vmul.f32 %v919, %v226
    %938 = vrot.lane.b32.xlu0 %v936, 127
    %v939 = vpop.permute.xlu0 %938
    %v941 = vadd.f32 %v935, %v939
    %v942 = vmul.f32 %v919, %v233
    %944 = vrot.lane.b32.xlu0 %v942, 126
    %v945 = vpop.permute.xlu0 %944
    %v947 = vadd.f32 %v941, %v945
    %v948 = vadd.f32 %v947, %v240
    %v949 = vmax.f32 %v948, 0.0
    %v950 = vmul.f32 %v919, %v243
    %v951 = vmul.f32 %v919, %v245
    %953 = vrot.lane.b32.xlu0 %v951, 127
    %v954 = vpop.permute.xlu0 %953
    %v956 = vadd.f32 %v950, %v954
    %v957 = vmul.f32 %v919, %v252
    %959 = vrot.lane.b32.xlu0 %v957, 126
    %v960 = vpop.permute.xlu0 %959
    %v962 = vadd.f32 %v956, %v960
    %v963 = vadd.f32 %v962, %v259
    %v964 = vmax.f32 %v963, 0.0
    %v965 = vmul.f32 %v919, %v262
    %v966 = vmul.f32 %v919, %v264
    %968 = vrot.lane.b32.xlu0 %v966, 127
    %v969 = vpop.permute.xlu0 %968
    %v971 = vadd.f32 %v965, %v969
    %v972 = vmul.f32 %v919, %v271
    %974 = vrot.lane.b32.xlu0 %v972, 126
    %v975 = vpop.permute.xlu0 %974
    %v977 = vadd.f32 %v971, %v975
    %v978 = vadd.f32 %v977, %v278
    %v979 = vmax.f32 %v978, 0.0
    %v980 = vmul.f32 %v919, %v281
    %v981 = vmul.f32 %v919, %v283
    %983 = vrot.lane.b32.xlu0 %v981, 127
    %v984 = vpop.permute.xlu0 %983
    %v986 = vadd.f32 %v980, %v984
    %v987 = vmul.f32 %v919, %v290
    %989 = vrot.lane.b32.xlu0 %v987, 126
    %v990 = vpop.permute.xlu0 %989
    %v992 = vadd.f32 %v986, %v990
    %v993 = vadd.f32 %v992, %v297
    %v994 = vmax.f32 %v993, 0.0
    %v995 = vmul.f32 %v919, %v300
    %v996 = vmul.f32 %v919, %v302
    %998 = vrot.lane.b32.xlu0 %v996, 127
    %v999 = vpop.permute.xlu0 %998
    %v1001 = vadd.f32 %v995, %v999
    %v1002 = vmul.f32 %v919, %v309
    %1004 = vrot.lane.b32.xlu0 %v1002, 126
    %v1005 = vpop.permute.xlu0 %1004
    %v1007 = vadd.f32 %v1001, %v1005
    %v1008 = vadd.f32 %v1007, %v316
    %v1009 = vmax.f32 %v1008, 0.0
    %v1010 = vmul.f32 %v919, %v319
    %v1011 = vmul.f32 %v919, %v321
    %1013 = vrot.lane.b32.xlu0 %v1011, 127
    %v1014 = vpop.permute.xlu0 %1013
    %v1016 = vadd.f32 %v1010, %v1014
    %v1017 = vmul.f32 %v919, %v328
    %1019 = vrot.lane.b32.xlu0 %v1017, 126
    %v1020 = vpop.permute.xlu0 %1019
    %v1022 = vadd.f32 %v1016, %v1020
    %v1023 = vadd.f32 %v1022, %v335
    %v1024 = vmax.f32 %v1023, 0.0
    %v1025 = vmul.f32 %v919, %v338
    %v1026 = vmul.f32 %v919, %v340
    %1028 = vrot.lane.b32.xlu0 %v1026, 127
    %v1029 = vpop.permute.xlu0 %1028
    %v1031 = vadd.f32 %v1025, %v1029
    %v1032 = vmul.f32 %v919, %v347
    %1034 = vrot.lane.b32.xlu0 %v1032, 126
    %v1035 = vpop.permute.xlu0 %1034
    %v1037 = vadd.f32 %v1031, %v1035
    %v1038 = vadd.f32 %v1037, %v354
    %v1039 = vmax.f32 %v1038, 0.0
    %v1040 = vmul.f32 %v934, %v357
    %v1041 = vmul.f32 %v934, %v359
    %1043 = vrot.lane.b32.xlu0 %v1041, 127
    %v1044 = vpop.permute.xlu0 %1043
    %v1046 = vadd.f32 %v1040, %v1044
    %v1047 = vmul.f32 %v934, %v366
    %1049 = vrot.lane.b32.xlu0 %v1047, 126
    %v1050 = vpop.permute.xlu0 %1049
    %v1052 = vadd.f32 %v1046, %v1050
    %v1053 = vmul.f32 %v949, %v373
    %v1054 = vadd.f32 %v1052, %v1053
    %v1055 = vmul.f32 %v949, %v376
    %1057 = vrot.lane.b32.xlu0 %v1055, 127
    %v1058 = vpop.permute.xlu0 %1057
    %v1060 = vadd.f32 %v1054, %v1058
    %v1061 = vmul.f32 %v949, %v383
    %1063 = vrot.lane.b32.xlu0 %v1061, 126
    %v1064 = vpop.permute.xlu0 %1063
    %v1066 = vadd.f32 %v1060, %v1064
    %v1067 = vmul.f32 %v964, %v390
    %v1068 = vadd.f32 %v1066, %v1067
    %v1069 = vmul.f32 %v964, %v393
    %1071 = vrot.lane.b32.xlu0 %v1069, 127
    %v1072 = vpop.permute.xlu0 %1071
    %v1074 = vadd.f32 %v1068, %v1072
    %v1075 = vmul.f32 %v964, %v400
    %1077 = vrot.lane.b32.xlu0 %v1075, 126
    %v1078 = vpop.permute.xlu0 %1077
    %v1080 = vadd.f32 %v1074, %v1078
    %v1081 = vmul.f32 %v979, %v407
    %v1082 = vadd.f32 %v1080, %v1081
    %v1083 = vmul.f32 %v979, %v410
    %1085 = vrot.lane.b32.xlu0 %v1083, 127
    %v1086 = vpop.permute.xlu0 %1085
    %v1088 = vadd.f32 %v1082, %v1086
    %v1089 = vmul.f32 %v979, %v417
    %1091 = vrot.lane.b32.xlu0 %v1089, 126
    %v1092 = vpop.permute.xlu0 %1091
    %v1094 = vadd.f32 %v1088, %v1092
    %v1095 = vmul.f32 %v994, %v424
    %v1096 = vadd.f32 %v1094, %v1095
    %v1097 = vmul.f32 %v994, %v427
    %1099 = vrot.lane.b32.xlu0 %v1097, 127
    %v1100 = vpop.permute.xlu0 %1099
    %v1102 = vadd.f32 %v1096, %v1100
    %v1103 = vmul.f32 %v994, %v434
    %1105 = vrot.lane.b32.xlu0 %v1103, 126
    %v1106 = vpop.permute.xlu0 %1105
    %v1108 = vadd.f32 %v1102, %v1106
    %v1109 = vmul.f32 %v1009, %v441
    %v1110 = vadd.f32 %v1108, %v1109
    %v1111 = vmul.f32 %v1009, %v444
    %1113 = vrot.lane.b32.xlu0 %v1111, 127
    %v1114 = vpop.permute.xlu0 %1113
    %v1116 = vadd.f32 %v1110, %v1114
    %v1117 = vmul.f32 %v1009, %v451
    %1119 = vrot.lane.b32.xlu0 %v1117, 126
    %v1120 = vpop.permute.xlu0 %1119
    %v1122 = vadd.f32 %v1116, %v1120
    %v1123 = vmul.f32 %v1024, %v458
    %v1124 = vadd.f32 %v1122, %v1123
    %v1125 = vmul.f32 %v1024, %v461
    %1127 = vrot.lane.b32.xlu0 %v1125, 127
    %v1128 = vpop.permute.xlu0 %1127
    %v1130 = vadd.f32 %v1124, %v1128
    %v1131 = vmul.f32 %v1024, %v468
    %1133 = vrot.lane.b32.xlu0 %v1131, 126
    %v1134 = vpop.permute.xlu0 %1133
    %v1136 = vadd.f32 %v1130, %v1134
    %v1137 = vmul.f32 %v1039, %v475
    %v1138 = vadd.f32 %v1136, %v1137
    %v1139 = vmul.f32 %v1039, %v478
    %1141 = vrot.lane.b32.xlu0 %v1139, 127
    %v1142 = vpop.permute.xlu0 %1141
    %v1144 = vadd.f32 %v1138, %v1142
    %v1145 = vmul.f32 %v1039, %v485
    %1147 = vrot.lane.b32.xlu0 %v1145, 126
    %v1148 = vpop.permute.xlu0 %1147
    %v1150 = vadd.f32 %v1144, %v1148
    %v1151 = vadd.f32 %v1150, %v492
    %v1152 = vmax.f32 %v1151, 0.0
    %v1153 = vmul.f32 %v934, %v495
    %v1154 = vmul.f32 %v934, %v497
    %1156 = vrot.lane.b32.xlu0 %v1154, 127
    %v1157 = vpop.permute.xlu0 %1156
    %v1159 = vadd.f32 %v1153, %v1157
    %v1160 = vmul.f32 %v934, %v504
    %1162 = vrot.lane.b32.xlu0 %v1160, 126
    %v1163 = vpop.permute.xlu0 %1162
    %v1165 = vadd.f32 %v1159, %v1163
    %v1166 = vmul.f32 %v949, %v511
    %v1167 = vadd.f32 %v1165, %v1166
    %v1168 = vmul.f32 %v949, %v514
    %1170 = vrot.lane.b32.xlu0 %v1168, 127
    %v1171 = vpop.permute.xlu0 %1170
    %v1173 = vadd.f32 %v1167, %v1171
    %v1174 = vmul.f32 %v949, %v521
    %1176 = vrot.lane.b32.xlu0 %v1174, 126
    %v1177 = vpop.permute.xlu0 %1176
    %v1179 = vadd.f32 %v1173, %v1177
    %v1180 = vmul.f32 %v964, %v528
    %v1181 = vadd.f32 %v1179, %v1180
    %v1182 = vmul.f32 %v964, %v531
    %1184 = vrot.lane.b32.xlu0 %v1182, 127
    %v1185 = vpop.permute.xlu0 %1184
    %v1187 = vadd.f32 %v1181, %v1185
    %v1188 = vmul.f32 %v964, %v538
    %1190 = vrot.lane.b32.xlu0 %v1188, 126
    %v1191 = vpop.permute.xlu0 %1190
    %v1193 = vadd.f32 %v1187, %v1191
    %v1194 = vmul.f32 %v979, %v545
    %v1195 = vadd.f32 %v1193, %v1194
    %v1196 = vmul.f32 %v979, %v548
    %1198 = vrot.lane.b32.xlu0 %v1196, 127
    %v1199 = vpop.permute.xlu0 %1198
    %v1201 = vadd.f32 %v1195, %v1199
    %v1202 = vmul.f32 %v979, %v555
    %1204 = vrot.lane.b32.xlu0 %v1202, 126
    %v1205 = vpop.permute.xlu0 %1204
    %v1207 = vadd.f32 %v1201, %v1205
    %v1208 = vmul.f32 %v994, %v562
    %v1209 = vadd.f32 %v1207, %v1208
    %v1210 = vmul.f32 %v994, %v565
    %1212 = vrot.lane.b32.xlu0 %v1210, 127
    %v1213 = vpop.permute.xlu0 %1212
    %v1215 = vadd.f32 %v1209, %v1213
    %v1216 = vmul.f32 %v994, %v572
    %1218 = vrot.lane.b32.xlu0 %v1216, 126
    %v1219 = vpop.permute.xlu0 %1218
    %v1221 = vadd.f32 %v1215, %v1219
    %v1222 = vmul.f32 %v1009, %v579
    %v1223 = vadd.f32 %v1221, %v1222
    %v1224 = vmul.f32 %v1009, %v582
    %1226 = vrot.lane.b32.xlu0 %v1224, 127
    %v1227 = vpop.permute.xlu0 %1226
    %v1229 = vadd.f32 %v1223, %v1227
    %v1230 = vmul.f32 %v1009, %v589
    %1232 = vrot.lane.b32.xlu0 %v1230, 126
    %v1233 = vpop.permute.xlu0 %1232
    %v1235 = vadd.f32 %v1229, %v1233
    %v1236 = vmul.f32 %v1024, %v596
    %v1237 = vadd.f32 %v1235, %v1236
    %v1238 = vmul.f32 %v1024, %v599
    %1240 = vrot.lane.b32.xlu0 %v1238, 127
    %v1241 = vpop.permute.xlu0 %1240
    %v1243 = vadd.f32 %v1237, %v1241
    %v1244 = vmul.f32 %v1024, %v606
    %1246 = vrot.lane.b32.xlu0 %v1244, 126
    %v1247 = vpop.permute.xlu0 %1246
    %v1249 = vadd.f32 %v1243, %v1247
    %v1250 = vmul.f32 %v1039, %v613
    %v1251 = vadd.f32 %v1249, %v1250
    %v1252 = vmul.f32 %v1039, %v616
    %1254 = vrot.lane.b32.xlu0 %v1252, 127
    %v1255 = vpop.permute.xlu0 %1254
    %v1257 = vadd.f32 %v1251, %v1255
    %v1258 = vmul.f32 %v1039, %v623
    %1260 = vrot.lane.b32.xlu0 %v1258, 126
    %v1261 = vpop.permute.xlu0 %1260
    %v1263 = vadd.f32 %v1257, %v1261
    %v1264 = vadd.f32 %v1263, %v630
    %v1265 = vmax.f32 %v1264, 0.0
    %v1266 = vadd.f32 %v1152, %v1265
    %v1267 = vmul.f32 %v934, %v634
    %v1268 = vmul.f32 %v934, %v636
    %1270 = vrot.lane.b32.xlu0 %v1268, 127
    %v1271 = vpop.permute.xlu0 %1270
    %v1273 = vadd.f32 %v1267, %v1271
    %v1274 = vmul.f32 %v934, %v643
    %1276 = vrot.lane.b32.xlu0 %v1274, 126
    %v1277 = vpop.permute.xlu0 %1276
    %v1279 = vadd.f32 %v1273, %v1277
    %v1280 = vmul.f32 %v949, %v650
    %v1281 = vadd.f32 %v1279, %v1280
    %v1282 = vmul.f32 %v949, %v653
    %1284 = vrot.lane.b32.xlu0 %v1282, 127
    %v1285 = vpop.permute.xlu0 %1284
    %v1287 = vadd.f32 %v1281, %v1285
    %v1288 = vmul.f32 %v949, %v660
    %1290 = vrot.lane.b32.xlu0 %v1288, 126
    %v1291 = vpop.permute.xlu0 %1290
    %v1293 = vadd.f32 %v1287, %v1291
    %v1294 = vmul.f32 %v964, %v667
    %v1295 = vadd.f32 %v1293, %v1294
    %v1296 = vmul.f32 %v964, %v670
    %1298 = vrot.lane.b32.xlu0 %v1296, 127
    %v1299 = vpop.permute.xlu0 %1298
    %v1301 = vadd.f32 %v1295, %v1299
    %v1302 = vmul.f32 %v964, %v677
    %1304 = vrot.lane.b32.xlu0 %v1302, 126
    %v1305 = vpop.permute.xlu0 %1304
    %v1307 = vadd.f32 %v1301, %v1305
    %v1308 = vmul.f32 %v979, %v684
    %v1309 = vadd.f32 %v1307, %v1308
    %v1310 = vmul.f32 %v979, %v687
    %1312 = vrot.lane.b32.xlu0 %v1310, 127
    %v1313 = vpop.permute.xlu0 %1312
    %v1315 = vadd.f32 %v1309, %v1313
    %v1316 = vmul.f32 %v979, %v694
    %1318 = vrot.lane.b32.xlu0 %v1316, 126
    %v1319 = vpop.permute.xlu0 %1318
    %v1321 = vadd.f32 %v1315, %v1319
    %v1322 = vmul.f32 %v994, %v701
    %v1323 = vadd.f32 %v1321, %v1322
    %v1324 = vmul.f32 %v994, %v704
    %1326 = vrot.lane.b32.xlu0 %v1324, 127
    %v1327 = vpop.permute.xlu0 %1326
    %v1329 = vadd.f32 %v1323, %v1327
    %v1330 = vmul.f32 %v994, %v711
    %1332 = vrot.lane.b32.xlu0 %v1330, 126
    %v1333 = vpop.permute.xlu0 %1332
    %v1335 = vadd.f32 %v1329, %v1333
    %v1336 = vmul.f32 %v1009, %v718
    %v1337 = vadd.f32 %v1335, %v1336
    %v1338 = vmul.f32 %v1009, %v721
    %1340 = vrot.lane.b32.xlu0 %v1338, 127
    %v1341 = vpop.permute.xlu0 %1340
    %v1343 = vadd.f32 %v1337, %v1341
    %v1344 = vmul.f32 %v1009, %v728
    %1346 = vrot.lane.b32.xlu0 %v1344, 126
    %v1347 = vpop.permute.xlu0 %1346
    %v1349 = vadd.f32 %v1343, %v1347
    %v1350 = vmul.f32 %v1024, %v735
    %v1351 = vadd.f32 %v1349, %v1350
    %v1352 = vmul.f32 %v1024, %v738
    %1354 = vrot.lane.b32.xlu0 %v1352, 127
    %v1355 = vpop.permute.xlu0 %1354
    %v1357 = vadd.f32 %v1351, %v1355
    %v1358 = vmul.f32 %v1024, %v745
    %1360 = vrot.lane.b32.xlu0 %v1358, 126
    %v1361 = vpop.permute.xlu0 %1360
    %v1363 = vadd.f32 %v1357, %v1361
    %v1364 = vmul.f32 %v1039, %v752
    %v1365 = vadd.f32 %v1363, %v1364
    %v1366 = vmul.f32 %v1039, %v755
    %1368 = vrot.lane.b32.xlu0 %v1366, 127
    %v1369 = vpop.permute.xlu0 %1368
    %v1371 = vadd.f32 %v1365, %v1369
    %v1372 = vmul.f32 %v1039, %v762
    %1374 = vrot.lane.b32.xlu0 %v1372, 126
    %v1375 = vpop.permute.xlu0 %1374
    %v1377 = vadd.f32 %v1371, %v1375
    %v1378 = vadd.f32 %v1377, %v769
    %v1379 = vmax.f32 %v1378, 0.0
    %v1380 = vadd.f32 %v1266, %v1379
    %v1381 = vmul.f32 %v934, %v773
    %v1382 = vmul.f32 %v934, %v775
    %1384 = vrot.lane.b32.xlu0 %v1382, 127
    %v1385 = vpop.permute.xlu0 %1384
    %v1387 = vadd.f32 %v1381, %v1385
    %v1388 = vmul.f32 %v934, %v782
    %1390 = vrot.lane.b32.xlu0 %v1388, 126
    %v1391 = vpop.permute.xlu0 %1390
    %v1393 = vadd.f32 %v1387, %v1391
    %v1394 = vmul.f32 %v949, %v789
    %v1395 = vadd.f32 %v1393, %v1394
    %v1396 = vmul.f32 %v949, %v792
    %1398 = vrot.lane.b32.xlu0 %v1396, 127
    %v1399 = vpop.permute.xlu0 %1398
    %v1401 = vadd.f32 %v1395, %v1399
    %v1402 = vmul.f32 %v949, %v799
    %1404 = vrot.lane.b32.xlu0 %v1402, 126
    %v1405 = vpop.permute.xlu0 %1404
    %v1407 = vadd.f32 %v1401, %v1405
    %v1408 = vmul.f32 %v964, %v806
    %v1409 = vadd.f32 %v1407, %v1408
    %v1410 = vmul.f32 %v964, %v809
    %1412 = vrot.lane.b32.xlu0 %v1410, 127
    %v1413 = vpop.permute.xlu0 %1412
    %v1415 = vadd.f32 %v1409, %v1413
    %v1416 = vmul.f32 %v964, %v816
    %1418 = vrot.lane.b32.xlu0 %v1416, 126
    %v1419 = vpop.permute.xlu0 %1418
    %v1421 = vadd.f32 %v1415, %v1419
    %v1422 = vmul.f32 %v979, %v823
    %v1423 = vadd.f32 %v1421, %v1422
    %v1424 = vmul.f32 %v979, %v826
    %1426 = vrot.lane.b32.xlu0 %v1424, 127
    %v1427 = vpop.permute.xlu0 %1426
    %v1429 = vadd.f32 %v1423, %v1427
    %v1430 = vmul.f32 %v979, %v833
    %1432 = vrot.lane.b32.xlu0 %v1430, 126
    %v1433 = vpop.permute.xlu0 %1432
    %v1435 = vadd.f32 %v1429, %v1433
    %v1436 = vmul.f32 %v994, %v840
    %v1437 = vadd.f32 %v1435, %v1436
    %v1438 = vmul.f32 %v994, %v843
    %1440 = vrot.lane.b32.xlu0 %v1438, 127
    %v1441 = vpop.permute.xlu0 %1440
    %v1443 = vadd.f32 %v1437, %v1441
    %v1444 = vmul.f32 %v994, %v850
    %1446 = vrot.lane.b32.xlu0 %v1444, 126
    %v1447 = vpop.permute.xlu0 %1446
    %v1449 = vadd.f32 %v1443, %v1447
    %v1450 = vmul.f32 %v1009, %v857
    %v1451 = vadd.f32 %v1449, %v1450
    %v1452 = vmul.f32 %v1009, %v860
    %1454 = vrot.lane.b32.xlu0 %v1452, 127
    %v1455 = vpop.permute.xlu0 %1454
    %v1457 = vadd.f32 %v1451, %v1455
    %v1458 = vmul.f32 %v1009, %v867
    %1460 = vrot.lane.b32.xlu0 %v1458, 126
    %v1461 = vpop.permute.xlu0 %1460
    %v1463 = vadd.f32 %v1457, %v1461
    %v1464 = vmul.f32 %v1024, %v874
    %v1465 = vadd.f32 %v1463, %v1464
    %v1466 = vmul.f32 %v1024, %v877
    %1468 = vrot.lane.b32.xlu0 %v1466, 127
    %v1469 = vpop.permute.xlu0 %1468
    %v1471 = vadd.f32 %v1465, %v1469
    %v1472 = vmul.f32 %v1024, %v884
    %1474 = vrot.lane.b32.xlu0 %v1472, 126
    %v1475 = vpop.permute.xlu0 %1474
    %v1477 = vadd.f32 %v1471, %v1475
    %v1478 = vmul.f32 %v1039, %v891
    %v1479 = vadd.f32 %v1477, %v1478
    %v1480 = vmul.f32 %v1039, %v894
    %1482 = vrot.lane.b32.xlu0 %v1480, 127
    %v1483 = vpop.permute.xlu0 %1482
    %v1485 = vadd.f32 %v1479, %v1483
    %v1486 = vmul.f32 %v1039, %v901
    %1488 = vrot.lane.b32.xlu0 %v1486, 126
    %v1489 = vpop.permute.xlu0 %1488
    %v1491 = vadd.f32 %v1485, %v1489
    %v1492 = vadd.f32 %v1491, %v908
    %v1493 = vmax.f32 %v1492, 0.0
    %v1494 = vadd.f32 %v1380, %v1493
    %v1495 = vmul.f32 %v1494, 0.25
    %1497 = vrot.lane.b32.xlu0 %v1495, 16
    %v1498 = vpop.permute.xlu0 %1497
    %vm1500 = vcmask 320736
    %1501 = vst.msk [vmem:[#allocation10] sm:$0x3] %vm1500, %v1498
    // Predicated region
    $region38: #{one_neuron_forward.1} parent=1 // pred_check
      _
    $region39: #{one_neuron_forward.1} parent=1 // pred_check_branch
      %1503 = sbr.rel (0) target = $region41
    $region40: #{one_neuron_forward.1} parent=1 // pred_region
      %s1505 = ssub.s32 32, 32
      %1506 = vsyncadd [#allocation3], %s1505
      %s1508 = sshll.u32 [#allocation10], 4
      %s1509 = int_to_ptr.vmem [resolvable:$true] %s1508
      %1511 = dma.vmem_to_hbm [thread:$0]  %s1509, 32, %s5, [#allocation3]
    $region41: #{one_neuron_forward.1} parent=1 // pred_fallthru
      _
    // Predicated region
    $region42: #{one_neuron_forward.1} parent=1 // pred_check
      _
    $region43: #{one_neuron_forward.1} parent=1 // pred_check_branch
      %1513 = sbr.rel (0) target = $region45
    $region44: #{one_neuron_forward.1} parent=1 // pred_region
      %1514 = dma.done [#allocation3], 32
    $region45: #{one_neuron_forward.1} parent=1 // pred_fallthru
      _
    %1515 = vsyncpa [#allocation3], 1
    %1516 = vsyncpa [#allocation4], 1
    %1517 = vsyncpa [#allocation6], 1
    %1518 = vsyncpa [#allocation9], 1

</llo_original>
